<compile_context>
chip_gen: v6e
topology: v6e:2x2x1
jax: 0.10.0
libtpu: 0.0.40
codegen_flags: <defaults>
</compile_context>

<pallas_src>
import jax
import jax.numpy as jnp
from jax import lax
from jax.experimental import pallas as pl
from jax.experimental.pallas import tpu as pltpu


# ----------------------------------------------------------------------------- kernel
def bilstm_kernel(len_ref, pg_ref, whh_ref, out_ref, hn_ref, cn_ref):
    """Fused masked bidirectional LSTM recurrence (both directions per iteration).

    len_ref  : (B, 1)     i32  valid sequence lengths.
    pg_ref   : (T, B, 8H) f32  gate pre-activations in "work order": iteration s
               holds [i_f(t=s)|i_b(t=T-1-s)|f_f|f_b|g_f|g_b|o_f|o_b] (biases folded).
    whh_ref  : (2H, 8H)   f32  block-diagonal recurrent weight so that
               [h_f | h_b] @ whh gives both directions' gates in one matmul.
    out_ref  : (T, B, 2H) f32  combined output [fwd | bwd] in natural time order
               (zeros at padded steps).
    hn_ref   : (2, B, H)  f32  final hidden states [forward, backward].
    cn_ref   : (2, B, H)  f32  final cell   states [forward, backward].
    """
    T = pg_ref.shape[0]
    Bb = pg_ref.shape[1]
    H2 = whh_ref.shape[0]          # 2H (concatenated state width)
    H = H2 // 2

    whh = whh_ref[...]             # (2H, 8H), loaded once, resident across the loop

    # Hoisted mask machinery: first H lanes belong to the forward chain (time s),
    # last H lanes to the backward chain (time T-1-s).
    lengths = jnp.broadcast_to(len_ref[...], (Bb, H2))                    # (Bb, 2H) i32
    is_fwd_lane = lax.broadcasted_iota(jnp.int32, (Bb, H2), 1) < H        # (Bb, 2H)

    def step(s, carry):
        h, c = carry                                                      # (Bb, 2H)
        gates = pg_ref[s] + jnp.dot(h, whh,
                                    preferred_element_type=jnp.float32)   # (Bb, 8H)
        i_g = jax.nn.sigmoid(gates[:, 0 * H2:1 * H2])
        f_g = jax.nn.sigmoid(gates[:, 1 * H2:2 * H2])
        g_g = jnp.tanh(gates[:, 2 * H2:3 * H2])
        o_g = jax.nn.sigmoid(gates[:, 3 * H2:4 * H2])
        c_new = f_g * c + i_g * g_g
        h_new = o_g * jnp.tanh(c_new)

        # pack_padded semantics: carry state through padded steps, emit zeros there.
        t_eff = jnp.where(is_fwd_lane, s, T - 1 - s)                      # (Bb, 2H) i32
        mb = t_eff < lengths                                              # (Bb, 2H)
        c_nxt = jnp.where(mb, c_new, c)
        h_nxt = jnp.where(mb, h_new, h)
        emit = jnp.where(mb, h_new, 0.0)

        out_ref[s, :, 0:H] = emit[:, 0:H]              # forward output at time s
        out_ref[T - 1 - s, :, H:H2] = emit[:, H:H2]    # backward output at time T-1-s
        return h_nxt, c_nxt

    zeros = jnp.zeros((Bb, H2), jnp.float32)
    h_fin, c_fin = lax.fori_loop(0, T, step, (zeros, zeros), unroll=True)

    hn_ref[0] = h_fin[:, 0:H]
    hn_ref[1] = h_fin[:, H:H2]
    cn_ref[0] = c_fin[:, 0:H]
    cn_ref[1] = c_fin[:, H:H2]


# ---------------------------------------------------------------------------- wrapper
def run_bilstm(pg_work, lengths, whh_bd):
    """pg_work: (T, B, 8H) f32; lengths: (B,) i32; whh_bd: (2H, 8H) f32."""
    T, B, G = pg_work.shape
    H2 = whh_bd.shape[0]
    H = H2 // 2

    # Batch tiling: one grid step per batch tile; "parallel" lets multiple
    # TensorCores split the grid.
    B_blk = B if B <= 8 else 8
    pad = (-B) % B_blk
    len_col = lengths.astype(jnp.int32).reshape(B, 1)
    if pad:
        pg_work = jnp.pad(pg_work, ((0, 0), (0, pad), (0, 0)))
        len_col = jnp.pad(len_col, ((0, pad), (0, 0)))   # padded rows: length 0
    Bp = B + pad
    grid = (Bp // B_blk,)

    out_shapes = (
        jax.ShapeDtypeStruct((T, Bp, H2), jnp.float32),   # combined [fwd|bwd] outputs
        jax.ShapeDtypeStruct((2, Bp, H), jnp.float32),    # h_n
        jax.ShapeDtypeStruct((2, Bp, H), jnp.float32),    # c_n
    )

    out, h_n, c_n = pl.pallas_call(
        bilstm_kernel,
        out_shape=out_shapes,
        grid=grid,
        in_specs=[
            pl.BlockSpec((B_blk, 1), lambda b: (b, 0)),
            pl.BlockSpec((T, B_blk, G), lambda b: (0, b, 0)),
            pl.BlockSpec((H2, G), lambda b: (0, 0)),
        ],
        out_specs=(
            pl.BlockSpec((T, B_blk, H2), lambda b: (0, b, 0)),
            pl.BlockSpec((2, B_blk, H), lambda b: (0, b, 0)),
            pl.BlockSpec((2, B_blk, H), lambda b: (0, b, 0)),
        ),
        compiler_params=pltpu.CompilerParams(
            dimension_semantics=("parallel",)),
    )(len_col, pg_work, whh_bd)

    if pad:
        out = out[:, :B]
        h_n = h_n[:, :B]
        c_n = c_n[:, :B]
    return out, h_n, c_n


def word_sequence_forward(word_inputs, word_seq_lengths, word_seq_bert_tensor, params):
    """Mirrors WordSequence.forward (simplified WordRep, eval-mode dropout).

    word_inputs:          (B, T)      int32 word ids
    word_seq_lengths:     (B,)        int32 valid lengths (sorted descending)
    word_seq_bert_tensor: (B, T, 768) f32 BERT features
    returns (outputs (B, T, hidden_dim), (h_n (2,B,H), c_n (2,B,H)))
    """
    E = params["word_emb"].shape[1]
    H = params["whh_f"].shape[0]
    B, T = word_inputs.shape

    # ---- Hoisted input projection (both directions, bias folded):
    #      pre-gates = WordRep(word) @ W_ih + bert @ W_ih_bert + b.
    #      The word-embedding part is a pre-projected vocab table + gather, so the
    #      (B, T, E+768) concat is never materialized.
    wih_cat = jnp.concatenate([params["wih_f"], params["wih_b"]], axis=1)   # (Din, 8H)
    b_cat = jnp.concatenate([params["b_f"], params["b_b"]], axis=1)         # (1, 8H)

    word_table = jnp.dot(params["word_emb"], wih_cat[:E],
                         preferred_element_type=jnp.float32)                # (V, 8H)
    pg = jnp.take(word_table, word_inputs, axis=0)                          # (B, T, 8H)
    pg = pg + jnp.einsum("btd,dg->btg",
                         word_seq_bert_tensor.astype(jnp.float32),
                         wih_cat[E:],
                         preferred_element_type=jnp.float32)
    pg = pg + b_cat[None]                                                   # (B, T, 8H)

    # Split directions, time-reverse the backward half, and interleave gates so that
    # each gate block is [fwd H | bwd H] (matches the block-diagonal W_hh layout).
    pg_f = pg[:, :, :4 * H]
    pg_b = jnp.flip(pg[:, :, 4 * H:], axis=1)
    pg_work = jnp.concatenate(
        [pg_f.reshape(B, T, 4, H), pg_b.reshape(B, T, 4, H)], axis=-1
    ).reshape(B, T, 8 * H)
    pg_work = jnp.transpose(pg_work, (1, 0, 2))                             # (T, B, 8H)

    # Block-diagonal recurrent weight in the interleaved gate layout: (2H, 8H).
    whh_f = params["whh_f"].reshape(H, 4, H)
    whh_b = params["whh_b"].reshape(H, 4, H)
    whh_bd = jnp.zeros((2 * H, 4, 2 * H), jnp.float32)
    whh_bd = whh_bd.at[:H, :, :H].set(whh_f).at[H:, :, H:].set(whh_b)
    whh_bd = whh_bd.reshape(2 * H, 8 * H)

    out_work, h_n, c_n = run_bilstm(pg_work, word_seq_lengths, whh_bd)

    # pad_packed_sequence gives (T,B,2H); .transpose(1,0) -> (B,T,2H); dropout = id.
    feature_out = jnp.transpose(out_work, (1, 0, 2))                        # (B, T, 2H)
    return feature_out, (h_n, c_n)


# --------------------------------------------------------------------- pure-JAX ref
def reference_forward(word_inputs, word_seq_lengths, word_seq_bert_tensor, params):
    """Straightforward masked BiLSTM (same math as the original module) for checking."""
    E = params["word_emb"].shape[1]
    H = params["whh_f"].shape[0]
    B, T = word_inputs.shape
    x = jnp.concatenate(
        [jnp.take(params["word_emb"], word_inputs, axis=0),
         word_seq_bert_tensor.astype(jnp.float32)], axis=2)                 # (B,T,Din)
    x = jnp.transpose(x, (1, 0, 2))                                         # (T,B,Din)
    t_idx = jnp.arange(T, dtype=jnp.int32)[:, None]
    mask = (t_idx < word_seq_lengths[None, :]).astype(jnp.float32)[..., None]  # (T,B,1)

    def direction(wih, whh, b, xs, ms):
        def stp(carry, inp):
            h, c = carry
            x_t, m = inp
            gates = x_t @ wih + h @ whh + b
            i = jax.nn.sigmoid(gates[:, 0 * H:1 * H])
            f = jax.nn.sigmoid(gates[:, 1 * H:2 * H])
            g = jnp.tanh(gates[:, 2 * H:3 * H])
            o = jax.nn.sigmoid(gates[:, 3 * H:4 * H])
            c_new = f * c + i * g
            h_new = o * jnp.tanh(c_new)
            c = m * c_new + (1.0 - m) * c
            h = m * h_new + (1.0 - m) * h
            return (h, c), m * h_new
        init = (jnp.zeros((B, H), jnp.float32), jnp.zeros((B, H), jnp.float32))
        (hf, cf), outs = lax.scan(stp, init, (xs, ms))
        return outs, hf, cf

    out_f, hf, cf = direction(params["wih_f"], params["whh_f"], params["b_f"], x, mask)
    out_b_rev, hb, cb = direction(params["wih_b"], params["whh_b"], params["b_b"],
                                  jnp.flip(x, 0), jnp.flip(mask, 0))
    out_b = jnp.flip(out_b_rev, 0)
    lstm_out = jnp.concatenate([out_f, out_b], axis=-1)
    return (jnp.transpose(lstm_out, (1, 0, 2)),
            (jnp.stack([hf, hb]), jnp.stack([cf, cb])))


# ------------------------------------------------------------------------------ setup
def init_params(key, vocab_size, word_emb_dim, bert_dim, lstm_hidden):
    din = word_emb_dim + bert_dim
    ks = jax.random.split(key, 7)
    s = 1.0 / jnp.sqrt(jnp.float32(lstm_hidden))
    u = lambda k, shape: jax.random.uniform(k, shape, jnp.float32, -s, s)
    return {
        "word_emb": jax.random.normal(ks[0], (vocab_size, word_emb_dim), jnp.float32) * 0.1,
        # forward direction (gate order i,f,g,o, pre-transposed for x @ W)
        "wih_f": u(ks[1], (din, 4 * lstm_hidden)),
        "whh_f": u(ks[2], (lstm_hidden, 4 * lstm_hidden)),
        "b_f":   u(ks[3], (1, 4 * lstm_hidden)),          # b_ih + b_hh folded
        # backward direction
        "wih_b": u(ks[4], (din, 4 * lstm_hidden)),
        "whh_b": u(ks[5], (lstm_hidden, 4 * lstm_hidden)),
        "b_b":   u(ks[6], (1, 4 * lstm_hidden)),
    }


if __name__ == "__main__":
    # Small shapes consistent with the module: batch=2, sent_len=8,
    # word_emb_dim=32, BERT dim=768 (hard-coded in the module), HP_hidden_dim=32
    # -> bilstm hidden per direction H = 16, output hidden_dim = 32, 8H = 128 lanes.
    jax.config.update("jax_default_matmul_precision", "highest")

    B, T = 2, 8
    VOCAB, WORD_EMB, BERT_DIM = 50, 32, 768
    HP_HIDDEN = 32
    H = HP_HIDDEN // 2

    key = jax.random.PRNGKey(0)
    k_par, k_words, k_bert = jax.random.split(key, 3)

    params = init_params(k_par, VOCAB, WORD_EMB, BERT_DIM, H)

    word_inputs = jax.random.randint(k_words, (B, T), 1, VOCAB, dtype=jnp.int32)
    word_seq_lengths = jnp.array([T, 5], dtype=jnp.int32)          # sorted descending
    word_seq_bert_tensor = jax.random.normal(k_bert, (B, T, BERT_DIM), jnp.float32)

    fwd = jax.jit(word_sequence_forward)
    outputs, (h_n, c_n) = fwd(word_inputs, word_seq_lengths, word_seq_bert_tensor, params)
    jax.block_until_ready((outputs, h_n, c_n))

    assert outputs.shape == (B, T, HP_HIDDEN)
    assert h_n.shape == (2, B, H) and c_n.shape == (2, B, H)
    assert bool(jnp.all(jnp.isfinite(outputs)))
    # padded timesteps of the shorter sequence must be zero (pack/pad semantics)
    assert bool(jnp.all(outputs[1, 5:, :] == 0.0))

    # Numerical check against a plain-JAX masked BiLSTM with identical parameters.
    ref_out, (ref_h, ref_c) = reference_forward(
        word_inputs, word_seq_lengths, word_seq_bert_tensor, params)
    assert bool(jnp.allclose(outputs, ref_out, atol=1e-2, rtol=1e-2))
    assert bool(jnp.allclose(h_n, ref_h, atol=1e-2, rtol=1e-2))
    assert bool(jnp.allclose(c_n, ref_c, atol=1e-2, rtol=1e-2))

    print("KERNEL_OK")
</pallas_src>

<mosaic_0001>
module attributes {stable_mosaic.version = 11 : i64} {
  func.func @bilstm_kernel(%arg0: i32, %arg1: memref<2x1xi32, #tpu.memory_space<vmem>>, %arg2: memref<8x2x128xf32, #tpu.memory_space<vmem>>, %arg3: memref<32x128xf32, #tpu.memory_space<vmem>>, %arg4: memref<8x2x32xf32, #tpu.memory_space<vmem>>, %arg5: memref<2x2x16xf32, #tpu.memory_space<vmem>>, %arg6: memref<2x2x16xf32, #tpu.memory_space<vmem>>) attributes {dimension_semantics = [#tpu.dimension_semantics<parallel>], iteration_bounds = array<i64: 1>, scalar_prefetch = 0 : i64, scratch_operands = 0 : i64, tpu.core_type = #tpu.core_type<tc>, window_params = [{transform_indices = @transform_0, window_bounds = array<i64: 2, 1>}, {transform_indices = @transform_1, window_bounds = array<i64: 8, 2, 128>}, {pipeline_mode = #tpu.pipeline_mode<synchronous>, transform_indices = @transform_2, window_bounds = array<i64: 32, 128>}, {transform_indices = @transform_3, window_bounds = array<i64: 8, 2, 32>}, {transform_indices = @transform_4, window_bounds = array<i64: 2, 2, 16>}, {transform_indices = @transform_5, window_bounds = array<i64: 2, 2, 16>}]} {
    %c0 = arith.constant 0 : index
    %c0_0 = arith.constant 0 : index
    %0 = vector.load %arg3[%c0, %c0_0] : memref<32x128xf32, #tpu.memory_space<vmem>>, vector<32x128xf32>
    %c0_1 = arith.constant 0 : index
    %c0_2 = arith.constant 0 : index
    %1 = vector.load %arg1[%c0_1, %c0_2] : memref<2x1xi32, #tpu.memory_space<vmem>>, vector<2x1xi32>
    %2 = vector.shape_cast %1 : vector<2x1xi32> to vector<2x1xi32>
    %3 = vector.broadcast %2 : vector<2x1xi32> to vector<2x32xi32>
    %4 = tpu.iota {dimensions = array<i32: 1>} : vector<2x32xi32>
    %c16_i32 = arith.constant 16 : i32
    %5 = vector.broadcast %c16_i32 : i32 to vector<2x32xi32>
    %6 = arith.cmpi slt, %4, %5 : vector<2x32xi32>
    %cst = arith.constant 0.000000e+00 : f32
    %7 = vector.broadcast %cst : f32 to vector<2x32xf32>
    %c0_i32 = arith.constant 0 : i32
    %8 = arith.index_cast %c0_i32 : i32 to index
    %c0_3 = arith.constant 0 : index
    %c0_4 = arith.constant 0 : index
    %9 = vector.load %arg2[%8, %c0_3, %c0_4] : memref<8x2x128xf32, #tpu.memory_space<vmem>>, vector<1x2x128xf32>
    %10 = vector.shape_cast %9 : vector<1x2x128xf32> to vector<2x128xf32>
    %cst_5 = arith.constant dense<0.000000e+00> : vector<2x128xf32>
    %11 = tpu.matmul %7, %0, %cst_5 {dimension_numbers = #tpu.dot_dimension_numbers<[1], [0], [0], [1], [0, 0, 1, 1], [], []>, precision = #tpu.contract_precision<fp32>} : vector<2x32xf32>, vector<32x128xf32>, vector<2x128xf32> -> vector<2x128xf32>
    %12 = arith.addf %10, %11 : vector<2x128xf32>
    %13 = vector.extract_strided_slice %12 {offsets = [0, 0], sizes = [2, 32], strides = [1, 1]} : vector<2x128xf32> to vector<2x32xf32>
    %14 = arith.negf %13 : vector<2x32xf32>
    %15 = math.exp %14 : vector<2x32xf32>
    %cst_6 = arith.constant 1.000000e+00 : f32
    %16 = vector.broadcast %cst_6 : f32 to vector<2x32xf32>
    %17 = arith.addf %16, %15 : vector<2x32xf32>
    %18 = arith.divf %16, %17 : vector<2x32xf32>
    %19 = vector.extract_strided_slice %12 {offsets = [0, 32], sizes = [2, 32], strides = [1, 1]} : vector<2x128xf32> to vector<2x32xf32>
    %20 = arith.negf %19 : vector<2x32xf32>
    %21 = math.exp %20 : vector<2x32xf32>
    %cst_7 = arith.constant 1.000000e+00 : f32
    %22 = vector.broadcast %cst_7 : f32 to vector<2x32xf32>
    %23 = arith.addf %22, %21 : vector<2x32xf32>
    %24 = arith.divf %22, %23 : vector<2x32xf32>
    %25 = vector.extract_strided_slice %12 {offsets = [0, 64], sizes = [2, 32], strides = [1, 1]} : vector<2x128xf32> to vector<2x32xf32>
    %26 = math.tanh %25 : vector<2x32xf32>
    %27 = vector.extract_strided_slice %12 {offsets = [0, 96], sizes = [2, 32], strides = [1, 1]} : vector<2x128xf32> to vector<2x32xf32>
    %28 = arith.negf %27 : vector<2x32xf32>
    %29 = math.exp %28 : vector<2x32xf32>
    %cst_8 = arith.constant 1.000000e+00 : f32
    %30 = vector.broadcast %cst_8 : f32 to vector<2x32xf32>
    %31 = arith.addf %30, %29 : vector<2x32xf32>
    %32 = arith.divf %30, %31 : vector<2x32xf32>
    %33 = arith.mulf %24, %7 : vector<2x32xf32>
    %34 = arith.mulf %18, %26 : vector<2x32xf32>
    %35 = arith.addf %33, %34 : vector<2x32xf32>
    %36 = math.tanh %35 : vector<2x32xf32>
    %37 = arith.mulf %32, %36 : vector<2x32xf32>
    %c7_i32 = arith.constant 7 : i32
    %38 = arith.subi %c7_i32, %c0_i32 : i32
    %39 = vector.broadcast %c0_i32 : i32 to vector<2x32xi32>
    %40 = vector.broadcast %38 : i32 to vector<2x32xi32>
    %41 = arith.select %6, %39, %40 : vector<2x32xi1>, vector<2x32xi32>
    %42 = arith.cmpi slt, %41, %3 : vector<2x32xi32>
    %43 = arith.select %42, %35, %7 : vector<2x32xi1>, vector<2x32xf32>
    %44 = arith.select %42, %37, %7 : vector<2x32xi1>, vector<2x32xf32>
    %cst_9 = arith.constant 0.000000e+00 : f32
    %45 = vector.broadcast %cst_9 : f32 to vector<2x32xf32>
    %46 = arith.select %42, %37, %45 : vector<2x32xi1>, vector<2x32xf32>
    %47 = vector.extract_strided_slice %46 {offsets = [0, 0], sizes = [2, 16], strides = [1, 1]} : vector<2x32xf32> to vector<2x16xf32>
    %48 = arith.index_cast %c0_i32 : i32 to index
    %c0_10 = arith.constant 0 : index
    %c0_11 = arith.constant 0 : index
    %49 = vector.load %arg4[%48, %c0_10, %c0_11] : memref<8x2x32xf32, #tpu.memory_space<vmem>>, vector<1x2x16xf32>
    %50 = vector.shape_cast %49 : vector<1x2x16xf32> to vector<2x16xf32>
    %51 = vector.shape_cast %47 : vector<2x16xf32> to vector<1x2x16xf32>
    tpu.vector_store %arg4[%48, %c0_10, %c0_11], %51 {strides = array<i32>} : memref<8x2x32xf32, #tpu.memory_space<vmem>>, vector<1x2x16xf32>,
    %52 = vector.extract_strided_slice %46 {offsets = [0, 16], sizes = [2, 16], strides = [1, 1]} : vector<2x32xf32> to vector<2x16xf32>
    %c7_i32_12 = arith.constant 7 : i32
    %53 = arith.subi %c7_i32_12, %c0_i32 : i32
    %54 = arith.index_cast %53 : i32 to index
    %c0_13 = arith.constant 0 : index
    %c16 = arith.constant 16 : index
    %55 = vector.load %arg4[%54, %c0_13, %c16] : memref<8x2x32xf32, #tpu.memory_space<vmem>>, vector<1x2x16xf32>
    %56 = vector.shape_cast %55 : vector<1x2x16xf32> to vector<2x16xf32>
    %57 = vector.shape_cast %52 : vector<2x16xf32> to vector<1x2x16xf32>
    tpu.vector_store %arg4[%54, %c0_13, %c16], %57 {strides = array<i32>} : memref<8x2x32xf32, #tpu.memory_space<vmem>>, vector<1x2x16xf32>,
    %c1_i32 = arith.constant 1 : i32
    %58 = arith.index_cast %c1_i32 : i32 to index
    %c0_14 = arith.constant 0 : index
    %c0_15 = arith.constant 0 : index
    %59 = vector.load %arg2[%58, %c0_14, %c0_15] : memref<8x2x128xf32, #tpu.memory_space<vmem>>, vector<1x2x128xf32>
    %60 = vector.shape_cast %59 : vector<1x2x128xf32> to vector<2x128xf32>
    %cst_16 = arith.constant dense<0.000000e+00> : vector<2x128xf32>
    %61 = tpu.matmul %44, %0, %cst_16 {dimension_numbers = #tpu.dot_dimension_numbers<[1], [0], [0], [1], [0, 0, 1, 1], [], []>, precision = #tpu.contract_precision<fp32>} : vector<2x32xf32>, vector<32x128xf32>, vector<2x128xf32> -> vector<2x128xf32>
    %62 = arith.addf %60, %61 : vector<2x128xf32>
    %63 = vector.extract_strided_slice %62 {offsets = [0, 0], sizes = [2, 32], strides = [1, 1]} : vector<2x128xf32> to vector<2x32xf32>
    %64 = arith.negf %63 : vector<2x32xf32>
    %65 = math.exp %64 : vector<2x32xf32>
    %cst_17 = arith.constant 1.000000e+00 : f32
    %66 = vector.broadcast %cst_17 : f32 to vector<2x32xf32>
    %67 = arith.addf %66, %65 : vector<2x32xf32>
    %68 = arith.divf %66, %67 : vector<2x32xf32>
    %69 = vector.extract_strided_slice %62 {offsets = [0, 32], sizes = [2, 32], strides = [1, 1]} : vector<2x128xf32> to vector<2x32xf32>
    %70 = arith.negf %69 : vector<2x32xf32>
    %71 = math.exp %70 : vector<2x32xf32>
    %cst_18 = arith.constant 1.000000e+00 : f32
    %72 = vector.broadcast %cst_18 : f32 to vector<2x32xf32>
    %73 = arith.addf %72, %71 : vector<2x32xf32>
    %74 = arith.divf %72, %73 : vector<2x32xf32>
    %75 = vector.extract_strided_slice %62 {offsets = [0, 64], sizes = [2, 32], strides = [1, 1]} : vector<2x128xf32> to vector<2x32xf32>
    %76 = math.tanh %75 : vector<2x32xf32>
    %77 = vector.extract_strided_slice %62 {offsets = [0, 96], sizes = [2, 32], strides = [1, 1]} : vector<2x128xf32> to vector<2x32xf32>
    %78 = arith.negf %77 : vector<2x32xf32>
    %79 = math.exp %78 : vector<2x32xf32>
    %cst_19 = arith.constant 1.000000e+00 : f32
    %80 = vector.broadcast %cst_19 : f32 to vector<2x32xf32>
    %81 = arith.addf %80, %79 : vector<2x32xf32>
    %82 = arith.divf %80, %81 : vector<2x32xf32>
    %83 = arith.mulf %74, %43 : vector<2x32xf32>
    %84 = arith.mulf %68, %76 : vector<2x32xf32>
    %85 = arith.addf %83, %84 : vector<2x32xf32>
    %86 = math.tanh %85 : vector<2x32xf32>
    %87 = arith.mulf %82, %86 : vector<2x32xf32>
    %c7_i32_20 = arith.constant 7 : i32
    %88 = arith.subi %c7_i32_20, %c1_i32 : i32
    %89 = vector.broadcast %c1_i32 : i32 to vector<2x32xi32>
    %90 = vector.broadcast %88 : i32 to vector<2x32xi32>
    %91 = arith.select %6, %89, %90 : vector<2x32xi1>, vector<2x32xi32>
    %92 = arith.cmpi slt, %91, %3 : vector<2x32xi32>
    %93 = arith.select %92, %85, %43 : vector<2x32xi1>, vector<2x32xf32>
    %94 = arith.select %92, %87, %44 : vector<2x32xi1>, vector<2x32xf32>
    %cst_21 = arith.constant 0.000000e+00 : f32
    %95 = vector.broadcast %cst_21 : f32 to vector<2x32xf32>
    %96 = arith.select %92, %87, %95 : vector<2x32xi1>, vector<2x32xf32>
    %97 = vector.extract_strided_slice %96 {offsets = [0, 0], sizes = [2, 16], strides = [1, 1]} : vector<2x32xf32> to vector<2x16xf32>
    %98 = arith.index_cast %c1_i32 : i32 to index
    %c0_22 = arith.constant 0 : index
    %c0_23 = arith.constant 0 : index
    %99 = vector.load %arg4[%98, %c0_22, %c0_23] : memref<8x2x32xf32, #tpu.memory_space<vmem>>, vector<1x2x16xf32>
    %100 = vector.shape_cast %99 : vector<1x2x16xf32> to vector<2x16xf32>
    %101 = vector.shape_cast %97 : vector<2x16xf32> to vector<1x2x16xf32>
    tpu.vector_store %arg4[%98, %c0_22, %c0_23], %101 {strides = array<i32>} : memref<8x2x32xf32, #tpu.memory_space<vmem>>, vector<1x2x16xf32>,
    %102 = vector.extract_strided_slice %96 {offsets = [0, 16], sizes = [2, 16], strides = [1, 1]} : vector<2x32xf32> to vector<2x16xf32>
    %c7_i32_24 = arith.constant 7 : i32
    %103 = arith.subi %c7_i32_24, %c1_i32 : i32
    %104 = arith.index_cast %103 : i32 to index
    %c0_25 = arith.constant 0 : index
    %c16_26 = arith.constant 16 : index
    %105 = vector.load %arg4[%104, %c0_25, %c16_26] : memref<8x2x32xf32, #tpu.memory_space<vmem>>, vector<1x2x16xf32>
    %106 = vector.shape_cast %105 : vector<1x2x16xf32> to vector<2x16xf32>
    %107 = vector.shape_cast %102 : vector<2x16xf32> to vector<1x2x16xf32>
    tpu.vector_store %arg4[%104, %c0_25, %c16_26], %107 {strides = array<i32>} : memref<8x2x32xf32, #tpu.memory_space<vmem>>, vector<1x2x16xf32>,
    %c2_i32 = arith.constant 2 : i32
    %108 = arith.index_cast %c2_i32 : i32 to index
    %c0_27 = arith.constant 0 : index
    %c0_28 = arith.constant 0 : index
    %109 = vector.load %arg2[%108, %c0_27, %c0_28] : memref<8x2x128xf32, #tpu.memory_space<vmem>>, vector<1x2x128xf32>
    %110 = vector.shape_cast %109 : vector<1x2x128xf32> to vector<2x128xf32>
    %cst_29 = arith.constant dense<0.000000e+00> : vector<2x128xf32>
    %111 = tpu.matmul %94, %0, %cst_29 {dimension_numbers = #tpu.dot_dimension_numbers<[1], [0], [0], [1], [0, 0, 1, 1], [], []>, precision = #tpu.contract_precision<fp32>} : vector<2x32xf32>, vector<32x128xf32>, vector<2x128xf32> -> vector<2x128xf32>
    %112 = arith.addf %110, %111 : vector<2x128xf32>
    %113 = vector.extract_strided_slice %112 {offsets = [0, 0], sizes = [2, 32], strides = [1, 1]} : vector<2x128xf32> to vector<2x32xf32>
    %114 = arith.negf %113 : vector<2x32xf32>
    %115 = math.exp %114 : vector<2x32xf32>
    %cst_30 = arith.constant 1.000000e+00 : f32
    %116 = vector.broadcast %cst_30 : f32 to vector<2x32xf32>
    %117 = arith.addf %116, %115 : vector<2x32xf32>
    %118 = arith.divf %116, %117 : vector<2x32xf32>
    %119 = vector.extract_strided_slice %112 {offsets = [0, 32], sizes = [2, 32], strides = [1, 1]} : vector<2x128xf32> to vector<2x32xf32>
    %120 = arith.negf %119 : vector<2x32xf32>
    %121 = math.exp %120 : vector<2x32xf32>
    %cst_31 = arith.constant 1.000000e+00 : f32
    %122 = vector.broadcast %cst_31 : f32 to vector<2x32xf32>
    %123 = arith.addf %122, %121 : vector<2x32xf32>
    %124 = arith.divf %122, %123 : vector<2x32xf32>
    %125 = vector.extract_strided_slice %112 {offsets = [0, 64], sizes = [2, 32], strides = [1, 1]} : vector<2x128xf32> to vector<2x32xf32>
    %126 = math.tanh %125 : vector<2x32xf32>
    %127 = vector.extract_strided_slice %112 {offsets = [0, 96], sizes = [2, 32], strides = [1, 1]} : vector<2x128xf32> to vector<2x32xf32>
    %128 = arith.negf %127 : vector<2x32xf32>
    %129 = math.exp %128 : vector<2x32xf32>
    %cst_32 = arith.constant 1.000000e+00 : f32
    %130 = vector.broadcast %cst_32 : f32 to vector<2x32xf32>
    %131 = arith.addf %130, %129 : vector<2x32xf32>
    %132 = arith.divf %130, %131 : vector<2x32xf32>
    %133 = arith.mulf %124, %93 : vector<2x32xf32>
    %134 = arith.mulf %118, %126 : vector<2x32xf32>
    %135 = arith.addf %133, %134 : vector<2x32xf32>
    %136 = math.tanh %135 : vector<2x32xf32>
    %137 = arith.mulf %132, %136 : vector<2x32xf32>
    %c7_i32_33 = arith.constant 7 : i32
    %138 = arith.subi %c7_i32_33, %c2_i32 : i32
    %139 = vector.broadcast %c2_i32 : i32 to vector<2x32xi32>
    %140 = vector.broadcast %138 : i32 to vector<2x32xi32>
    %141 = arith.select %6, %139, %140 : vector<2x32xi1>, vector<2x32xi32>
    %142 = arith.cmpi slt, %141, %3 : vector<2x32xi32>
    %143 = arith.select %142, %135, %93 : vector<2x32xi1>, vector<2x32xf32>
    %144 = arith.select %142, %137, %94 : vector<2x32xi1>, vector<2x32xf32>
    %cst_34 = arith.constant 0.000000e+00 : f32
    %145 = vector.broadcast %cst_34 : f32 to vector<2x32xf32>
    %146 = arith.select %142, %137, %145 : vector<2x32xi1>, vector<2x32xf32>
    %147 = vector.extract_strided_slice %146 {offsets = [0, 0], sizes = [2, 16], strides = [1, 1]} : vector<2x32xf32> to vector<2x16xf32>
    %148 = arith.index_cast %c2_i32 : i32 to index
    %c0_35 = arith.constant 0 : index
    %c0_36 = arith.constant 0 : index
    %149 = vector.load %arg4[%148, %c0_35, %c0_36] : memref<8x2x32xf32, #tpu.memory_space<vmem>>, vector<1x2x16xf32>
    %150 = vector.shape_cast %149 : vector<1x2x16xf32> to vector<2x16xf32>
    %151 = vector.shape_cast %147 : vector<2x16xf32> to vector<1x2x16xf32>
    tpu.vector_store %arg4[%148, %c0_35, %c0_36], %151 {strides = array<i32>} : memref<8x2x32xf32, #tpu.memory_space<vmem>>, vector<1x2x16xf32>,
    %152 = vector.extract_strided_slice %146 {offsets = [0, 16], sizes = [2, 16], strides = [1, 1]} : vector<2x32xf32> to vector<2x16xf32>
    %c7_i32_37 = arith.constant 7 : i32
    %153 = arith.subi %c7_i32_37, %c2_i32 : i32
    %154 = arith.index_cast %153 : i32 to index
    %c0_38 = arith.constant 0 : index
    %c16_39 = arith.constant 16 : index
    %155 = vector.load %arg4[%154, %c0_38, %c16_39] : memref<8x2x32xf32, #tpu.memory_space<vmem>>, vector<1x2x16xf32>
    %156 = vector.shape_cast %155 : vector<1x2x16xf32> to vector<2x16xf32>
    %157 = vector.shape_cast %152 : vector<2x16xf32> to vector<1x2x16xf32>
    tpu.vector_store %arg4[%154, %c0_38, %c16_39], %157 {strides = array<i32>} : memref<8x2x32xf32, #tpu.memory_space<vmem>>, vector<1x2x16xf32>,
    %c3_i32 = arith.constant 3 : i32
    %158 = arith.index_cast %c3_i32 : i32 to index
    %c0_40 = arith.constant 0 : index
    %c0_41 = arith.constant 0 : index
    %159 = vector.load %arg2[%158, %c0_40, %c0_41] : memref<8x2x128xf32, #tpu.memory_space<vmem>>, vector<1x2x128xf32>
    %160 = vector.shape_cast %159 : vector<1x2x128xf32> to vector<2x128xf32>
    %cst_42 = arith.constant dense<0.000000e+00> : vector<2x128xf32>
    %161 = tpu.matmul %144, %0, %cst_42 {dimension_numbers = #tpu.dot_dimension_numbers<[1], [0], [0], [1], [0, 0, 1, 1], [], []>, precision = #tpu.contract_precision<fp32>} : vector<2x32xf32>, vector<32x128xf32>, vector<2x128xf32> -> vector<2x128xf32>
    %162 = arith.addf %160, %161 : vector<2x128xf32>
    %163 = vector.extract_strided_slice %162 {offsets = [0, 0], sizes = [2, 32], strides = [1, 1]} : vector<2x128xf32> to vector<2x32xf32>
    %164 = arith.negf %163 : vector<2x32xf32>
    %165 = math.exp %164 : vector<2x32xf32>
    %cst_43 = arith.constant 1.000000e+00 : f32
    %166 = vector.broadcast %cst_43 : f32 to vector<2x32xf32>
    %167 = arith.addf %166, %165 : vector<2x32xf32>
    %168 = arith.divf %166, %167 : vector<2x32xf32>
    %169 = vector.extract_strided_slice %162 {offsets = [0, 32], sizes = [2, 32], strides = [1, 1]} : vector<2x128xf32> to vector<2x32xf32>
    %170 = arith.negf %169 : vector<2x32xf32>
    %171 = math.exp %170 : vector<2x32xf32>
    %cst_44 = arith.constant 1.000000e+00 : f32
    %172 = vector.broadcast %cst_44 : f32 to vector<2x32xf32>
    %173 = arith.addf %172, %171 : vector<2x32xf32>
    %174 = arith.divf %172, %173 : vector<2x32xf32>
    %175 = vector.extract_strided_slice %162 {offsets = [0, 64], sizes = [2, 32], strides = [1, 1]} : vector<2x128xf32> to vector<2x32xf32>
    %176 = math.tanh %175 : vector<2x32xf32>
    %177 = vector.extract_strided_slice %162 {offsets = [0, 96], sizes = [2, 32], strides = [1, 1]} : vector<2x128xf32> to vector<2x32xf32>
    %178 = arith.negf %177 : vector<2x32xf32>
    %179 = math.exp %178 : vector<2x32xf32>
    %cst_45 = arith.constant 1.000000e+00 : f32
    %180 = vector.broadcast %cst_45 : f32 to vector<2x32xf32>
    %181 = arith.addf %180, %179 : vector<2x32xf32>
    %182 = arith.divf %180, %181 : vector<2x32xf32>
    %183 = arith.mulf %174, %143 : vector<2x32xf32>
    %184 = arith.mulf %168, %176 : vector<2x32xf32>
    %185 = arith.addf %183, %184 : vector<2x32xf32>
    %186 = math.tanh %185 : vector<2x32xf32>
    %187 = arith.mulf %182, %186 : vector<2x32xf32>
    %c7_i32_46 = arith.constant 7 : i32
    %188 = arith.subi %c7_i32_46, %c3_i32 : i32
    %189 = vector.broadcast %c3_i32 : i32 to vector<2x32xi32>
    %190 = vector.broadcast %188 : i32 to vector<2x32xi32>
    %191 = arith.select %6, %189, %190 : vector<2x32xi1>, vector<2x32xi32>
    %192 = arith.cmpi slt, %191, %3 : vector<2x32xi32>
    %193 = arith.select %192, %185, %143 : vector<2x32xi1>, vector<2x32xf32>
    %194 = arith.select %192, %187, %144 : vector<2x32xi1>, vector<2x32xf32>
    %cst_47 = arith.constant 0.000000e+00 : f32
    %195 = vector.broadcast %cst_47 : f32 to vector<2x32xf32>
    %196 = arith.select %192, %187, %195 : vector<2x32xi1>, vector<2x32xf32>
    %197 = vector.extract_strided_slice %196 {offsets = [0, 0], sizes = [2, 16], strides = [1, 1]} : vector<2x32xf32> to vector<2x16xf32>
    %198 = arith.index_cast %c3_i32 : i32 to index
    %c0_48 = arith.constant 0 : index
    %c0_49 = arith.constant 0 : index
    %199 = vector.load %arg4[%198, %c0_48, %c0_49] : memref<8x2x32xf32, #tpu.memory_space<vmem>>, vector<1x2x16xf32>
    %200 = vector.shape_cast %199 : vector<1x2x16xf32> to vector<2x16xf32>
    %201 = vector.shape_cast %197 : vector<2x16xf32> to vector<1x2x16xf32>
    tpu.vector_store %arg4[%198, %c0_48, %c0_49], %201 {strides = array<i32>} : memref<8x2x32xf32, #tpu.memory_space<vmem>>, vector<1x2x16xf32>,
    %202 = vector.extract_strided_slice %196 {offsets = [0, 16], sizes = [2, 16], strides = [1, 1]} : vector<2x32xf32> to vector<2x16xf32>
    %c7_i32_50 = arith.constant 7 : i32
    %203 = arith.subi %c7_i32_50, %c3_i32 : i32
    %204 = arith.index_cast %203 : i32 to index
    %c0_51 = arith.constant 0 : index
    %c16_52 = arith.constant 16 : index
    %205 = vector.load %arg4[%204, %c0_51, %c16_52] : memref<8x2x32xf32, #tpu.memory_space<vmem>>, vector<1x2x16xf32>
    %206 = vector.shape_cast %205 : vector<1x2x16xf32> to vector<2x16xf32>
    %207 = vector.shape_cast %202 : vector<2x16xf32> to vector<1x2x16xf32>
    tpu.vector_store %arg4[%204, %c0_51, %c16_52], %207 {strides = array<i32>} : memref<8x2x32xf32, #tpu.memory_space<vmem>>, vector<1x2x16xf32>,
    %c4_i32 = arith.constant 4 : i32
    %208 = arith.index_cast %c4_i32 : i32 to index
    %c0_53 = arith.constant 0 : index
    %c0_54 = arith.constant 0 : index
    %209 = vector.load %arg2[%208, %c0_53, %c0_54] : memref<8x2x128xf32, #tpu.memory_space<vmem>>, vector<1x2x128xf32>
    %210 = vector.shape_cast %209 : vector<1x2x128xf32> to vector<2x128xf32>
    %cst_55 = arith.constant dense<0.000000e+00> : vector<2x128xf32>
    %211 = tpu.matmul %194, %0, %cst_55 {dimension_numbers = #tpu.dot_dimension_numbers<[1], [0], [0], [1], [0, 0, 1, 1], [], []>, precision = #tpu.contract_precision<fp32>} : vector<2x32xf32>, vector<32x128xf32>, vector<2x128xf32> -> vector<2x128xf32>
    %212 = arith.addf %210, %211 : vector<2x128xf32>
    %213 = vector.extract_strided_slice %212 {offsets = [0, 0], sizes = [2, 32], strides = [1, 1]} : vector<2x128xf32> to vector<2x32xf32>
    %214 = arith.negf %213 : vector<2x32xf32>
    %215 = math.exp %214 : vector<2x32xf32>
    %cst_56 = arith.constant 1.000000e+00 : f32
    %216 = vector.broadcast %cst_56 : f32 to vector<2x32xf32>
    %217 = arith.addf %216, %215 : vector<2x32xf32>
    %218 = arith.divf %216, %217 : vector<2x32xf32>
    %219 = vector.extract_strided_slice %212 {offsets = [0, 32], sizes = [2, 32], strides = [1, 1]} : vector<2x128xf32> to vector<2x32xf32>
    %220 = arith.negf %219 : vector<2x32xf32>
    %221 = math.exp %220 : vector<2x32xf32>
    %cst_57 = arith.constant 1.000000e+00 : f32
    %222 = vector.broadcast %cst_57 : f32 to vector<2x32xf32>
    %223 = arith.addf %222, %221 : vector<2x32xf32>
    %224 = arith.divf %222, %223 : vector<2x32xf32>
    %225 = vector.extract_strided_slice %212 {offsets = [0, 64], sizes = [2, 32], strides = [1, 1]} : vector<2x128xf32> to vector<2x32xf32>
    %226 = math.tanh %225 : vector<2x32xf32>
    %227 = vector.extract_strided_slice %212 {offsets = [0, 96], sizes = [2, 32], strides = [1, 1]} : vector<2x128xf32> to vector<2x32xf32>
    %228 = arith.negf %227 : vector<2x32xf32>
    %229 = math.exp %228 : vector<2x32xf32>
    %cst_58 = arith.constant 1.000000e+00 : f32
    %230 = vector.broadcast %cst_58 : f32 to vector<2x32xf32>
    %231 = arith.addf %230, %229 : vector<2x32xf32>
    %232 = arith.divf %230, %231 : vector<2x32xf32>
    %233 = arith.mulf %224, %193 : vector<2x32xf32>
    %234 = arith.mulf %218, %226 : vector<2x32xf32>
    %235 = arith.addf %233, %234 : vector<2x32xf32>
    %236 = math.tanh %235 : vector<2x32xf32>
    %237 = arith.mulf %232, %236 : vector<2x32xf32>
    %c7_i32_59 = arith.constant 7 : i32
    %238 = arith.subi %c7_i32_59, %c4_i32 : i32
    %239 = vector.broadcast %c4_i32 : i32 to vector<2x32xi32>
    %240 = vector.broadcast %238 : i32 to vector<2x32xi32>
    %241 = arith.select %6, %239, %240 : vector<2x32xi1>, vector<2x32xi32>
    %242 = arith.cmpi slt, %241, %3 : vector<2x32xi32>
    %243 = arith.select %242, %235, %193 : vector<2x32xi1>, vector<2x32xf32>
    %244 = arith.select %242, %237, %194 : vector<2x32xi1>, vector<2x32xf32>
    %cst_60 = arith.constant 0.000000e+00 : f32
    %245 = vector.broadcast %cst_60 : f32 to vector<2x32xf32>
    %246 = arith.select %242, %237, %245 : vector<2x32xi1>, vector<2x32xf32>
    %247 = vector.extract_strided_slice %246 {offsets = [0, 0], sizes = [2, 16], strides = [1, 1]} : vector<2x32xf32> to vector<2x16xf32>
    %248 = arith.index_cast %c4_i32 : i32 to index
    %c0_61 = arith.constant 0 : index
    %c0_62 = arith.constant 0 : index
    %249 = vector.load %arg4[%248, %c0_61, %c0_62] : memref<8x2x32xf32, #tpu.memory_space<vmem>>, vector<1x2x16xf32>
    %250 = vector.shape_cast %249 : vector<1x2x16xf32> to vector<2x16xf32>
    %251 = vector.shape_cast %247 : vector<2x16xf32> to vector<1x2x16xf32>
    tpu.vector_store %arg4[%248, %c0_61, %c0_62], %251 {strides = array<i32>} : memref<8x2x32xf32, #tpu.memory_space<vmem>>, vector<1x2x16xf32>,
    %252 = vector.extract_strided_slice %246 {offsets = [0, 16], sizes = [2, 16], strides = [1, 1]} : vector<2x32xf32> to vector<2x16xf32>
    %c7_i32_63 = arith.constant 7 : i32
    %253 = arith.subi %c7_i32_63, %c4_i32 : i32
    %254 = arith.index_cast %253 : i32 to index
    %c0_64 = arith.constant 0 : index
    %c16_65 = arith.constant 16 : index
    %255 = vector.load %arg4[%254, %c0_64, %c16_65] : memref<8x2x32xf32, #tpu.memory_space<vmem>>, vector<1x2x16xf32>
    %256 = vector.shape_cast %255 : vector<1x2x16xf32> to vector<2x16xf32>
    %257 = vector.shape_cast %252 : vector<2x16xf32> to vector<1x2x16xf32>
    tpu.vector_store %arg4[%254, %c0_64, %c16_65], %257 {strides = array<i32>} : memref<8x2x32xf32, #tpu.memory_space<vmem>>, vector<1x2x16xf32>,
    %c5_i32 = arith.constant 5 : i32
    %258 = arith.index_cast %c5_i32 : i32 to index
    %c0_66 = arith.constant 0 : index
    %c0_67 = arith.constant 0 : index
    %259 = vector.load %arg2[%258, %c0_66, %c0_67] : memref<8x2x128xf32, #tpu.memory_space<vmem>>, vector<1x2x128xf32>
    %260 = vector.shape_cast %259 : vector<1x2x128xf32> to vector<2x128xf32>
    %cst_68 = arith.constant dense<0.000000e+00> : vector<2x128xf32>
    %261 = tpu.matmul %244, %0, %cst_68 {dimension_numbers = #tpu.dot_dimension_numbers<[1], [0], [0], [1], [0, 0, 1, 1], [], []>, precision = #tpu.contract_precision<fp32>} : vector<2x32xf32>, vector<32x128xf32>, vector<2x128xf32> -> vector<2x128xf32>
    %262 = arith.addf %260, %261 : vector<2x128xf32>
    %263 = vector.extract_strided_slice %262 {offsets = [0, 0], sizes = [2, 32], strides = [1, 1]} : vector<2x128xf32> to vector<2x32xf32>
    %264 = arith.negf %263 : vector<2x32xf32>
    %265 = math.exp %264 : vector<2x32xf32>
    %cst_69 = arith.constant 1.000000e+00 : f32
    %266 = vector.broadcast %cst_69 : f32 to vector<2x32xf32>
    %267 = arith.addf %266, %265 : vector<2x32xf32>
    %268 = arith.divf %266, %267 : vector<2x32xf32>
    %269 = vector.extract_strided_slice %262 {offsets = [0, 32], sizes = [2, 32], strides = [1, 1]} : vector<2x128xf32> to vector<2x32xf32>
    %270 = arith.negf %269 : vector<2x32xf32>
    %271 = math.exp %270 : vector<2x32xf32>
    %cst_70 = arith.constant 1.000000e+00 : f32
    %272 = vector.broadcast %cst_70 : f32 to vector<2x32xf32>
    %273 = arith.addf %272, %271 : vector<2x32xf32>
    %274 = arith.divf %272, %273 : vector<2x32xf32>
    %275 = vector.extract_strided_slice %262 {offsets = [0, 64], sizes = [2, 32], strides = [1, 1]} : vector<2x128xf32> to vector<2x32xf32>
    %276 = math.tanh %275 : vector<2x32xf32>
    %277 = vector.extract_strided_slice %262 {offsets = [0, 96], sizes = [2, 32], strides = [1, 1]} : vector<2x128xf32> to vector<2x32xf32>
    %278 = arith.negf %277 : vector<2x32xf32>
    %279 = math.exp %278 : vector<2x32xf32>
    %cst_71 = arith.constant 1.000000e+00 : f32
    %280 = vector.broadcast %cst_71 : f32 to vector<2x32xf32>
    %281 = arith.addf %280, %279 : vector<2x32xf32>
    %282 = arith.divf %280, %281 : vector<2x32xf32>
    %283 = arith.mulf %274, %243 : vector<2x32xf32>
    %284 = arith.mulf %268, %276 : vector<2x32xf32>
    %285 = arith.addf %283, %284 : vector<2x32xf32>
    %286 = math.tanh %285 : vector<2x32xf32>
    %287 = arith.mulf %282, %286 : vector<2x32xf32>
    %c7_i32_72 = arith.constant 7 : i32
    %288 = arith.subi %c7_i32_72, %c5_i32 : i32
    %289 = vector.broadcast %c5_i32 : i32 to vector<2x32xi32>
    %290 = vector.broadcast %288 : i32 to vector<2x32xi32>
    %291 = arith.select %6, %289, %290 : vector<2x32xi1>, vector<2x32xi32>
    %292 = arith.cmpi slt, %291, %3 : vector<2x32xi32>
    %293 = arith.select %292, %285, %243 : vector<2x32xi1>, vector<2x32xf32>
    %294 = arith.select %292, %287, %244 : vector<2x32xi1>, vector<2x32xf32>
    %cst_73 = arith.constant 0.000000e+00 : f32
    %295 = vector.broadcast %cst_73 : f32 to vector<2x32xf32>
    %296 = arith.select %292, %287, %295 : vector<2x32xi1>, vector<2x32xf32>
    %297 = vector.extract_strided_slice %296 {offsets = [0, 0], sizes = [2, 16], strides = [1, 1]} : vector<2x32xf32> to vector<2x16xf32>
    %298 = arith.index_cast %c5_i32 : i32 to index
    %c0_74 = arith.constant 0 : index
    %c0_75 = arith.constant 0 : index
    %299 = vector.load %arg4[%298, %c0_74, %c0_75] : memref<8x2x32xf32, #tpu.memory_space<vmem>>, vector<1x2x16xf32>
    %300 = vector.shape_cast %299 : vector<1x2x16xf32> to vector<2x16xf32>
    %301 = vector.shape_cast %297 : vector<2x16xf32> to vector<1x2x16xf32>
    tpu.vector_store %arg4[%298, %c0_74, %c0_75], %301 {strides = array<i32>} : memref<8x2x32xf32, #tpu.memory_space<vmem>>, vector<1x2x16xf32>,
    %302 = vector.extract_strided_slice %296 {offsets = [0, 16], sizes = [2, 16], strides = [1, 1]} : vector<2x32xf32> to vector<2x16xf32>
    %c7_i32_76 = arith.constant 7 : i32
    %303 = arith.subi %c7_i32_76, %c5_i32 : i32
    %304 = arith.index_cast %303 : i32 to index
    %c0_77 = arith.constant 0 : index
    %c16_78 = arith.constant 16 : index
    %305 = vector.load %arg4[%304, %c0_77, %c16_78] : memref<8x2x32xf32, #tpu.memory_space<vmem>>, vector<1x2x16xf32>
    %306 = vector.shape_cast %305 : vector<1x2x16xf32> to vector<2x16xf32>
    %307 = vector.shape_cast %302 : vector<2x16xf32> to vector<1x2x16xf32>
    tpu.vector_store %arg4[%304, %c0_77, %c16_78], %307 {strides = array<i32>} : memref<8x2x32xf32, #tpu.memory_space<vmem>>, vector<1x2x16xf32>,
    %c6_i32 = arith.constant 6 : i32
    %308 = arith.index_cast %c6_i32 : i32 to index
    %c0_79 = arith.constant 0 : index
    %c0_80 = arith.constant 0 : index
    %309 = vector.load %arg2[%308, %c0_79, %c0_80] : memref<8x2x128xf32, #tpu.memory_space<vmem>>, vector<1x2x128xf32>
    %310 = vector.shape_cast %309 : vector<1x2x128xf32> to vector<2x128xf32>
    %cst_81 = arith.constant dense<0.000000e+00> : vector<2x128xf32>
    %311 = tpu.matmul %294, %0, %cst_81 {dimension_numbers = #tpu.dot_dimension_numbers<[1], [0], [0], [1], [0, 0, 1, 1], [], []>, precision = #tpu.contract_precision<fp32>} : vector<2x32xf32>, vector<32x128xf32>, vector<2x128xf32> -> vector<2x128xf32>
    %312 = arith.addf %310, %311 : vector<2x128xf32>
    %313 = vector.extract_strided_slice %312 {offsets = [0, 0], sizes = [2, 32], strides = [1, 1]} : vector<2x128xf32> to vector<2x32xf32>
    %314 = arith.negf %313 : vector<2x32xf32>
    %315 = math.exp %314 : vector<2x32xf32>
    %cst_82 = arith.constant 1.000000e+00 : f32
    %316 = vector.broadcast %cst_82 : f32 to vector<2x32xf32>
    %317 = arith.addf %316, %315 : vector<2x32xf32>
    %318 = arith.divf %316, %317 : vector<2x32xf32>
    %319 = vector.extract_strided_slice %312 {offsets = [0, 32], sizes = [2, 32], strides = [1, 1]} : vector<2x128xf32> to vector<2x32xf32>
    %320 = arith.negf %319 : vector<2x32xf32>
    %321 = math.exp %320 : vector<2x32xf32>
    %cst_83 = arith.constant 1.000000e+00 : f32
    %322 = vector.broadcast %cst_83 : f32 to vector<2x32xf32>
    %323 = arith.addf %322, %321 : vector<2x32xf32>
    %324 = arith.divf %322, %323 : vector<2x32xf32>
    %325 = vector.extract_strided_slice %312 {offsets = [0, 64], sizes = [2, 32], strides = [1, 1]} : vector<2x128xf32> to vector<2x32xf32>
    %326 = math.tanh %325 : vector<2x32xf32>
    %327 = vector.extract_strided_slice %312 {offsets = [0, 96], sizes = [2, 32], strides = [1, 1]} : vector<2x128xf32> to vector<2x32xf32>
    %328 = arith.negf %327 : vector<2x32xf32>
    %329 = math.exp %328 : vector<2x32xf32>
    %cst_84 = arith.constant 1.000000e+00 : f32
    %330 = vector.broadcast %cst_84 : f32 to vector<2x32xf32>
    %331 = arith.addf %330, %329 : vector<2x32xf32>
    %332 = arith.divf %330, %331 : vector<2x32xf32>
    %333 = arith.mulf %324, %293 : vector<2x32xf32>
    %334 = arith.mulf %318, %326 : vector<2x32xf32>
    %335 = arith.addf %333, %334 : vector<2x32xf32>
    %336 = math.tanh %335 : vector<2x32xf32>
    %337 = arith.mulf %332, %336 : vector<2x32xf32>
    %c7_i32_85 = arith.constant 7 : i32
    %338 = arith.subi %c7_i32_85, %c6_i32 : i32
    %339 = vector.broadcast %c6_i32 : i32 to vector<2x32xi32>
    %340 = vector.broadcast %338 : i32 to vector<2x32xi32>
    %341 = arith.select %6, %339, %340 : vector<2x32xi1>, vector<2x32xi32>
    %342 = arith.cmpi slt, %341, %3 : vector<2x32xi32>
    %343 = arith.select %342, %335, %293 : vector<2x32xi1>, vector<2x32xf32>
    %344 = arith.select %342, %337, %294 : vector<2x32xi1>, vector<2x32xf32>
    %cst_86 = arith.constant 0.000000e+00 : f32
    %345 = vector.broadcast %cst_86 : f32 to vector<2x32xf32>
    %346 = arith.select %342, %337, %345 : vector<2x32xi1>, vector<2x32xf32>
    %347 = vector.extract_strided_slice %346 {offsets = [0, 0], sizes = [2, 16], strides = [1, 1]} : vector<2x32xf32> to vector<2x16xf32>
    %348 = arith.index_cast %c6_i32 : i32 to index
    %c0_87 = arith.constant 0 : index
    %c0_88 = arith.constant 0 : index
    %349 = vector.load %arg4[%348, %c0_87, %c0_88] : memref<8x2x32xf32, #tpu.memory_space<vmem>>, vector<1x2x16xf32>
    %350 = vector.shape_cast %349 : vector<1x2x16xf32> to vector<2x16xf32>
    %351 = vector.shape_cast %347 : vector<2x16xf32> to vector<1x2x16xf32>
    tpu.vector_store %arg4[%348, %c0_87, %c0_88], %351 {strides = array<i32>} : memref<8x2x32xf32, #tpu.memory_space<vmem>>, vector<1x2x16xf32>,
    %352 = vector.extract_strided_slice %346 {offsets = [0, 16], sizes = [2, 16], strides = [1, 1]} : vector<2x32xf32> to vector<2x16xf32>
    %c7_i32_89 = arith.constant 7 : i32
    %353 = arith.subi %c7_i32_89, %c6_i32 : i32
    %354 = arith.index_cast %353 : i32 to index
    %c0_90 = arith.constant 0 : index
    %c16_91 = arith.constant 16 : index
    %355 = vector.load %arg4[%354, %c0_90, %c16_91] : memref<8x2x32xf32, #tpu.memory_space<vmem>>, vector<1x2x16xf32>
    %356 = vector.shape_cast %355 : vector<1x2x16xf32> to vector<2x16xf32>
    %357 = vector.shape_cast %352 : vector<2x16xf32> to vector<1x2x16xf32>
    tpu.vector_store %arg4[%354, %c0_90, %c16_91], %357 {strides = array<i32>} : memref<8x2x32xf32, #tpu.memory_space<vmem>>, vector<1x2x16xf32>,
    %c7_i32_92 = arith.constant 7 : i32
    %358 = arith.index_cast %c7_i32_92 : i32 to index
    %c0_93 = arith.constant 0 : index
    %c0_94 = arith.constant 0 : index
    %359 = vector.load %arg2[%358, %c0_93, %c0_94] : memref<8x2x128xf32, #tpu.memory_space<vmem>>, vector<1x2x128xf32>
    %360 = vector.shape_cast %359 : vector<1x2x128xf32> to vector<2x128xf32>
    %cst_95 = arith.constant dense<0.000000e+00> : vector<2x128xf32>
    %361 = tpu.matmul %344, %0, %cst_95 {dimension_numbers = #tpu.dot_dimension_numbers<[1], [0], [0], [1], [0, 0, 1, 1], [], []>, precision = #tpu.contract_precision<fp32>} : vector<2x32xf32>, vector<32x128xf32>, vector<2x128xf32> -> vector<2x128xf32>
    %362 = arith.addf %360, %361 : vector<2x128xf32>
    %363 = vector.extract_strided_slice %362 {offsets = [0, 0], sizes = [2, 32], strides = [1, 1]} : vector<2x128xf32> to vector<2x32xf32>
    %364 = arith.negf %363 : vector<2x32xf32>
    %365 = math.exp %364 : vector<2x32xf32>
    %cst_96 = arith.constant 1.000000e+00 : f32
    %366 = vector.broadcast %cst_96 : f32 to vector<2x32xf32>
    %367 = arith.addf %366, %365 : vector<2x32xf32>
    %368 = arith.divf %366, %367 : vector<2x32xf32>
    %369 = vector.extract_strided_slice %362 {offsets = [0, 32], sizes = [2, 32], strides = [1, 1]} : vector<2x128xf32> to vector<2x32xf32>
    %370 = arith.negf %369 : vector<2x32xf32>
    %371 = math.exp %370 : vector<2x32xf32>
    %cst_97 = arith.constant 1.000000e+00 : f32
    %372 = vector.broadcast %cst_97 : f32 to vector<2x32xf32>
    %373 = arith.addf %372, %371 : vector<2x32xf32>
    %374 = arith.divf %372, %373 : vector<2x32xf32>
    %375 = vector.extract_strided_slice %362 {offsets = [0, 64], sizes = [2, 32], strides = [1, 1]} : vector<2x128xf32> to vector<2x32xf32>
    %376 = math.tanh %375 : vector<2x32xf32>
    %377 = vector.extract_strided_slice %362 {offsets = [0, 96], sizes = [2, 32], strides = [1, 1]} : vector<2x128xf32> to vector<2x32xf32>
    %378 = arith.negf %377 : vector<2x32xf32>
    %379 = math.exp %378 : vector<2x32xf32>
    %cst_98 = arith.constant 1.000000e+00 : f32
    %380 = vector.broadcast %cst_98 : f32 to vector<2x32xf32>
    %381 = arith.addf %380, %379 : vector<2x32xf32>
    %382 = arith.divf %380, %381 : vector<2x32xf32>
    %383 = arith.mulf %374, %343 : vector<2x32xf32>
    %384 = arith.mulf %368, %376 : vector<2x32xf32>
    %385 = arith.addf %383, %384 : vector<2x32xf32>
    %386 = math.tanh %385 : vector<2x32xf32>
    %387 = arith.mulf %382, %386 : vector<2x32xf32>
    %c7_i32_99 = arith.constant 7 : i32
    %388 = arith.subi %c7_i32_99, %c7_i32_92 : i32
    %389 = vector.broadcast %c7_i32_92 : i32 to vector<2x32xi32>
    %390 = vector.broadcast %388 : i32 to vector<2x32xi32>
    %391 = arith.select %6, %389, %390 : vector<2x32xi1>, vector<2x32xi32>
    %392 = arith.cmpi slt, %391, %3 : vector<2x32xi32>
    %393 = arith.select %392, %385, %343 : vector<2x32xi1>, vector<2x32xf32>
    %394 = arith.select %392, %387, %344 : vector<2x32xi1>, vector<2x32xf32>
    %cst_100 = arith.constant 0.000000e+00 : f32
    %395 = vector.broadcast %cst_100 : f32 to vector<2x32xf32>
    %396 = arith.select %392, %387, %395 : vector<2x32xi1>, vector<2x32xf32>
    %397 = vector.extract_strided_slice %396 {offsets = [0, 0], sizes = [2, 16], strides = [1, 1]} : vector<2x32xf32> to vector<2x16xf32>
    %398 = arith.index_cast %c7_i32_92 : i32 to index
    %c0_101 = arith.constant 0 : index
    %c0_102 = arith.constant 0 : index
    %399 = vector.load %arg4[%398, %c0_101, %c0_102] : memref<8x2x32xf32, #tpu.memory_space<vmem>>, vector<1x2x16xf32>
    %400 = vector.shape_cast %399 : vector<1x2x16xf32> to vector<2x16xf32>
    %401 = vector.shape_cast %397 : vector<2x16xf32> to vector<1x2x16xf32>
    tpu.vector_store %arg4[%398, %c0_101, %c0_102], %401 {strides = array<i32>} : memref<8x2x32xf32, #tpu.memory_space<vmem>>, vector<1x2x16xf32>,
    %402 = vector.extract_strided_slice %396 {offsets = [0, 16], sizes = [2, 16], strides = [1, 1]} : vector<2x32xf32> to vector<2x16xf32>
    %c7_i32_103 = arith.constant 7 : i32
    %403 = arith.subi %c7_i32_103, %c7_i32_92 : i32
    %404 = arith.index_cast %403 : i32 to index
    %c0_104 = arith.constant 0 : index
    %c16_105 = arith.constant 16 : index
    %405 = vector.load %arg4[%404, %c0_104, %c16_105] : memref<8x2x32xf32, #tpu.memory_space<vmem>>, vector<1x2x16xf32>
    %406 = vector.shape_cast %405 : vector<1x2x16xf32> to vector<2x16xf32>
    %407 = vector.shape_cast %402 : vector<2x16xf32> to vector<1x2x16xf32>
    tpu.vector_store %arg4[%404, %c0_104, %c16_105], %407 {strides = array<i32>} : memref<8x2x32xf32, #tpu.memory_space<vmem>>, vector<1x2x16xf32>,
    %c8_i32 = arith.constant 8 : i32
    %408 = vector.extract_strided_slice %394 {offsets = [0, 0], sizes = [2, 16], strides = [1, 1]} : vector<2x32xf32> to vector<2x16xf32>
    %c0_106 = arith.constant 0 : index
    %c0_107 = arith.constant 0 : index
    %c0_108 = arith.constant 0 : index
    %409 = vector.load %arg5[%c0_106, %c0_107, %c0_108] : memref<2x2x16xf32, #tpu.memory_space<vmem>>, vector<1x2x16xf32>
    %410 = vector.shape_cast %409 : vector<1x2x16xf32> to vector<2x16xf32>
    %411 = vector.shape_cast %408 : vector<2x16xf32> to vector<1x2x16xf32>
    tpu.vector_store %arg5[%c0_106, %c0_107, %c0_108], %411 {strides = array<i32>} : memref<2x2x16xf32, #tpu.memory_space<vmem>>, vector<1x2x16xf32>,
    %412 = vector.extract_strided_slice %394 {offsets = [0, 16], sizes = [2, 16], strides = [1, 1]} : vector<2x32xf32> to vector<2x16xf32>
    %c1 = arith.constant 1 : index
    %c0_109 = arith.constant 0 : index
    %c0_110 = arith.constant 0 : index
    %413 = vector.load %arg5[%c1, %c0_109, %c0_110] : memref<2x2x16xf32, #tpu.memory_space<vmem>>, vector<1x2x16xf32>
    %414 = vector.shape_cast %413 : vector<1x2x16xf32> to vector<2x16xf32>
    %415 = vector.shape_cast %412 : vector<2x16xf32> to vector<1x2x16xf32>
    tpu.vector_store %arg5[%c1, %c0_109, %c0_110], %415 {strides = array<i32>} : memref<2x2x16xf32, #tpu.memory_space<vmem>>, vector<1x2x16xf32>,
    %416 = vector.extract_strided_slice %393 {offsets = [0, 0], sizes = [2, 16], strides = [1, 1]} : vector<2x32xf32> to vector<2x16xf32>
    %c0_111 = arith.constant 0 : index
    %c0_112 = arith.constant 0 : index
    %c0_113 = arith.constant 0 : index
    %417 = vector.load %arg6[%c0_111, %c0_112, %c0_113] : memref<2x2x16xf32, #tpu.memory_space<vmem>>, vector<1x2x16xf32>
    %418 = vector.shape_cast %417 : vector<1x2x16xf32> to vector<2x16xf32>
    %419 = vector.shape_cast %416 : vector<2x16xf32> to vector<1x2x16xf32>
    tpu.vector_store %arg6[%c0_111, %c0_112, %c0_113], %419 {strides = array<i32>} : memref<2x2x16xf32, #tpu.memory_space<vmem>>, vector<1x2x16xf32>,
    %420 = vector.extract_strided_slice %393 {offsets = [0, 16], sizes = [2, 16], strides = [1, 1]} : vector<2x32xf32> to vector<2x16xf32>
    %c1_114 = arith.constant 1 : index
    %c0_115 = arith.constant 0 : index
    %c0_116 = arith.constant 0 : index
    %421 = vector.load %arg6[%c1_114, %c0_115, %c0_116] : memref<2x2x16xf32, #tpu.memory_space<vmem>>, vector<1x2x16xf32>
    %422 = vector.shape_cast %421 : vector<1x2x16xf32> to vector<2x16xf32>
    %423 = vector.shape_cast %420 : vector<2x16xf32> to vector<1x2x16xf32>
    tpu.vector_store %arg6[%c1_114, %c0_115, %c0_116], %423 {strides = array<i32>} : memref<2x2x16xf32, #tpu.memory_space<vmem>>, vector<1x2x16xf32>,
    return
  }
  func.func @transform_0(%arg0: i32) -> (i32, i32) {
    %c0_i32 = arith.constant 0 : i32
    %c0_i32_0 = arith.constant 0 : i32
    return %arg0, %c0_i32 : i32, i32
  }
  func.func @transform_1(%arg0: i32) -> (i32, i32, i32) {
    %c0_i32 = arith.constant 0 : i32
    %c0_i32_0 = arith.constant 0 : i32
    %c0_i32_1 = arith.constant 0 : i32
    return %c0_i32, %arg0, %c0_i32_0 : i32, i32, i32
  }
  func.func @transform_2(%arg0: i32) -> (i32, i32) {
    %c0_i32 = arith.constant 0 : i32
    %c0_i32_0 = arith.constant 0 : i32
    %c0_i32_1 = arith.constant 0 : i32
    return %c0_i32, %c0_i32_0 : i32, i32
  }
  func.func @transform_3(%arg0: i32) -> (i32, i32, i32) {
    %c0_i32 = arith.constant 0 : i32
    %c0_i32_0 = arith.constant 0 : i32
    %c0_i32_1 = arith.constant 0 : i32
    return %c0_i32, %arg0, %c0_i32_0 : i32, i32, i32
  }
  func.func @transform_4(%arg0: i32) -> (i32, i32, i32) {
    %c0_i32 = arith.constant 0 : i32
    %c0_i32_0 = arith.constant 0 : i32
    %c0_i32_1 = arith.constant 0 : i32
    return %c0_i32, %arg0, %c0_i32_0 : i32, i32, i32
  }
  func.func @transform_5(%arg0: i32) -> (i32, i32, i32) {
    %c0_i32 = arith.constant 0 : i32
    %c0_i32_0 = arith.constant 0 : i32
    %c0_i32_1 = arith.constant 0 : i32
    return %c0_i32, %arg0, %c0_i32_0 : i32, i32, i32
  }
}

</mosaic_0001>

<llo_original>
// kernel: word_sequence_forward.1
$region0: #{word_sequence_forward.1}
  #allocation0 [shape = 'u32[]', space=smem, size = 0x4, offset = 0x4, fixed_abs, tag = 'smem constant byte address 0x4 - core index']
  #allocation1 [shape = 'u32[144,128]{1,0:T(1,128)}', space=vmem, size = 0x12000, scoped, tag = 'internal scratch']
  %s0 = inlined_call_operand.vmem [shape: s32[2,1], index: 0, kind: input, shape index: {}]
  %s1 = inlined_call_operand.vmem [shape: f32[8,2,128], index: 1, kind: input, shape index: {}]
  %s2 = inlined_call_operand.vmem [shape: f32[32,128], index: 2, kind: input, shape index: {}]
  %s3 = inlined_call_operand.vmem [shape: f32[8,2,32], index: 3, kind: output, shape index: {0}]
  %s4 = inlined_call_operand.hbm [shape: f32[2,2,16], index: 4, kind: output, shape index: {1}]
  %s5 = inlined_call_operand.hbm [shape: f32[2,2,16], index: 5, kind: output, shape index: {2}]
  %6 = xla_tuple %s3, %s4, %s5
  %s7 = sld [smem:[#allocation0]]
  $region38: #{word_sequence_forward.1} parent=0
    _
  %s9 = ssub.s32 1, %s7
  %s10 = scalar_select 0, %s9, %s7
  $region1: #{word_sequence_forward.1} parent=0
    #allocation2 [shape = 'u8[2048]{0}', space=vmem, size = 0x800, scoped, tag = 'output window, operand 1, single buffered']
    #allocation3 [shape = 's32[1]{0}', space=sflag, size = 0x4, scoped, tag = 'scoped memory for word_sequence_forward.1']
    #allocation4 [shape = 'u8[2048]{0}', space=vmem, size = 0x800, scoped, tag = 'output window, operand 2, single buffered']
    #allocation5 [shape = 's32[1]{0}', space=sflag, size = 0x4, scoped, tag = 'scoped memory for word_sequence_forward.1']
    %11 = vsyncpa [#allocation3], 0
    %12 = vsyncpa [#allocation5], 0
    // Predicated region
    $region2: #{word_sequence_forward.1} parent=1 // pred_check
      _
    $region3: #{word_sequence_forward.1} parent=1 // pred_check_branch
      %14 = sbr.rel (0) target = $region5
    $region4: #{word_sequence_forward.1} parent=1 // pred_region
      _
    $region5: #{word_sequence_forward.1} parent=1 // pred_fallthru
      _
    // Predicated region
    $region6: #{word_sequence_forward.1} parent=1 // pred_check
      _
    $region7: #{word_sequence_forward.1} parent=1 // pred_check_branch
      %16 = sbr.rel (0) target = $region9
    $region8: #{word_sequence_forward.1} parent=1 // pred_region
      _
    $region9: #{word_sequence_forward.1} parent=1 // pred_fallthru
      _
    // Predicated region
    $region10: #{word_sequence_forward.1} parent=1 // pred_check
      _
    $region11: #{word_sequence_forward.1} parent=1 // pred_check_branch
      %18 = sbr.rel (0) target = $region13
    $region12: #{word_sequence_forward.1} parent=1 // pred_region
      _
    $region13: #{word_sequence_forward.1} parent=1 // pred_fallthru
      _
    %v19 = vld [vmem:[%s2] sm:$0xff]
    %v20 = vld [vmem:[%s2 + $0x8] sm:$0xff]
    %v21 = vld [vmem:[%s2 + $0x10] sm:$0xff]
    %v22 = vld [vmem:[%s2 + $0x18] sm:$0xff]
    %v23 = vld [vmem:[%s0] sm:$0x3]
    %24 = vset.pattern.permute.xlu0 0
    %25 = vperm.xlu0 %24, %v23
    %v26 = vpop.permute.xlu0 %25
    %v27 = vlaneseq
    %v28 = vand.u32 %v27, 127
    %vm29 = vcmp.lt.s32.totalorder %v28, 16
    %v30 = vld [vmem:[%s1] sm:$0x3]
    %vm31 = vcmask 261120
    %v33 = vsel %vm31, 0.0, 0
    %35 = vmatprep.subr.mxu0 0.0
    %36 = vmatpush1.msra.mxu0 0.0
    %37 = vmatprep.subr.mxu0 0.0
    %38 = vmatpush1.msra.mxu0 0.0
    %39 = vmatprep.subr.mxu0 0.0
    %40 = vmatpush1.msra.mxu0 0.0
    %41 = vmatprep.subr.mxu0 0.0
    %42 = vmatpush1.msra.mxu0 0.0
    %43 = vmatprep.subr.mxu0 0.0
    %44 = vmatpush1.msra.mxu0 0.0
    %45 = vmatprep.subr.mxu0 0.0
    %46 = vmatpush1.msra.mxu0 0.0
    %47 = vmatprep.subr.mxu0 0.0
    %48 = vmatpush1.msra.mxu0 0.0
    %49 = vmatprep.subr.mxu0 0.0
    %50 = vmatpush1.msra.mxu0 0.0
    %51 = vmatprep.subr.mxu0 0.0
    %52 = vmatpush1.msra.mxu0 0.0
    %53 = vmatprep.subr.mxu0 0.0
    %54 = vmatpush1.msra.mxu0 0.0
    %55 = vmatprep.subr.mxu0 0.0
    %56 = vmatpush1.msra.mxu0 0.0
    %57 = vmatprep.subr.mxu0 0.0
    %58 = vmatpush1.msra.mxu0 0.0
    %59 = vmatprep.subr.mxu0 0.0
    %v60 = vand.u32 %v22, 4294901760
    %61 = vmatpush1.msra.mxu0 %v60
    %62 = vmatprep.subr.mxu0 0.0
    %v63 = vand.u32 %v21, 4294901760
    %64 = vmatpush1.msra.mxu0 %v63
    %65 = vmatprep.subr.mxu0 0.0
    %v66 = vand.u32 %v20, 4294901760
    %67 = vmatpush1.msra.mxu0 %v66
    %68 = vmatprep.subr.mxu0 0.0
    %v69 = vand.u32 %v19, 4294901760
    %70 = vmatpush1.msra.mxu0 %v69
    %71 = vmatprep.subr.mxu0 0.0
    %72 = vmatpush2.msra.mxu0 0.0
    %73 = vmatprep.subr.mxu0 0.0
    %74 = vmatpush2.msra.mxu0 0.0
    %75 = vmatprep.subr.mxu0 0.0
    %76 = vmatpush2.msra.mxu0 0.0
    %77 = vmatprep.subr.mxu0 0.0
    %78 = vmatpush2.msra.mxu0 0.0
    %79 = vmatprep.subr.mxu0 0.0
    %80 = vmatpush2.msra.mxu0 0.0
    %81 = vmatprep.subr.mxu0 0.0
    %82 = vmatpush2.msra.mxu0 0.0
    %83 = vmatprep.subr.mxu0 0.0
    %84 = vmatpush2.msra.mxu0 0.0
    %85 = vmatprep.subr.mxu0 0.0
    %86 = vmatpush2.msra.mxu0 0.0
    %87 = vmatprep.subr.mxu0 0.0
    %88 = vmatpush2.msra.mxu0 0.0
    %89 = vmatprep.subr.mxu0 0.0
    %90 = vmatpush2.msra.mxu0 0.0
    %91 = vmatprep.subr.mxu0 0.0
    %92 = vmatpush2.msra.mxu0 0.0
    %93 = vmatprep.subr.mxu0 0.0
    %94 = vmatpush2.msra.mxu0 0.0
    %95 = vmatprep.subr.mxu0 0.0
    %96 = vmatpush2.msra.mxu0 0.0
    %97 = vmatprep.subr.mxu0 0.0
    %98 = vmatpush2.msra.mxu0 0.0
    %99 = vmatprep.subr.mxu0 0.0
    %100 = vmatpush2.msra.mxu0 0.0
    %101 = vmatprep.subr.mxu0 0.0
    %102 = vmatpush2.msra.mxu0 0.0
    %103 = vmatprep.mubr.f32.mxu0 0.0
    %v104 = vand.u32 %v33, 4294901760
    %v105 = vsub.f32 %v33, %v104
    %v106 = vand.u32 %v105, 4294901760
    %v107 = vsub.f32 %v105, %v106
    %v108 = vand.u32 %v107, 4294901760
    %109 = vmatmul.mubr.f32.gmra.mxu0 %v108
    %v110 = vpop.f32.mrf.mxu0
    %v111 = vadd.f32 0.0, %v110
    %v112 = vpop.f32.mrf.mxu0
    %113 = vdwg.mxu0
    %114 = vmatprep.subr.mxu0 0.0
    %115 = vmatpush1.msra.mxu0 0.0
    %116 = vmatprep.subr.mxu0 0.0
    %117 = vmatpush1.msra.mxu0 0.0
    %118 = vmatprep.subr.mxu0 0.0
    %119 = vmatpush1.msra.mxu0 0.0
    %120 = vmatprep.subr.mxu0 0.0
    %121 = vmatpush1.msra.mxu0 0.0
    %122 = vmatprep.subr.mxu0 0.0
    %123 = vmatpush1.msra.mxu0 0.0
    %124 = vmatprep.subr.mxu0 0.0
    %125 = vmatpush1.msra.mxu0 0.0
    %126 = vmatprep.subr.mxu0 0.0
    %127 = vmatpush1.msra.mxu0 0.0
    %128 = vmatprep.subr.mxu0 0.0
    %129 = vmatpush1.msra.mxu0 0.0
    %130 = vmatprep.subr.mxu0 0.0
    %131 = vmatpush1.msra.mxu0 0.0
    %132 = vmatprep.subr.mxu0 0.0
    %133 = vmatpush1.msra.mxu0 0.0
    %134 = vmatprep.subr.mxu0 0.0
    %135 = vmatpush1.msra.mxu0 0.0
    %136 = vmatprep.subr.mxu0 0.0
    %137 = vmatpush1.msra.mxu0 0.0
    %138 = vmatprep.subr.mxu0 0.0
    %v139 = vand.u32 %v22, 4294901760
    %v140 = vsub.f32 %v22, %v139
    %v141 = vand.u32 %v140, 4294901760
    %v142 = vsub.f32 %v140, %v141
    %v143 = vand.u32 %v142, 4294901760
    %144 = vmatpush1.msra.mxu0 %v143
    %145 = vmatprep.subr.mxu0 0.0
    %v146 = vand.u32 %v21, 4294901760
    %v147 = vsub.f32 %v21, %v146
    %v148 = vand.u32 %v147, 4294901760
    %v149 = vsub.f32 %v147, %v148
    %v150 = vand.u32 %v149, 4294901760
    %151 = vmatpush1.msra.mxu0 %v150
    %152 = vmatprep.subr.mxu0 0.0
    %v153 = vand.u32 %v20, 4294901760
    %v154 = vsub.f32 %v20, %v153
    %v155 = vand.u32 %v154, 4294901760
    %v156 = vsub.f32 %v154, %v155
    %v157 = vand.u32 %v156, 4294901760
    %158 = vmatpush1.msra.mxu0 %v157
    %159 = vmatprep.subr.mxu0 0.0
    %v160 = vand.u32 %v19, 4294901760
    %v161 = vsub.f32 %v19, %v160
    %v162 = vand.u32 %v161, 4294901760
    %v163 = vsub.f32 %v161, %v162
    %v164 = vand.u32 %v163, 4294901760
    %165 = vmatpush1.msra.mxu0 %v164
    %166 = vmatprep.subr.mxu0 0.0
    %167 = vmatpush2.msra.mxu0 0.0
    %168 = vmatprep.subr.mxu0 0.0
    %169 = vmatpush2.msra.mxu0 0.0
    %170 = vmatprep.subr.mxu0 0.0
    %171 = vmatpush2.msra.mxu0 0.0
    %172 = vmatprep.subr.mxu0 0.0
    %173 = vmatpush2.msra.mxu0 0.0
    %174 = vmatprep.subr.mxu0 0.0
    %175 = vmatpush2.msra.mxu0 0.0
    %176 = vmatprep.subr.mxu0 0.0
    %177 = vmatpush2.msra.mxu0 0.0
    %178 = vmatprep.subr.mxu0 0.0
    %179 = vmatpush2.msra.mxu0 0.0
    %180 = vmatprep.subr.mxu0 0.0
    %181 = vmatpush2.msra.mxu0 0.0
    %182 = vmatprep.subr.mxu0 0.0
    %183 = vmatpush2.msra.mxu0 0.0
    %184 = vmatprep.subr.mxu0 0.0
    %185 = vmatpush2.msra.mxu0 0.0
    %186 = vmatprep.subr.mxu0 0.0
    %187 = vmatpush2.msra.mxu0 0.0
    %188 = vmatprep.subr.mxu0 0.0
    %189 = vmatpush2.msra.mxu0 0.0
    %190 = vmatprep.subr.mxu0 0.0
    %191 = vmatpush2.msra.mxu0 0.0
    %192 = vmatprep.subr.mxu0 0.0
    %193 = vmatpush2.msra.mxu0 0.0
    %194 = vmatprep.subr.mxu0 0.0
    %195 = vmatpush2.msra.mxu0 0.0
    %196 = vmatprep.subr.mxu0 0.0
    %197 = vmatpush2.msra.mxu0 0.0
    %198 = vmatprep.mubr.f32.mxu0 0.0
    %v199 = vand.u32 %v33, 4294901760
    %200 = vmatmul.mubr.f32.gmra.mxu0 %v199
    %v201 = vpop.f32.mrf.mxu0
    %v202 = vadd.f32 %v111, %v201
    %v203 = vpop.f32.mrf.mxu0
    %204 = vdwg.mxu0
    %205 = vmatprep.subr.mxu0 0.0
    %206 = vmatpush1.msra.mxu0 0.0
    %207 = vmatprep.subr.mxu0 0.0
    %208 = vmatpush1.msra.mxu0 0.0
    %209 = vmatprep.subr.mxu0 0.0
    %210 = vmatpush1.msra.mxu0 0.0
    %211 = vmatprep.subr.mxu0 0.0
    %212 = vmatpush1.msra.mxu0 0.0
    %213 = vmatprep.subr.mxu0 0.0
    %214 = vmatpush1.msra.mxu0 0.0
    %215 = vmatprep.subr.mxu0 0.0
    %216 = vmatpush1.msra.mxu0 0.0
    %217 = vmatprep.subr.mxu0 0.0
    %218 = vmatpush1.msra.mxu0 0.0
    %219 = vmatprep.subr.mxu0 0.0
    %220 = vmatpush1.msra.mxu0 0.0
    %221 = vmatprep.subr.mxu0 0.0
    %222 = vmatpush1.msra.mxu0 0.0
    %223 = vmatprep.subr.mxu0 0.0
    %224 = vmatpush1.msra.mxu0 0.0
    %225 = vmatprep.subr.mxu0 0.0
    %226 = vmatpush1.msra.mxu0 0.0
    %227 = vmatprep.subr.mxu0 0.0
    %228 = vmatpush1.msra.mxu0 0.0
    %229 = vmatprep.subr.mxu0 0.0
    %v230 = vand.u32 %v22, 4294901760
    %v231 = vsub.f32 %v22, %v230
    %232 = vmatpush1.msra.mxu0 %v231
    %233 = vmatprep.subr.mxu0 0.0
    %v234 = vand.u32 %v21, 4294901760
    %v235 = vsub.f32 %v21, %v234
    %236 = vmatpush1.msra.mxu0 %v235
    %237 = vmatprep.subr.mxu0 0.0
    %v238 = vand.u32 %v20, 4294901760
    %v239 = vsub.f32 %v20, %v238
    %240 = vmatpush1.msra.mxu0 %v239
    %241 = vmatprep.subr.mxu0 0.0
    %v242 = vand.u32 %v19, 4294901760
    %v243 = vsub.f32 %v19, %v242
    %244 = vmatpush1.msra.mxu0 %v243
    %245 = vmatprep.subr.mxu0 0.0
    %246 = vmatpush2.msra.mxu0 0.0
    %247 = vmatprep.subr.mxu0 0.0
    %248 = vmatpush2.msra.mxu0 0.0
    %249 = vmatprep.subr.mxu0 0.0
    %250 = vmatpush2.msra.mxu0 0.0
    %251 = vmatprep.subr.mxu0 0.0
    %252 = vmatpush2.msra.mxu0 0.0
    %253 = vmatprep.subr.mxu0 0.0
    %254 = vmatpush2.msra.mxu0 0.0
    %255 = vmatprep.subr.mxu0 0.0
    %256 = vmatpush2.msra.mxu0 0.0
    %257 = vmatprep.subr.mxu0 0.0
    %258 = vmatpush2.msra.mxu0 0.0
    %259 = vmatprep.subr.mxu0 0.0
    %260 = vmatpush2.msra.mxu0 0.0
    %261 = vmatprep.subr.mxu0 0.0
    %262 = vmatpush2.msra.mxu0 0.0
    %263 = vmatprep.subr.mxu0 0.0
    %264 = vmatpush2.msra.mxu0 0.0
    %265 = vmatprep.subr.mxu0 0.0
    %266 = vmatpush2.msra.mxu0 0.0
    %267 = vmatprep.subr.mxu0 0.0
    %268 = vmatpush2.msra.mxu0 0.0
    %269 = vmatprep.subr.mxu0 0.0
    %270 = vmatpush2.msra.mxu0 0.0
    %271 = vmatprep.subr.mxu0 0.0
    %272 = vmatpush2.msra.mxu0 0.0
    %273 = vmatprep.subr.mxu0 0.0
    %274 = vmatpush2.msra.mxu0 0.0
    %275 = vmatprep.subr.mxu0 0.0
    %276 = vmatpush2.msra.mxu0 0.0
    %277 = vmatprep.mubr.f32.mxu0 0.0
    %v278 = vand.u32 %v33, 4294901760
    %v279 = vsub.f32 %v33, %v278
    %280 = vmatmul.mubr.f32.gmra.mxu0 %v279
    %v281 = vpop.f32.mrf.mxu0
    %v282 = vadd.f32 %v202, %v281
    %v283 = vpop.f32.mrf.mxu0
    %284 = vdwg.mxu0
    %285 = vmatprep.subr.mxu0 0.0
    %286 = vmatpush1.msra.mxu0 0.0
    %287 = vmatprep.subr.mxu0 0.0
    %288 = vmatpush1.msra.mxu0 0.0
    %289 = vmatprep.subr.mxu0 0.0
    %290 = vmatpush1.msra.mxu0 0.0
    %291 = vmatprep.subr.mxu0 0.0
    %292 = vmatpush1.msra.mxu0 0.0
    %293 = vmatprep.subr.mxu0 0.0
    %294 = vmatpush1.msra.mxu0 0.0
    %295 = vmatprep.subr.mxu0 0.0
    %296 = vmatpush1.msra.mxu0 0.0
    %297 = vmatprep.subr.mxu0 0.0
    %298 = vmatpush1.msra.mxu0 0.0
    %299 = vmatprep.subr.mxu0 0.0
    %300 = vmatpush1.msra.mxu0 0.0
    %301 = vmatprep.subr.mxu0 0.0
    %302 = vmatpush1.msra.mxu0 0.0
    %303 = vmatprep.subr.mxu0 0.0
    %304 = vmatpush1.msra.mxu0 0.0
    %305 = vmatprep.subr.mxu0 0.0
    %306 = vmatpush1.msra.mxu0 0.0
    %307 = vmatprep.subr.mxu0 0.0
    %308 = vmatpush1.msra.mxu0 0.0
    %309 = vmatprep.subr.mxu0 0.0
    %v310 = vand.u32 %v22, 4294901760
    %311 = vmatpush1.msra.mxu0 %v310
    %312 = vmatprep.subr.mxu0 0.0
    %v313 = vand.u32 %v21, 4294901760
    %314 = vmatpush1.msra.mxu0 %v313
    %315 = vmatprep.subr.mxu0 0.0
    %v316 = vand.u32 %v20, 4294901760
    %317 = vmatpush1.msra.mxu0 %v316
    %318 = vmatprep.subr.mxu0 0.0
    %v319 = vand.u32 %v19, 4294901760
    %320 = vmatpush1.msra.mxu0 %v319
    %321 = vmatprep.subr.mxu0 0.0
    %322 = vmatpush2.msra.mxu0 0.0
    %323 = vmatprep.subr.mxu0 0.0
    %324 = vmatpush2.msra.mxu0 0.0
    %325 = vmatprep.subr.mxu0 0.0
    %326 = vmatpush2.msra.mxu0 0.0
    %327 = vmatprep.subr.mxu0 0.0
    %328 = vmatpush2.msra.mxu0 0.0
    %329 = vmatprep.subr.mxu0 0.0
    %330 = vmatpush2.msra.mxu0 0.0
    %331 = vmatprep.subr.mxu0 0.0
    %332 = vmatpush2.msra.mxu0 0.0
    %333 = vmatprep.subr.mxu0 0.0
    %334 = vmatpush2.msra.mxu0 0.0
    %335 = vmatprep.subr.mxu0 0.0
    %336 = vmatpush2.msra.mxu0 0.0
    %337 = vmatprep.subr.mxu0 0.0
    %338 = vmatpush2.msra.mxu0 0.0
    %339 = vmatprep.subr.mxu0 0.0
    %340 = vmatpush2.msra.mxu0 0.0
    %341 = vmatprep.subr.mxu0 0.0
    %342 = vmatpush2.msra.mxu0 0.0
    %343 = vmatprep.subr.mxu0 0.0
    %344 = vmatpush2.msra.mxu0 0.0
    %345 = vmatprep.subr.mxu0 0.0
    %346 = vmatpush2.msra.mxu0 0.0
    %347 = vmatprep.subr.mxu0 0.0
    %348 = vmatpush2.msra.mxu0 0.0
    %349 = vmatprep.subr.mxu0 0.0
    %350 = vmatpush2.msra.mxu0 0.0
    %351 = vmatprep.subr.mxu0 0.0
    %352 = vmatpush2.msra.mxu0 0.0
    %353 = vmatprep.mubr.f32.mxu0 0.0
    %v354 = vand.u32 %v33, 4294901760
    %v355 = vsub.f32 %v33, %v354
    %v356 = vand.u32 %v355, 4294901760
    %357 = vmatmul.mubr.f32.gmra.mxu0 %v356
    %v358 = vpop.f32.mrf.mxu0
    %v359 = vadd.f32 %v282, %v358
    %v360 = vpop.f32.mrf.mxu0
    %361 = vdwg.mxu0
    %362 = vmatprep.subr.mxu0 0.0
    %363 = vmatpush1.msra.mxu0 0.0
    %364 = vmatprep.subr.mxu0 0.0
    %365 = vmatpush1.msra.mxu0 0.0
    %366 = vmatprep.subr.mxu0 0.0
    %367 = vmatpush1.msra.mxu0 0.0
    %368 = vmatprep.subr.mxu0 0.0
    %369 = vmatpush1.msra.mxu0 0.0
    %370 = vmatprep.subr.mxu0 0.0
    %371 = vmatpush1.msra.mxu0 0.0
    %372 = vmatprep.subr.mxu0 0.0
    %373 = vmatpush1.msra.mxu0 0.0
    %374 = vmatprep.subr.mxu0 0.0
    %375 = vmatpush1.msra.mxu0 0.0
    %376 = vmatprep.subr.mxu0 0.0
    %377 = vmatpush1.msra.mxu0 0.0
    %378 = vmatprep.subr.mxu0 0.0
    %379 = vmatpush1.msra.mxu0 0.0
    %380 = vmatprep.subr.mxu0 0.0
    %381 = vmatpush1.msra.mxu0 0.0
    %382 = vmatprep.subr.mxu0 0.0
    %383 = vmatpush1.msra.mxu0 0.0
    %384 = vmatprep.subr.mxu0 0.0
    %385 = vmatpush1.msra.mxu0 0.0
    %386 = vmatprep.subr.mxu0 0.0
    %v387 = vand.u32 %v22, 4294901760
    %v388 = vsub.f32 %v22, %v387
    %v389 = vand.u32 %v388, 4294901760
    %390 = vmatpush1.msra.mxu0 %v389
    %391 = vmatprep.subr.mxu0 0.0
    %v392 = vand.u32 %v21, 4294901760
    %v393 = vsub.f32 %v21, %v392
    %v394 = vand.u32 %v393, 4294901760
    %395 = vmatpush1.msra.mxu0 %v394
    %396 = vmatprep.subr.mxu0 0.0
    %v397 = vand.u32 %v20, 4294901760
    %v398 = vsub.f32 %v20, %v397
    %v399 = vand.u32 %v398, 4294901760
    %400 = vmatpush1.msra.mxu0 %v399
    %401 = vmatprep.subr.mxu0 0.0
    %v402 = vand.u32 %v19, 4294901760
    %v403 = vsub.f32 %v19, %v402
    %v404 = vand.u32 %v403, 4294901760
    %405 = vmatpush1.msra.mxu0 %v404
    %406 = vmatprep.subr.mxu0 0.0
    %407 = vmatpush2.msra.mxu0 0.0
    %408 = vmatprep.subr.mxu0 0.0
    %409 = vmatpush2.msra.mxu0 0.0
    %410 = vmatprep.subr.mxu0 0.0
    %411 = vmatpush2.msra.mxu0 0.0
    %412 = vmatprep.subr.mxu0 0.0
    %413 = vmatpush2.msra.mxu0 0.0
    %414 = vmatprep.subr.mxu0 0.0
    %415 = vmatpush2.msra.mxu0 0.0
    %416 = vmatprep.subr.mxu0 0.0
    %417 = vmatpush2.msra.mxu0 0.0
    %418 = vmatprep.subr.mxu0 0.0
    %419 = vmatpush2.msra.mxu0 0.0
    %420 = vmatprep.subr.mxu0 0.0
    %421 = vmatpush2.msra.mxu0 0.0
    %422 = vmatprep.subr.mxu0 0.0
    %423 = vmatpush2.msra.mxu0 0.0
    %424 = vmatprep.subr.mxu0 0.0
    %425 = vmatpush2.msra.mxu0 0.0
    %426 = vmatprep.subr.mxu0 0.0
    %427 = vmatpush2.msra.mxu0 0.0
    %428 = vmatprep.subr.mxu0 0.0
    %429 = vmatpush2.msra.mxu0 0.0
    %430 = vmatprep.subr.mxu0 0.0
    %431 = vmatpush2.msra.mxu0 0.0
    %432 = vmatprep.subr.mxu0 0.0
    %433 = vmatpush2.msra.mxu0 0.0
    %434 = vmatprep.subr.mxu0 0.0
    %435 = vmatpush2.msra.mxu0 0.0
    %436 = vmatprep.subr.mxu0 0.0
    %437 = vmatpush2.msra.mxu0 0.0
    %438 = vmatprep.mubr.f32.mxu0 0.0
    %v439 = vand.u32 %v33, 4294901760
    %440 = vmatmul.mubr.f32.gmra.mxu0 %v439
    %v441 = vpop.f32.mrf.mxu0
    %v442 = vadd.f32 %v359, %v441
    %v443 = vpop.f32.mrf.mxu0
    %444 = vdwg.mxu0
    %445 = vmatprep.subr.mxu0 0.0
    %446 = vmatpush1.msra.mxu0 0.0
    %447 = vmatprep.subr.mxu0 0.0
    %448 = vmatpush1.msra.mxu0 0.0
    %449 = vmatprep.subr.mxu0 0.0
    %450 = vmatpush1.msra.mxu0 0.0
    %451 = vmatprep.subr.mxu0 0.0
    %452 = vmatpush1.msra.mxu0 0.0
    %453 = vmatprep.subr.mxu0 0.0
    %454 = vmatpush1.msra.mxu0 0.0
    %455 = vmatprep.subr.mxu0 0.0
    %456 = vmatpush1.msra.mxu0 0.0
    %457 = vmatprep.subr.mxu0 0.0
    %458 = vmatpush1.msra.mxu0 0.0
    %459 = vmatprep.subr.mxu0 0.0
    %460 = vmatpush1.msra.mxu0 0.0
    %461 = vmatprep.subr.mxu0 0.0
    %462 = vmatpush1.msra.mxu0 0.0
    %463 = vmatprep.subr.mxu0 0.0
    %464 = vmatpush1.msra.mxu0 0.0
    %465 = vmatprep.subr.mxu0 0.0
    %466 = vmatpush1.msra.mxu0 0.0
    %467 = vmatprep.subr.mxu0 0.0
    %468 = vmatpush1.msra.mxu0 0.0
    %469 = vmatprep.subr.mxu0 0.0
    %v470 = vand.u32 %v22, 4294901760
    %471 = vmatpush1.msra.mxu0 %v470
    %472 = vmatprep.subr.mxu0 0.0
    %v473 = vand.u32 %v21, 4294901760
    %474 = vmatpush1.msra.mxu0 %v473
    %475 = vmatprep.subr.mxu0 0.0
    %v476 = vand.u32 %v20, 4294901760
    %477 = vmatpush1.msra.mxu0 %v476
    %478 = vmatprep.subr.mxu0 0.0
    %v479 = vand.u32 %v19, 4294901760
    %480 = vmatpush1.msra.mxu0 %v479
    %481 = vmatprep.subr.mxu0 0.0
    %482 = vmatpush2.msra.mxu0 0.0
    %483 = vmatprep.subr.mxu0 0.0
    %484 = vmatpush2.msra.mxu0 0.0
    %485 = vmatprep.subr.mxu0 0.0
    %486 = vmatpush2.msra.mxu0 0.0
    %487 = vmatprep.subr.mxu0 0.0
    %488 = vmatpush2.msra.mxu0 0.0
    %489 = vmatprep.subr.mxu0 0.0
    %490 = vmatpush2.msra.mxu0 0.0
    %491 = vmatprep.subr.mxu0 0.0
    %492 = vmatpush2.msra.mxu0 0.0
    %493 = vmatprep.subr.mxu0 0.0
    %494 = vmatpush2.msra.mxu0 0.0
    %495 = vmatprep.subr.mxu0 0.0
    %496 = vmatpush2.msra.mxu0 0.0
    %497 = vmatprep.subr.mxu0 0.0
    %498 = vmatpush2.msra.mxu0 0.0
    %499 = vmatprep.subr.mxu0 0.0
    %500 = vmatpush2.msra.mxu0 0.0
    %501 = vmatprep.subr.mxu0 0.0
    %502 = vmatpush2.msra.mxu0 0.0
    %503 = vmatprep.subr.mxu0 0.0
    %504 = vmatpush2.msra.mxu0 0.0
    %505 = vmatprep.subr.mxu0 0.0
    %506 = vmatpush2.msra.mxu0 0.0
    %507 = vmatprep.subr.mxu0 0.0
    %508 = vmatpush2.msra.mxu0 0.0
    %509 = vmatprep.subr.mxu0 0.0
    %510 = vmatpush2.msra.mxu0 0.0
    %511 = vmatprep.subr.mxu0 0.0
    %512 = vmatpush2.msra.mxu0 0.0
    %513 = vmatprep.mubr.f32.mxu0 0.0
    %v514 = vand.u32 %v33, 4294901760
    %515 = vmatmul.mubr.f32.gmra.mxu0 %v514
    %v516 = vpop.f32.mrf.mxu0
    %v517 = vadd.f32 %v442, %v516
    %v518 = vpop.f32.mrf.mxu0
    %519 = vdwg.mxu0
    %v520 = vadd.f32 %v30, %v517
    %v521 = vxor.u32 %v520, 2147483648
    %v522 = vmul.f32 %v521, 1.442695
    %v523 = vpow.pop %v522
    %v524 = vadd.f32 %v523, 1.0
    %v525 = vrcp.pop %v524
    %v526 = vmul.f32 1.0, %v525
    %v527 = vtanh.pop %v520
    %v528 = vmul.f32 %v526, 0.0
    %530 = vrot.lane.b32.xlu0 %v527, 64
    %v531 = vpop.permute.xlu0 %530
    %v533 = vmul.f32 %v526, %v531
    %535 = vrot.lane.b32.xlu0 %v533, 32
    %v536 = vpop.permute.xlu0 %535
    %v538 = vadd.f32 %v528, %v536
    %v539 = vtanh.pop %v538
    %541 = vrot.lane.b32.xlu0 %v539, 64
    %v542 = vpop.permute.xlu0 %541
    %v544 = vmul.f32 %v526, %v542
    %v545 = vsel %vm29, 0, 7
    %vm546 = vcmp.lt.s32.totalorder %v545, %v26
    %548 = vrot.lane.b32.xlu0 %v538, 96
    %v549 = vpop.permute.xlu0 %548
    %v551 = vsel %vm546, %v549, 0.0
    %553 = vrot.lane.b32.xlu0 %v544, 32
    %v554 = vpop.permute.xlu0 %553
    %v556 = vsel %vm546, %v554, 0.0
    %vm557 = vcmask 123904
    %558 = vst.msk [vmem:[%s3] sm:$0x3] %vm557, %v556
    %s559 = scalar_lea.vmem %s3, 14
    %vm560 = vcmask 255104
    %561 = vst.msk [vmem:[%s559] sm:$0x3] %vm560, %v556
    %s562 = scalar_lea.vmem %s1, 2
    %v563 = vld [vmem:[%s562] sm:$0x3]
    %v565 = vsel %vm31, %v556, 0
    %567 = vmatprep.subr.mxu0 0.0
    %568 = vmatpush1.msra.mxu0 0.0
    %569 = vmatprep.subr.mxu0 0.0
    %570 = vmatpush1.msra.mxu0 0.0
    %571 = vmatprep.subr.mxu0 0.0
    %572 = vmatpush1.msra.mxu0 0.0
    %573 = vmatprep.subr.mxu0 0.0
    %574 = vmatpush1.msra.mxu0 0.0
    %575 = vmatprep.subr.mxu0 0.0
    %576 = vmatpush1.msra.mxu0 0.0
    %577 = vmatprep.subr.mxu0 0.0
    %578 = vmatpush1.msra.mxu0 0.0
    %579 = vmatprep.subr.mxu0 0.0
    %580 = vmatpush1.msra.mxu0 0.0
    %581 = vmatprep.subr.mxu0 0.0
    %582 = vmatpush1.msra.mxu0 0.0
    %583 = vmatprep.subr.mxu0 0.0
    %584 = vmatpush1.msra.mxu0 0.0
    %585 = vmatprep.subr.mxu0 0.0
    %586 = vmatpush1.msra.mxu0 0.0
    %587 = vmatprep.subr.mxu0 0.0
    %588 = vmatpush1.msra.mxu0 0.0
    %589 = vmatprep.subr.mxu0 0.0
    %590 = vmatpush1.msra.mxu0 0.0
    %591 = vmatprep.subr.mxu0 0.0
    %v592 = vand.u32 %v22, 4294901760
    %593 = vmatpush1.msra.mxu0 %v592
    %594 = vmatprep.subr.mxu0 0.0
    %v595 = vand.u32 %v21, 4294901760
    %596 = vmatpush1.msra.mxu0 %v595
    %597 = vmatprep.subr.mxu0 0.0
    %v598 = vand.u32 %v20, 4294901760
    %599 = vmatpush1.msra.mxu0 %v598
    %600 = vmatprep.subr.mxu0 0.0
    %v601 = vand.u32 %v19, 4294901760
    %602 = vmatpush1.msra.mxu0 %v601
    %603 = vmatprep.subr.mxu0 0.0
    %604 = vmatpush2.msra.mxu0 0.0
    %605 = vmatprep.subr.mxu0 0.0
    %606 = vmatpush2.msra.mxu0 0.0
    %607 = vmatprep.subr.mxu0 0.0
    %608 = vmatpush2.msra.mxu0 0.0
    %609 = vmatprep.subr.mxu0 0.0
    %610 = vmatpush2.msra.mxu0 0.0
    %611 = vmatprep.subr.mxu0 0.0
    %612 = vmatpush2.msra.mxu0 0.0
    %613 = vmatprep.subr.mxu0 0.0
    %614 = vmatpush2.msra.mxu0 0.0
    %615 = vmatprep.subr.mxu0 0.0
    %616 = vmatpush2.msra.mxu0 0.0
    %617 = vmatprep.subr.mxu0 0.0
    %618 = vmatpush2.msra.mxu0 0.0
    %619 = vmatprep.subr.mxu0 0.0
    %620 = vmatpush2.msra.mxu0 0.0
    %621 = vmatprep.subr.mxu0 0.0
    %622 = vmatpush2.msra.mxu0 0.0
    %623 = vmatprep.subr.mxu0 0.0
    %624 = vmatpush2.msra.mxu0 0.0
    %625 = vmatprep.subr.mxu0 0.0
    %626 = vmatpush2.msra.mxu0 0.0
    %627 = vmatprep.subr.mxu0 0.0
    %628 = vmatpush2.msra.mxu0 0.0
    %629 = vmatprep.subr.mxu0 0.0
    %630 = vmatpush2.msra.mxu0 0.0
    %631 = vmatprep.subr.mxu0 0.0
    %632 = vmatpush2.msra.mxu0 0.0
    %633 = vmatprep.subr.mxu0 0.0
    %634 = vmatpush2.msra.mxu0 0.0
    %635 = vmatprep.mubr.f32.mxu0 0.0
    %v636 = vand.u32 %v565, 4294901760
    %v637 = vsub.f32 %v565, %v636
    %v638 = vand.u32 %v637, 4294901760
    %v639 = vsub.f32 %v637, %v638
    %v640 = vand.u32 %v639, 4294901760
    %641 = vmatmul.mubr.f32.gmra.mxu0 %v640
    %v642 = vpop.f32.mrf.mxu0
    %v643 = vadd.f32 0.0, %v642
    %v644 = vpop.f32.mrf.mxu0
    %645 = vdwg.mxu0
    %646 = vmatprep.subr.mxu0 0.0
    %647 = vmatpush1.msra.mxu0 0.0
    %648 = vmatprep.subr.mxu0 0.0
    %649 = vmatpush1.msra.mxu0 0.0
    %650 = vmatprep.subr.mxu0 0.0
    %651 = vmatpush1.msra.mxu0 0.0
    %652 = vmatprep.subr.mxu0 0.0
    %653 = vmatpush1.msra.mxu0 0.0
    %654 = vmatprep.subr.mxu0 0.0
    %655 = vmatpush1.msra.mxu0 0.0
    %656 = vmatprep.subr.mxu0 0.0
    %657 = vmatpush1.msra.mxu0 0.0
    %658 = vmatprep.subr.mxu0 0.0
    %659 = vmatpush1.msra.mxu0 0.0
    %660 = vmatprep.subr.mxu0 0.0
    %661 = vmatpush1.msra.mxu0 0.0
    %662 = vmatprep.subr.mxu0 0.0
    %663 = vmatpush1.msra.mxu0 0.0
    %664 = vmatprep.subr.mxu0 0.0
    %665 = vmatpush1.msra.mxu0 0.0
    %666 = vmatprep.subr.mxu0 0.0
    %667 = vmatpush1.msra.mxu0 0.0
    %668 = vmatprep.subr.mxu0 0.0
    %669 = vmatpush1.msra.mxu0 0.0
    %670 = vmatprep.subr.mxu0 0.0
    %v671 = vand.u32 %v22, 4294901760
    %v672 = vsub.f32 %v22, %v671
    %v673 = vand.u32 %v672, 4294901760
    %v674 = vsub.f32 %v672, %v673
    %v675 = vand.u32 %v674, 4294901760
    %676 = vmatpush1.msra.mxu0 %v675
    %677 = vmatprep.subr.mxu0 0.0
    %v678 = vand.u32 %v21, 4294901760
    %v679 = vsub.f32 %v21, %v678
    %v680 = vand.u32 %v679, 4294901760
    %v681 = vsub.f32 %v679, %v680
    %v682 = vand.u32 %v681, 4294901760
    %683 = vmatpush1.msra.mxu0 %v682
    %684 = vmatprep.subr.mxu0 0.0
    %v685 = vand.u32 %v20, 4294901760
    %v686 = vsub.f32 %v20, %v685
    %v687 = vand.u32 %v686, 4294901760
    %v688 = vsub.f32 %v686, %v687
    %v689 = vand.u32 %v688, 4294901760
    %690 = vmatpush1.msra.mxu0 %v689
    %691 = vmatprep.subr.mxu0 0.0
    %v692 = vand.u32 %v19, 4294901760
    %v693 = vsub.f32 %v19, %v692
    %v694 = vand.u32 %v693, 4294901760
    %v695 = vsub.f32 %v693, %v694
    %v696 = vand.u32 %v695, 4294901760
    %697 = vmatpush1.msra.mxu0 %v696
    %698 = vmatprep.subr.mxu0 0.0
    %699 = vmatpush2.msra.mxu0 0.0
    %700 = vmatprep.subr.mxu0 0.0
    %701 = vmatpush2.msra.mxu0 0.0
    %702 = vmatprep.subr.mxu0 0.0
    %703 = vmatpush2.msra.mxu0 0.0
    %704 = vmatprep.subr.mxu0 0.0
    %705 = vmatpush2.msra.mxu0 0.0
    %706 = vmatprep.subr.mxu0 0.0
    %707 = vmatpush2.msra.mxu0 0.0
    %708 = vmatprep.subr.mxu0 0.0
    %709 = vmatpush2.msra.mxu0 0.0
    %710 = vmatprep.subr.mxu0 0.0
    %711 = vmatpush2.msra.mxu0 0.0
    %712 = vmatprep.subr.mxu0 0.0
    %713 = vmatpush2.msra.mxu0 0.0
    %714 = vmatprep.subr.mxu0 0.0
    %715 = vmatpush2.msra.mxu0 0.0
    %716 = vmatprep.subr.mxu0 0.0
    %717 = vmatpush2.msra.mxu0 0.0
    %718 = vmatprep.subr.mxu0 0.0
    %719 = vmatpush2.msra.mxu0 0.0
    %720 = vmatprep.subr.mxu0 0.0
    %721 = vmatpush2.msra.mxu0 0.0
    %722 = vmatprep.subr.mxu0 0.0
    %723 = vmatpush2.msra.mxu0 0.0
    %724 = vmatprep.subr.mxu0 0.0
    %725 = vmatpush2.msra.mxu0 0.0
    %726 = vmatprep.subr.mxu0 0.0
    %727 = vmatpush2.msra.mxu0 0.0
    %728 = vmatprep.subr.mxu0 0.0
    %729 = vmatpush2.msra.mxu0 0.0
    %730 = vmatprep.mubr.f32.mxu0 0.0
    %v731 = vand.u32 %v565, 4294901760
    %732 = vmatmul.mubr.f32.gmra.mxu0 %v731
    %v733 = vpop.f32.mrf.mxu0
    %v734 = vadd.f32 %v643, %v733
    %v735 = vpop.f32.mrf.mxu0
    %736 = vdwg.mxu0
    %737 = vmatprep.subr.mxu0 0.0
    %738 = vmatpush1.msra.mxu0 0.0
    %739 = vmatprep.subr.mxu0 0.0
    %740 = vmatpush1.msra.mxu0 0.0
    %741 = vmatprep.subr.mxu0 0.0
    %742 = vmatpush1.msra.mxu0 0.0
    %743 = vmatprep.subr.mxu0 0.0
    %744 = vmatpush1.msra.mxu0 0.0
    %745 = vmatprep.subr.mxu0 0.0
    %746 = vmatpush1.msra.mxu0 0.0
    %747 = vmatprep.subr.mxu0 0.0
    %748 = vmatpush1.msra.mxu0 0.0
    %749 = vmatprep.subr.mxu0 0.0
    %750 = vmatpush1.msra.mxu0 0.0
    %751 = vmatprep.subr.mxu0 0.0
    %752 = vmatpush1.msra.mxu0 0.0
    %753 = vmatprep.subr.mxu0 0.0
    %754 = vmatpush1.msra.mxu0 0.0
    %755 = vmatprep.subr.mxu0 0.0
    %756 = vmatpush1.msra.mxu0 0.0
    %757 = vmatprep.subr.mxu0 0.0
    %758 = vmatpush1.msra.mxu0 0.0
    %759 = vmatprep.subr.mxu0 0.0
    %760 = vmatpush1.msra.mxu0 0.0
    %761 = vmatprep.subr.mxu0 0.0
    %v762 = vand.u32 %v22, 4294901760
    %v763 = vsub.f32 %v22, %v762
    %764 = vmatpush1.msra.mxu0 %v763
    %765 = vmatprep.subr.mxu0 0.0
    %v766 = vand.u32 %v21, 4294901760
    %v767 = vsub.f32 %v21, %v766
    %768 = vmatpush1.msra.mxu0 %v767
    %769 = vmatprep.subr.mxu0 0.0
    %v770 = vand.u32 %v20, 4294901760
    %v771 = vsub.f32 %v20, %v770
    %772 = vmatpush1.msra.mxu0 %v771
    %773 = vmatprep.subr.mxu0 0.0
    %v774 = vand.u32 %v19, 4294901760
    %v775 = vsub.f32 %v19, %v774
    %776 = vmatpush1.msra.mxu0 %v775
    %777 = vmatprep.subr.mxu0 0.0
    %778 = vmatpush2.msra.mxu0 0.0
    %779 = vmatprep.subr.mxu0 0.0
    %780 = vmatpush2.msra.mxu0 0.0
    %781 = vmatprep.subr.mxu0 0.0
    %782 = vmatpush2.msra.mxu0 0.0
    %783 = vmatprep.subr.mxu0 0.0
    %784 = vmatpush2.msra.mxu0 0.0
    %785 = vmatprep.subr.mxu0 0.0
    %786 = vmatpush2.msra.mxu0 0.0
    %787 = vmatprep.subr.mxu0 0.0
    %788 = vmatpush2.msra.mxu0 0.0
    %789 = vmatprep.subr.mxu0 0.0
    %790 = vmatpush2.msra.mxu0 0.0
    %791 = vmatprep.subr.mxu0 0.0
    %792 = vmatpush2.msra.mxu0 0.0
    %793 = vmatprep.subr.mxu0 0.0
    %794 = vmatpush2.msra.mxu0 0.0
    %795 = vmatprep.subr.mxu0 0.0
    %796 = vmatpush2.msra.mxu0 0.0
    %797 = vmatprep.subr.mxu0 0.0
    %798 = vmatpush2.msra.mxu0 0.0
    %799 = vmatprep.subr.mxu0 0.0
    %800 = vmatpush2.msra.mxu0 0.0
    %801 = vmatprep.subr.mxu0 0.0
    %802 = vmatpush2.msra.mxu0 0.0
    %803 = vmatprep.subr.mxu0 0.0
    %804 = vmatpush2.msra.mxu0 0.0
    %805 = vmatprep.subr.mxu0 0.0
    %806 = vmatpush2.msra.mxu0 0.0
    %807 = vmatprep.subr.mxu0 0.0
    %808 = vmatpush2.msra.mxu0 0.0
    %809 = vmatprep.mubr.f32.mxu0 0.0
    %v810 = vand.u32 %v565, 4294901760
    %v811 = vsub.f32 %v565, %v810
    %812 = vmatmul.mubr.f32.gmra.mxu0 %v811
    %v813 = vpop.f32.mrf.mxu0
    %v814 = vadd.f32 %v734, %v813
    %v815 = vpop.f32.mrf.mxu0
    %816 = vdwg.mxu0
    %817 = vmatprep.subr.mxu0 0.0
    %818 = vmatpush1.msra.mxu0 0.0
    %819 = vmatprep.subr.mxu0 0.0
    %820 = vmatpush1.msra.mxu0 0.0
    %821 = vmatprep.subr.mxu0 0.0
    %822 = vmatpush1.msra.mxu0 0.0
    %823 = vmatprep.subr.mxu0 0.0
    %824 = vmatpush1.msra.mxu0 0.0
    %825 = vmatprep.subr.mxu0 0.0
    %826 = vmatpush1.msra.mxu0 0.0
    %827 = vmatprep.subr.mxu0 0.0
    %828 = vmatpush1.msra.mxu0 0.0
    %829 = vmatprep.subr.mxu0 0.0
    %830 = vmatpush1.msra.mxu0 0.0
    %831 = vmatprep.subr.mxu0 0.0
    %832 = vmatpush1.msra.mxu0 0.0
    %833 = vmatprep.subr.mxu0 0.0
    %834 = vmatpush1.msra.mxu0 0.0
    %835 = vmatprep.subr.mxu0 0.0
    %836 = vmatpush1.msra.mxu0 0.0
    %837 = vmatprep.subr.mxu0 0.0
    %838 = vmatpush1.msra.mxu0 0.0
    %839 = vmatprep.subr.mxu0 0.0
    %840 = vmatpush1.msra.mxu0 0.0
    %841 = vmatprep.subr.mxu0 0.0
    %v842 = vand.u32 %v22, 4294901760
    %843 = vmatpush1.msra.mxu0 %v842
    %844 = vmatprep.subr.mxu0 0.0
    %v845 = vand.u32 %v21, 4294901760
    %846 = vmatpush1.msra.mxu0 %v845
    %847 = vmatprep.subr.mxu0 0.0
    %v848 = vand.u32 %v20, 4294901760
    %849 = vmatpush1.msra.mxu0 %v848
    %850 = vmatprep.subr.mxu0 0.0
    %v851 = vand.u32 %v19, 4294901760
    %852 = vmatpush1.msra.mxu0 %v851
    %853 = vmatprep.subr.mxu0 0.0
    %854 = vmatpush2.msra.mxu0 0.0
    %855 = vmatprep.subr.mxu0 0.0
    %856 = vmatpush2.msra.mxu0 0.0
    %857 = vmatprep.subr.mxu0 0.0
    %858 = vmatpush2.msra.mxu0 0.0
    %859 = vmatprep.subr.mxu0 0.0
    %860 = vmatpush2.msra.mxu0 0.0
    %861 = vmatprep.subr.mxu0 0.0
    %862 = vmatpush2.msra.mxu0 0.0
    %863 = vmatprep.subr.mxu0 0.0
    %864 = vmatpush2.msra.mxu0 0.0
    %865 = vmatprep.subr.mxu0 0.0
    %866 = vmatpush2.msra.mxu0 0.0
    %867 = vmatprep.subr.mxu0 0.0
    %868 = vmatpush2.msra.mxu0 0.0
    %869 = vmatprep.subr.mxu0 0.0
    %870 = vmatpush2.msra.mxu0 0.0
    %871 = vmatprep.subr.mxu0 0.0
    %872 = vmatpush2.msra.mxu0 0.0
    %873 = vmatprep.subr.mxu0 0.0
    %874 = vmatpush2.msra.mxu0 0.0
    %875 = vmatprep.subr.mxu0 0.0
    %876 = vmatpush2.msra.mxu0 0.0
    %877 = vmatprep.subr.mxu0 0.0
    %878 = vmatpush2.msra.mxu0 0.0
    %879 = vmatprep.subr.mxu0 0.0
    %880 = vmatpush2.msra.mxu0 0.0
    %881 = vmatprep.subr.mxu0 0.0
    %882 = vmatpush2.msra.mxu0 0.0
    %883 = vmatprep.subr.mxu0 0.0
    %884 = vmatpush2.msra.mxu0 0.0
    %885 = vmatprep.mubr.f32.mxu0 0.0
    %v886 = vand.u32 %v565, 4294901760
    %v887 = vsub.f32 %v565, %v886
    %v888 = vand.u32 %v887, 4294901760
    %889 = vmatmul.mubr.f32.gmra.mxu0 %v888
    %v890 = vpop.f32.mrf.mxu0
    %v891 = vadd.f32 %v814, %v890
    %v892 = vpop.f32.mrf.mxu0
    %893 = vdwg.mxu0
    %894 = vmatprep.subr.mxu0 0.0
    %895 = vmatpush1.msra.mxu0 0.0
    %896 = vmatprep.subr.mxu0 0.0
    %897 = vmatpush1.msra.mxu0 0.0
    %898 = vmatprep.subr.mxu0 0.0
    %899 = vmatpush1.msra.mxu0 0.0
    %900 = vmatprep.subr.mxu0 0.0
    %901 = vmatpush1.msra.mxu0 0.0
    %902 = vmatprep.subr.mxu0 0.0
    %903 = vmatpush1.msra.mxu0 0.0
    %904 = vmatprep.subr.mxu0 0.0
    %905 = vmatpush1.msra.mxu0 0.0
    %906 = vmatprep.subr.mxu0 0.0
    %907 = vmatpush1.msra.mxu0 0.0
    %908 = vmatprep.subr.mxu0 0.0
    %909 = vmatpush1.msra.mxu0 0.0
    %910 = vmatprep.subr.mxu0 0.0
    %911 = vmatpush1.msra.mxu0 0.0
    %912 = vmatprep.subr.mxu0 0.0
    %913 = vmatpush1.msra.mxu0 0.0
    %914 = vmatprep.subr.mxu0 0.0
    %915 = vmatpush1.msra.mxu0 0.0
    %916 = vmatprep.subr.mxu0 0.0
    %917 = vmatpush1.msra.mxu0 0.0
    %918 = vmatprep.subr.mxu0 0.0
    %v919 = vand.u32 %v22, 4294901760
    %v920 = vsub.f32 %v22, %v919
    %v921 = vand.u32 %v920, 4294901760
    %922 = vmatpush1.msra.mxu0 %v921
    %923 = vmatprep.subr.mxu0 0.0
    %v924 = vand.u32 %v21, 4294901760
    %v925 = vsub.f32 %v21, %v924
    %v926 = vand.u32 %v925, 4294901760
    %927 = vmatpush1.msra.mxu0 %v926
    %928 = vmatprep.subr.mxu0 0.0
    %v929 = vand.u32 %v20, 4294901760
    %v930 = vsub.f32 %v20, %v929
    %v931 = vand.u32 %v930, 4294901760
    %932 = vmatpush1.msra.mxu0 %v931
    %933 = vmatprep.subr.mxu0 0.0
    %v934 = vand.u32 %v19, 4294901760
    %v935 = vsub.f32 %v19, %v934
    %v936 = vand.u32 %v935, 4294901760
    %937 = vmatpush1.msra.mxu0 %v936
    %938 = vmatprep.subr.mxu0 0.0
    %939 = vmatpush2.msra.mxu0 0.0
    %940 = vmatprep.subr.mxu0 0.0
    %941 = vmatpush2.msra.mxu0 0.0
    %942 = vmatprep.subr.mxu0 0.0
    %943 = vmatpush2.msra.mxu0 0.0
    %944 = vmatprep.subr.mxu0 0.0
    %945 = vmatpush2.msra.mxu0 0.0
    %946 = vmatprep.subr.mxu0 0.0
    %947 = vmatpush2.msra.mxu0 0.0
    %948 = vmatprep.subr.mxu0 0.0
    %949 = vmatpush2.msra.mxu0 0.0
    %950 = vmatprep.subr.mxu0 0.0
    %951 = vmatpush2.msra.mxu0 0.0
    %952 = vmatprep.subr.mxu0 0.0
    %953 = vmatpush2.msra.mxu0 0.0
    %954 = vmatprep.subr.mxu0 0.0
    %955 = vmatpush2.msra.mxu0 0.0
    %956 = vmatprep.subr.mxu0 0.0
    %957 = vmatpush2.msra.mxu0 0.0
    %958 = vmatprep.subr.mxu0 0.0
    %959 = vmatpush2.msra.mxu0 0.0
    %960 = vmatprep.subr.mxu0 0.0
    %961 = vmatpush2.msra.mxu0 0.0
    %962 = vmatprep.subr.mxu0 0.0
    %963 = vmatpush2.msra.mxu0 0.0
    %964 = vmatprep.subr.mxu0 0.0
    %965 = vmatpush2.msra.mxu0 0.0
    %966 = vmatprep.subr.mxu0 0.0
    %967 = vmatpush2.msra.mxu0 0.0
    %968 = vmatprep.subr.mxu0 0.0
    %969 = vmatpush2.msra.mxu0 0.0
    %970 = vmatprep.mubr.f32.mxu0 0.0
    %v971 = vand.u32 %v565, 4294901760
    %972 = vmatmul.mubr.f32.gmra.mxu0 %v971
    %v973 = vpop.f32.mrf.mxu0
    %v974 = vadd.f32 %v891, %v973
    %v975 = vpop.f32.mrf.mxu0
    %976 = vdwg.mxu0
    %977 = vmatprep.subr.mxu0 0.0
    %978 = vmatpush1.msra.mxu0 0.0
    %979 = vmatprep.subr.mxu0 0.0
    %980 = vmatpush1.msra.mxu0 0.0
    %981 = vmatprep.subr.mxu0 0.0
    %982 = vmatpush1.msra.mxu0 0.0
    %983 = vmatprep.subr.mxu0 0.0
    %984 = vmatpush1.msra.mxu0 0.0
    %985 = vmatprep.subr.mxu0 0.0
    %986 = vmatpush1.msra.mxu0 0.0
    %987 = vmatprep.subr.mxu0 0.0
    %988 = vmatpush1.msra.mxu0 0.0
    %989 = vmatprep.subr.mxu0 0.0
    %990 = vmatpush1.msra.mxu0 0.0
    %991 = vmatprep.subr.mxu0 0.0
    %992 = vmatpush1.msra.mxu0 0.0
    %993 = vmatprep.subr.mxu0 0.0
    %994 = vmatpush1.msra.mxu0 0.0
    %995 = vmatprep.subr.mxu0 0.0
    %996 = vmatpush1.msra.mxu0 0.0
    %997 = vmatprep.subr.mxu0 0.0
    %998 = vmatpush1.msra.mxu0 0.0
    %999 = vmatprep.subr.mxu0 0.0
    %1000 = vmatpush1.msra.mxu0 0.0
    %1001 = vmatprep.subr.mxu0 0.0
    %v1002 = vand.u32 %v22, 4294901760
    %1003 = vmatpush1.msra.mxu0 %v1002
    %1004 = vmatprep.subr.mxu0 0.0
    %v1005 = vand.u32 %v21, 4294901760
    %1006 = vmatpush1.msra.mxu0 %v1005
    %1007 = vmatprep.subr.mxu0 0.0
    %v1008 = vand.u32 %v20, 4294901760
    %1009 = vmatpush1.msra.mxu0 %v1008
    %1010 = vmatprep.subr.mxu0 0.0
    %v1011 = vand.u32 %v19, 4294901760
    %1012 = vmatpush1.msra.mxu0 %v1011
    %1013 = vmatprep.subr.mxu0 0.0
    %1014 = vmatpush2.msra.mxu0 0.0
    %1015 = vmatprep.subr.mxu0 0.0
    %1016 = vmatpush2.msra.mxu0 0.0
    %1017 = vmatprep.subr.mxu0 0.0
    %1018 = vmatpush2.msra.mxu0 0.0
    %1019 = vmatprep.subr.mxu0 0.0
    %1020 = vmatpush2.msra.mxu0 0.0
    %1021 = vmatprep.subr.mxu0 0.0
    %1022 = vmatpush2.msra.mxu0 0.0
    %1023 = vmatprep.subr.mxu0 0.0
    %1024 = vmatpush2.msra.mxu0 0.0
    %1025 = vmatprep.subr.mxu0 0.0
    %1026 = vmatpush2.msra.mxu0 0.0
    %1027 = vmatprep.subr.mxu0 0.0
    %1028 = vmatpush2.msra.mxu0 0.0
    %1029 = vmatprep.subr.mxu0 0.0
    %1030 = vmatpush2.msra.mxu0 0.0
    %1031 = vmatprep.subr.mxu0 0.0
    %1032 = vmatpush2.msra.mxu0 0.0
    %1033 = vmatprep.subr.mxu0 0.0
    %1034 = vmatpush2.msra.mxu0 0.0
    %1035 = vmatprep.subr.mxu0 0.0
    %1036 = vmatpush2.msra.mxu0 0.0
    %1037 = vmatprep.subr.mxu0 0.0
    %1038 = vmatpush2.msra.mxu0 0.0
    %1039 = vmatprep.subr.mxu0 0.0
    %1040 = vmatpush2.msra.mxu0 0.0
    %1041 = vmatprep.subr.mxu0 0.0
    %1042 = vmatpush2.msra.mxu0 0.0
    %1043 = vmatprep.subr.mxu0 0.0
    %1044 = vmatpush2.msra.mxu0 0.0
    %1045 = vmatprep.mubr.f32.mxu0 0.0
    %v1046 = vand.u32 %v565, 4294901760
    %1047 = vmatmul.mubr.f32.gmra.mxu0 %v1046
    %v1048 = vpop.f32.mrf.mxu0
    %v1049 = vadd.f32 %v974, %v1048
    %v1050 = vpop.f32.mrf.mxu0
    %1051 = vdwg.mxu0
    %v1052 = vadd.f32 %v563, %v1049
    %v1053 = vxor.u32 %v1052, 2147483648
    %v1054 = vmul.f32 %v1053, 1.442695
    %v1055 = vpow.pop %v1054
    %v1056 = vadd.f32 %v1055, 1.0
    %v1057 = vrcp.pop %v1056
    %v1058 = vmul.f32 1.0, %v1057
    %v1059 = vtanh.pop %v1052
    %1061 = vrot.lane.b32.xlu0 %v551, 32
    %v1062 = vpop.permute.xlu0 %1061
    %v1064 = vmul.f32 %v1058, %v1062
    %1066 = vrot.lane.b32.xlu0 %v1059, 64
    %v1067 = vpop.permute.xlu0 %1066
    %v1069 = vmul.f32 %v1058, %v1067
    %1071 = vrot.lane.b32.xlu0 %v1069, 32
    %v1072 = vpop.permute.xlu0 %1071
    %v1074 = vadd.f32 %v1064, %v1072
    %v1075 = vtanh.pop %v1074
    %1077 = vrot.lane.b32.xlu0 %v1075, 64
    %v1078 = vpop.permute.xlu0 %1077
    %v1080 = vmul.f32 %v1058, %v1078
    %v1081 = vsel %vm29, 1, 6
    %vm1082 = vcmp.lt.s32.totalorder %v1081, %v26
    %1084 = vrot.lane.b32.xlu0 %v1074, 96
    %v1085 = vpop.permute.xlu0 %1084
    %v1087 = vsel %vm1082, %v1085, %v551
    %1089 = vrot.lane.b32.xlu0 %v1080, 32
    %v1090 = vpop.permute.xlu0 %1089
    %v1092 = vsel %vm1082, %v1090, %v556
    %v1093 = vsel %vm1082, %v1090, 0.0
    %s1094 = scalar_lea.vmem %s3, 2
    %1095 = vst.msk [vmem:[%s1094] sm:$0x3] %vm557, %v1093
    %s1096 = scalar_lea.vmem %s3, 12
    %1097 = vst.msk [vmem:[%s1096] sm:$0x3] %vm560, %v1093
    %s1098 = scalar_lea.vmem %s1, 4
    %v1099 = vld [vmem:[%s1098] sm:$0x3]
    %v1101 = vsel %vm31, %v1092, 0
    %1103 = vmatprep.subr.mxu0 0.0
    %1104 = vmatpush1.msra.mxu0 0.0
    %1105 = vmatprep.subr.mxu0 0.0
    %1106 = vmatpush1.msra.mxu0 0.0
    %1107 = vmatprep.subr.mxu0 0.0
    %1108 = vmatpush1.msra.mxu0 0.0
    %1109 = vmatprep.subr.mxu0 0.0
    %1110 = vmatpush1.msra.mxu0 0.0
    %1111 = vmatprep.subr.mxu0 0.0
    %1112 = vmatpush1.msra.mxu0 0.0
    %1113 = vmatprep.subr.mxu0 0.0
    %1114 = vmatpush1.msra.mxu0 0.0
    %1115 = vmatprep.subr.mxu0 0.0
    %1116 = vmatpush1.msra.mxu0 0.0
    %1117 = vmatprep.subr.mxu0 0.0
    %1118 = vmatpush1.msra.mxu0 0.0
    %1119 = vmatprep.subr.mxu0 0.0
    %1120 = vmatpush1.msra.mxu0 0.0
    %1121 = vmatprep.subr.mxu0 0.0
    %1122 = vmatpush1.msra.mxu0 0.0
    %1123 = vmatprep.subr.mxu0 0.0
    %1124 = vmatpush1.msra.mxu0 0.0
    %1125 = vmatprep.subr.mxu0 0.0
    %1126 = vmatpush1.msra.mxu0 0.0
    %1127 = vmatprep.subr.mxu0 0.0
    %v1128 = vand.u32 %v22, 4294901760
    %1129 = vmatpush1.msra.mxu0 %v1128
    %1130 = vmatprep.subr.mxu0 0.0
    %v1131 = vand.u32 %v21, 4294901760
    %1132 = vmatpush1.msra.mxu0 %v1131
    %1133 = vmatprep.subr.mxu0 0.0
    %v1134 = vand.u32 %v20, 4294901760
    %1135 = vmatpush1.msra.mxu0 %v1134
    %1136 = vmatprep.subr.mxu0 0.0
    %v1137 = vand.u32 %v19, 4294901760
    %1138 = vmatpush1.msra.mxu0 %v1137
    %1139 = vmatprep.subr.mxu0 0.0
    %1140 = vmatpush2.msra.mxu0 0.0
    %1141 = vmatprep.subr.mxu0 0.0
    %1142 = vmatpush2.msra.mxu0 0.0
    %1143 = vmatprep.subr.mxu0 0.0
    %1144 = vmatpush2.msra.mxu0 0.0
    %1145 = vmatprep.subr.mxu0 0.0
    %1146 = vmatpush2.msra.mxu0 0.0
    %1147 = vmatprep.subr.mxu0 0.0
    %1148 = vmatpush2.msra.mxu0 0.0
    %1149 = vmatprep.subr.mxu0 0.0
    %1150 = vmatpush2.msra.mxu0 0.0
    %1151 = vmatprep.subr.mxu0 0.0
    %1152 = vmatpush2.msra.mxu0 0.0
    %1153 = vmatprep.subr.mxu0 0.0
    %1154 = vmatpush2.msra.mxu0 0.0
    %1155 = vmatprep.subr.mxu0 0.0
    %1156 = vmatpush2.msra.mxu0 0.0
    %1157 = vmatprep.subr.mxu0 0.0
    %1158 = vmatpush2.msra.mxu0 0.0
    %1159 = vmatprep.subr.mxu0 0.0
    %1160 = vmatpush2.msra.mxu0 0.0
    %1161 = vmatprep.subr.mxu0 0.0
    %1162 = vmatpush2.msra.mxu0 0.0
    %1163 = vmatprep.subr.mxu0 0.0
    %1164 = vmatpush2.msra.mxu0 0.0
    %1165 = vmatprep.subr.mxu0 0.0
    %1166 = vmatpush2.msra.mxu0 0.0
    %1167 = vmatprep.subr.mxu0 0.0
    %1168 = vmatpush2.msra.mxu0 0.0
    %1169 = vmatprep.subr.mxu0 0.0
    %1170 = vmatpush2.msra.mxu0 0.0
    %1171 = vmatprep.mubr.f32.mxu0 0.0
    %v1172 = vand.u32 %v1101, 4294901760
    %v1173 = vsub.f32 %v1101, %v1172
    %v1174 = vand.u32 %v1173, 4294901760
    %v1175 = vsub.f32 %v1173, %v1174
    %v1176 = vand.u32 %v1175, 4294901760
    %1177 = vmatmul.mubr.f32.gmra.mxu0 %v1176
    %v1178 = vpop.f32.mrf.mxu0
    %v1179 = vadd.f32 0.0, %v1178
    %v1180 = vpop.f32.mrf.mxu0
    %1181 = vdwg.mxu0
    %1182 = vmatprep.subr.mxu0 0.0
    %1183 = vmatpush1.msra.mxu0 0.0
    %1184 = vmatprep.subr.mxu0 0.0
    %1185 = vmatpush1.msra.mxu0 0.0
    %1186 = vmatprep.subr.mxu0 0.0
    %1187 = vmatpush1.msra.mxu0 0.0
    %1188 = vmatprep.subr.mxu0 0.0
    %1189 = vmatpush1.msra.mxu0 0.0
    %1190 = vmatprep.subr.mxu0 0.0
    %1191 = vmatpush1.msra.mxu0 0.0
    %1192 = vmatprep.subr.mxu0 0.0
    %1193 = vmatpush1.msra.mxu0 0.0
    %1194 = vmatprep.subr.mxu0 0.0
    %1195 = vmatpush1.msra.mxu0 0.0
    %1196 = vmatprep.subr.mxu0 0.0
    %1197 = vmatpush1.msra.mxu0 0.0
    %1198 = vmatprep.subr.mxu0 0.0
    %1199 = vmatpush1.msra.mxu0 0.0
    %1200 = vmatprep.subr.mxu0 0.0
    %1201 = vmatpush1.msra.mxu0 0.0
    %1202 = vmatprep.subr.mxu0 0.0
    %1203 = vmatpush1.msra.mxu0 0.0
    %1204 = vmatprep.subr.mxu0 0.0
    %1205 = vmatpush1.msra.mxu0 0.0
    %1206 = vmatprep.subr.mxu0 0.0
    %v1207 = vand.u32 %v22, 4294901760
    %v1208 = vsub.f32 %v22, %v1207
    %v1209 = vand.u32 %v1208, 4294901760
    %v1210 = vsub.f32 %v1208, %v1209
    %v1211 = vand.u32 %v1210, 4294901760
    %1212 = vmatpush1.msra.mxu0 %v1211
    %1213 = vmatprep.subr.mxu0 0.0
    %v1214 = vand.u32 %v21, 4294901760
    %v1215 = vsub.f32 %v21, %v1214
    %v1216 = vand.u32 %v1215, 4294901760
    %v1217 = vsub.f32 %v1215, %v1216
    %v1218 = vand.u32 %v1217, 4294901760
    %1219 = vmatpush1.msra.mxu0 %v1218
    %1220 = vmatprep.subr.mxu0 0.0
    %v1221 = vand.u32 %v20, 4294901760
    %v1222 = vsub.f32 %v20, %v1221
    %v1223 = vand.u32 %v1222, 4294901760
    %v1224 = vsub.f32 %v1222, %v1223
    %v1225 = vand.u32 %v1224, 4294901760
    %1226 = vmatpush1.msra.mxu0 %v1225
    %1227 = vmatprep.subr.mxu0 0.0
    %v1228 = vand.u32 %v19, 4294901760
    %v1229 = vsub.f32 %v19, %v1228
    %v1230 = vand.u32 %v1229, 4294901760
    %v1231 = vsub.f32 %v1229, %v1230
    %v1232 = vand.u32 %v1231, 4294901760
    %1233 = vmatpush1.msra.mxu0 %v1232
    %1234 = vmatprep.subr.mxu0 0.0
    %1235 = vmatpush2.msra.mxu0 0.0
    %1236 = vmatprep.subr.mxu0 0.0
    %1237 = vmatpush2.msra.mxu0 0.0
    %1238 = vmatprep.subr.mxu0 0.0
    %1239 = vmatpush2.msra.mxu0 0.0
    %1240 = vmatprep.subr.mxu0 0.0
    %1241 = vmatpush2.msra.mxu0 0.0
    %1242 = vmatprep.subr.mxu0 0.0
    %1243 = vmatpush2.msra.mxu0 0.0
    %1244 = vmatprep.subr.mxu0 0.0
    %1245 = vmatpush2.msra.mxu0 0.0
    %1246 = vmatprep.subr.mxu0 0.0
    %1247 = vmatpush2.msra.mxu0 0.0
    %1248 = vmatprep.subr.mxu0 0.0
    %1249 = vmatpush2.msra.mxu0 0.0
    %1250 = vmatprep.subr.mxu0 0.0
    %1251 = vmatpush2.msra.mxu0 0.0
    %1252 = vmatprep.subr.mxu0 0.0
    %1253 = vmatpush2.msra.mxu0 0.0
    %1254 = vmatprep.subr.mxu0 0.0
    %1255 = vmatpush2.msra.mxu0 0.0
    %1256 = vmatprep.subr.mxu0 0.0
    %1257 = vmatpush2.msra.mxu0 0.0
    %1258 = vmatprep.subr.mxu0 0.0
    %1259 = vmatpush2.msra.mxu0 0.0
    %1260 = vmatprep.subr.mxu0 0.0
    %1261 = vmatpush2.msra.mxu0 0.0
    %1262 = vmatprep.subr.mxu0 0.0
    %1263 = vmatpush2.msra.mxu0 0.0
    %1264 = vmatprep.subr.mxu0 0.0
    %1265 = vmatpush2.msra.mxu0 0.0
    %1266 = vmatprep.mubr.f32.mxu0 0.0
    %v1267 = vand.u32 %v1101, 4294901760
    %1268 = vmatmul.mubr.f32.gmra.mxu0 %v1267
    %v1269 = vpop.f32.mrf.mxu0
    %v1270 = vadd.f32 %v1179, %v1269
    %v1271 = vpop.f32.mrf.mxu0
    %1272 = vdwg.mxu0
    %1273 = vmatprep.subr.mxu0 0.0
    %1274 = vmatpush1.msra.mxu0 0.0
    %1275 = vmatprep.subr.mxu0 0.0
    %1276 = vmatpush1.msra.mxu0 0.0
    %1277 = vmatprep.subr.mxu0 0.0
    %1278 = vmatpush1.msra.mxu0 0.0
    %1279 = vmatprep.subr.mxu0 0.0
    %1280 = vmatpush1.msra.mxu0 0.0
    %1281 = vmatprep.subr.mxu0 0.0
    %1282 = vmatpush1.msra.mxu0 0.0
    %1283 = vmatprep.subr.mxu0 0.0
    %1284 = vmatpush1.msra.mxu0 0.0
    %1285 = vmatprep.subr.mxu0 0.0
    %1286 = vmatpush1.msra.mxu0 0.0
    %1287 = vmatprep.subr.mxu0 0.0
    %1288 = vmatpush1.msra.mxu0 0.0
    %1289 = vmatprep.subr.mxu0 0.0
    %1290 = vmatpush1.msra.mxu0 0.0
    %1291 = vmatprep.subr.mxu0 0.0
    %1292 = vmatpush1.msra.mxu0 0.0
    %1293 = vmatprep.subr.mxu0 0.0
    %1294 = vmatpush1.msra.mxu0 0.0
    %1295 = vmatprep.subr.mxu0 0.0
    %1296 = vmatpush1.msra.mxu0 0.0
    %1297 = vmatprep.subr.mxu0 0.0
    %v1298 = vand.u32 %v22, 4294901760
    %v1299 = vsub.f32 %v22, %v1298
    %1300 = vmatpush1.msra.mxu0 %v1299
    %1301 = vmatprep.subr.mxu0 0.0
    %v1302 = vand.u32 %v21, 4294901760
    %v1303 = vsub.f32 %v21, %v1302
    %1304 = vmatpush1.msra.mxu0 %v1303
    %1305 = vmatprep.subr.mxu0 0.0
    %v1306 = vand.u32 %v20, 4294901760
    %v1307 = vsub.f32 %v20, %v1306
    %1308 = vmatpush1.msra.mxu0 %v1307
    %1309 = vmatprep.subr.mxu0 0.0
    %v1310 = vand.u32 %v19, 4294901760
    %v1311 = vsub.f32 %v19, %v1310
    %1312 = vmatpush1.msra.mxu0 %v1311
    %1313 = vmatprep.subr.mxu0 0.0
    %1314 = vmatpush2.msra.mxu0 0.0
    %1315 = vmatprep.subr.mxu0 0.0
    %1316 = vmatpush2.msra.mxu0 0.0
    %1317 = vmatprep.subr.mxu0 0.0
    %1318 = vmatpush2.msra.mxu0 0.0
    %1319 = vmatprep.subr.mxu0 0.0
    %1320 = vmatpush2.msra.mxu0 0.0
    %1321 = vmatprep.subr.mxu0 0.0
    %1322 = vmatpush2.msra.mxu0 0.0
    %1323 = vmatprep.subr.mxu0 0.0
    %1324 = vmatpush2.msra.mxu0 0.0
    %1325 = vmatprep.subr.mxu0 0.0
    %1326 = vmatpush2.msra.mxu0 0.0
    %1327 = vmatprep.subr.mxu0 0.0
    %1328 = vmatpush2.msra.mxu0 0.0
    %1329 = vmatprep.subr.mxu0 0.0
    %1330 = vmatpush2.msra.mxu0 0.0
    %1331 = vmatprep.subr.mxu0 0.0
    %1332 = vmatpush2.msra.mxu0 0.0
    %1333 = vmatprep.subr.mxu0 0.0
    %1334 = vmatpush2.msra.mxu0 0.0
    %1335 = vmatprep.subr.mxu0 0.0
    %1336 = vmatpush2.msra.mxu0 0.0
    %1337 = vmatprep.subr.mxu0 0.0
    %1338 = vmatpush2.msra.mxu0 0.0
    %1339 = vmatprep.subr.mxu0 0.0
    %1340 = vmatpush2.msra.mxu0 0.0
    %1341 = vmatprep.subr.mxu0 0.0
    %1342 = vmatpush2.msra.mxu0 0.0
    %1343 = vmatprep.subr.mxu0 0.0
    %1344 = vmatpush2.msra.mxu0 0.0
    %1345 = vmatprep.mubr.f32.mxu0 0.0
    %v1346 = vand.u32 %v1101, 4294901760
    %v1347 = vsub.f32 %v1101, %v1346
    %1348 = vmatmul.mubr.f32.gmra.mxu0 %v1347
    %v1349 = vpop.f32.mrf.mxu0
    %v1350 = vadd.f32 %v1270, %v1349
    %v1351 = vpop.f32.mrf.mxu0
    %1352 = vdwg.mxu0
    %1353 = vmatprep.subr.mxu0 0.0
    %1354 = vmatpush1.msra.mxu0 0.0
    %1355 = vmatprep.subr.mxu0 0.0
    %1356 = vmatpush1.msra.mxu0 0.0
    %1357 = vmatprep.subr.mxu0 0.0
    %1358 = vmatpush1.msra.mxu0 0.0
    %1359 = vmatprep.subr.mxu0 0.0
    %1360 = vmatpush1.msra.mxu0 0.0
    %1361 = vmatprep.subr.mxu0 0.0
    %1362 = vmatpush1.msra.mxu0 0.0
    %1363 = vmatprep.subr.mxu0 0.0
    %1364 = vmatpush1.msra.mxu0 0.0
    %1365 = vmatprep.subr.mxu0 0.0
    %1366 = vmatpush1.msra.mxu0 0.0
    %1367 = vmatprep.subr.mxu0 0.0
    %1368 = vmatpush1.msra.mxu0 0.0
    %1369 = vmatprep.subr.mxu0 0.0
    %1370 = vmatpush1.msra.mxu0 0.0
    %1371 = vmatprep.subr.mxu0 0.0
    %1372 = vmatpush1.msra.mxu0 0.0
    %1373 = vmatprep.subr.mxu0 0.0
    %1374 = vmatpush1.msra.mxu0 0.0
    %1375 = vmatprep.subr.mxu0 0.0
    %1376 = vmatpush1.msra.mxu0 0.0
    %1377 = vmatprep.subr.mxu0 0.0
    %v1378 = vand.u32 %v22, 4294901760
    %1379 = vmatpush1.msra.mxu0 %v1378
    %1380 = vmatprep.subr.mxu0 0.0
    %v1381 = vand.u32 %v21, 4294901760
    %1382 = vmatpush1.msra.mxu0 %v1381
    %1383 = vmatprep.subr.mxu0 0.0
    %v1384 = vand.u32 %v20, 4294901760
    %1385 = vmatpush1.msra.mxu0 %v1384
    %1386 = vmatprep.subr.mxu0 0.0
    %v1387 = vand.u32 %v19, 4294901760
    %1388 = vmatpush1.msra.mxu0 %v1387
    %1389 = vmatprep.subr.mxu0 0.0
    %1390 = vmatpush2.msra.mxu0 0.0
    %1391 = vmatprep.subr.mxu0 0.0
    %1392 = vmatpush2.msra.mxu0 0.0
    %1393 = vmatprep.subr.mxu0 0.0
    %1394 = vmatpush2.msra.mxu0 0.0
    %1395 = vmatprep.subr.mxu0 0.0
    %1396 = vmatpush2.msra.mxu0 0.0
    %1397 = vmatprep.subr.mxu0 0.0
    %1398 = vmatpush2.msra.mxu0 0.0
    %1399 = vmatprep.subr.mxu0 0.0
    %1400 = vmatpush2.msra.mxu0 0.0
    %1401 = vmatprep.subr.mxu0 0.0
    %1402 = vmatpush2.msra.mxu0 0.0
    %1403 = vmatprep.subr.mxu0 0.0
    %1404 = vmatpush2.msra.mxu0 0.0
    %1405 = vmatprep.subr.mxu0 0.0
    %1406 = vmatpush2.msra.mxu0 0.0
    %1407 = vmatprep.subr.mxu0 0.0
    %1408 = vmatpush2.msra.mxu0 0.0
    %1409 = vmatprep.subr.mxu0 0.0
    %1410 = vmatpush2.msra.mxu0 0.0
    %1411 = vmatprep.subr.mxu0 0.0
    %1412 = vmatpush2.msra.mxu0 0.0
    %1413 = vmatprep.subr.mxu0 0.0
    %1414 = vmatpush2.msra.mxu0 0.0
    %1415 = vmatprep.subr.mxu0 0.0
    %1416 = vmatpush2.msra.mxu0 0.0
    %1417 = vmatprep.subr.mxu0 0.0
    %1418 = vmatpush2.msra.mxu0 0.0
    %1419 = vmatprep.subr.mxu0 0.0
    %1420 = vmatpush2.msra.mxu0 0.0
    %1421 = vmatprep.mubr.f32.mxu0 0.0
    %v1422 = vand.u32 %v1101, 4294901760
    %v1423 = vsub.f32 %v1101, %v1422
    %v1424 = vand.u32 %v1423, 4294901760
    %1425 = vmatmul.mubr.f32.gmra.mxu0 %v1424
    %v1426 = vpop.f32.mrf.mxu0
    %v1427 = vadd.f32 %v1350, %v1426
    %v1428 = vpop.f32.mrf.mxu0
    %1429 = vdwg.mxu0
    %1430 = vmatprep.subr.mxu0 0.0
    %1431 = vmatpush1.msra.mxu0 0.0
    %1432 = vmatprep.subr.mxu0 0.0
    %1433 = vmatpush1.msra.mxu0 0.0
    %1434 = vmatprep.subr.mxu0 0.0
    %1435 = vmatpush1.msra.mxu0 0.0
    %1436 = vmatprep.subr.mxu0 0.0
    %1437 = vmatpush1.msra.mxu0 0.0
    %1438 = vmatprep.subr.mxu0 0.0
    %1439 = vmatpush1.msra.mxu0 0.0
    %1440 = vmatprep.subr.mxu0 0.0
    %1441 = vmatpush1.msra.mxu0 0.0
    %1442 = vmatprep.subr.mxu0 0.0
    %1443 = vmatpush1.msra.mxu0 0.0
    %1444 = vmatprep.subr.mxu0 0.0
    %1445 = vmatpush1.msra.mxu0 0.0
    %1446 = vmatprep.subr.mxu0 0.0
    %1447 = vmatpush1.msra.mxu0 0.0
    %1448 = vmatprep.subr.mxu0 0.0
    %1449 = vmatpush1.msra.mxu0 0.0
    %1450 = vmatprep.subr.mxu0 0.0
    %1451 = vmatpush1.msra.mxu0 0.0
    %1452 = vmatprep.subr.mxu0 0.0
    %1453 = vmatpush1.msra.mxu0 0.0
    %1454 = vmatprep.subr.mxu0 0.0
    %v1455 = vand.u32 %v22, 4294901760
    %v1456 = vsub.f32 %v22, %v1455
    %v1457 = vand.u32 %v1456, 4294901760
    %1458 = vmatpush1.msra.mxu0 %v1457
    %1459 = vmatprep.subr.mxu0 0.0
    %v1460 = vand.u32 %v21, 4294901760
    %v1461 = vsub.f32 %v21, %v1460
    %v1462 = vand.u32 %v1461, 4294901760
    %1463 = vmatpush1.msra.mxu0 %v1462
    %1464 = vmatprep.subr.mxu0 0.0
    %v1465 = vand.u32 %v20, 4294901760
    %v1466 = vsub.f32 %v20, %v1465
    %v1467 = vand.u32 %v1466, 4294901760
    %1468 = vmatpush1.msra.mxu0 %v1467
    %1469 = vmatprep.subr.mxu0 0.0
    %v1470 = vand.u32 %v19, 4294901760
    %v1471 = vsub.f32 %v19, %v1470
    %v1472 = vand.u32 %v1471, 4294901760
    %1473 = vmatpush1.msra.mxu0 %v1472
    %1474 = vmatprep.subr.mxu0 0.0
    %1475 = vmatpush2.msra.mxu0 0.0
    %1476 = vmatprep.subr.mxu0 0.0
    %1477 = vmatpush2.msra.mxu0 0.0
    %1478 = vmatprep.subr.mxu0 0.0
    %1479 = vmatpush2.msra.mxu0 0.0
    %1480 = vmatprep.subr.mxu0 0.0
    %1481 = vmatpush2.msra.mxu0 0.0
    %1482 = vmatprep.subr.mxu0 0.0
    %1483 = vmatpush2.msra.mxu0 0.0
    %1484 = vmatprep.subr.mxu0 0.0
    %1485 = vmatpush2.msra.mxu0 0.0
    %1486 = vmatprep.subr.mxu0 0.0
    %1487 = vmatpush2.msra.mxu0 0.0
    %1488 = vmatprep.subr.mxu0 0.0
    %1489 = vmatpush2.msra.mxu0 0.0
    %1490 = vmatprep.subr.mxu0 0.0
    %1491 = vmatpush2.msra.mxu0 0.0
    %1492 = vmatprep.subr.mxu0 0.0
    %1493 = vmatpush2.msra.mxu0 0.0
    %1494 = vmatprep.subr.mxu0 0.0
    %1495 = vmatpush2.msra.mxu0 0.0
    %1496 = vmatprep.subr.mxu0 0.0
    %1497 = vmatpush2.msra.mxu0 0.0
    %1498 = vmatprep.subr.mxu0 0.0
    %1499 = vmatpush2.msra.mxu0 0.0
    %1500 = vmatprep.subr.mxu0 0.0
    %1501 = vmatpush2.msra.mxu0 0.0
    %1502 = vmatprep.subr.mxu0 0.0
    %1503 = vmatpush2.msra.mxu0 0.0
    %1504 = vmatprep.subr.mxu0 0.0
    %1505 = vmatpush2.msra.mxu0 0.0
    %1506 = vmatprep.mubr.f32.mxu0 0.0
    %v1507 = vand.u32 %v1101, 4294901760
    %1508 = vmatmul.mubr.f32.gmra.mxu0 %v1507
    %v1509 = vpop.f32.mrf.mxu0
    %v1510 = vadd.f32 %v1427, %v1509
    %v1511 = vpop.f32.mrf.mxu0
    %1512 = vdwg.mxu0
    %1513 = vmatprep.subr.mxu0 0.0
    %1514 = vmatpush1.msra.mxu0 0.0
    %1515 = vmatprep.subr.mxu0 0.0
    %1516 = vmatpush1.msra.mxu0 0.0
    %1517 = vmatprep.subr.mxu0 0.0
    %1518 = vmatpush1.msra.mxu0 0.0
    %1519 = vmatprep.subr.mxu0 0.0
    %1520 = vmatpush1.msra.mxu0 0.0
    %1521 = vmatprep.subr.mxu0 0.0
    %1522 = vmatpush1.msra.mxu0 0.0
    %1523 = vmatprep.subr.mxu0 0.0
    %1524 = vmatpush1.msra.mxu0 0.0
    %1525 = vmatprep.subr.mxu0 0.0
    %1526 = vmatpush1.msra.mxu0 0.0
    %1527 = vmatprep.subr.mxu0 0.0
    %1528 = vmatpush1.msra.mxu0 0.0
    %1529 = vmatprep.subr.mxu0 0.0
    %1530 = vmatpush1.msra.mxu0 0.0
    %1531 = vmatprep.subr.mxu0 0.0
    %1532 = vmatpush1.msra.mxu0 0.0
    %1533 = vmatprep.subr.mxu0 0.0
    %1534 = vmatpush1.msra.mxu0 0.0
    %1535 = vmatprep.subr.mxu0 0.0
    %1536 = vmatpush1.msra.mxu0 0.0
    %1537 = vmatprep.subr.mxu0 0.0
    %v1538 = vand.u32 %v22, 4294901760
    %1539 = vmatpush1.msra.mxu0 %v1538
    %1540 = vmatprep.subr.mxu0 0.0
    %v1541 = vand.u32 %v21, 4294901760
    %1542 = vmatpush1.msra.mxu0 %v1541
    %1543 = vmatprep.subr.mxu0 0.0
    %v1544 = vand.u32 %v20, 4294901760
    %1545 = vmatpush1.msra.mxu0 %v1544
    %1546 = vmatprep.subr.mxu0 0.0
    %v1547 = vand.u32 %v19, 4294901760
    %1548 = vmatpush1.msra.mxu0 %v1547
    %1549 = vmatprep.subr.mxu0 0.0
    %1550 = vmatpush2.msra.mxu0 0.0
    %1551 = vmatprep.subr.mxu0 0.0
    %1552 = vmatpush2.msra.mxu0 0.0
    %1553 = vmatprep.subr.mxu0 0.0
    %1554 = vmatpush2.msra.mxu0 0.0
    %1555 = vmatprep.subr.mxu0 0.0
    %1556 = vmatpush2.msra.mxu0 0.0
    %1557 = vmatprep.subr.mxu0 0.0
    %1558 = vmatpush2.msra.mxu0 0.0
    %1559 = vmatprep.subr.mxu0 0.0
    %1560 = vmatpush2.msra.mxu0 0.0
    %1561 = vmatprep.subr.mxu0 0.0
    %1562 = vmatpush2.msra.mxu0 0.0
    %1563 = vmatprep.subr.mxu0 0.0
    %1564 = vmatpush2.msra.mxu0 0.0
    %1565 = vmatprep.subr.mxu0 0.0
    %1566 = vmatpush2.msra.mxu0 0.0
    %1567 = vmatprep.subr.mxu0 0.0
    %1568 = vmatpush2.msra.mxu0 0.0
    %1569 = vmatprep.subr.mxu0 0.0
    %1570 = vmatpush2.msra.mxu0 0.0
    %1571 = vmatprep.subr.mxu0 0.0
    %1572 = vmatpush2.msra.mxu0 0.0
    %1573 = vmatprep.subr.mxu0 0.0
    %1574 = vmatpush2.msra.mxu0 0.0
    %1575 = vmatprep.subr.mxu0 0.0
    %1576 = vmatpush2.msra.mxu0 0.0
    %1577 = vmatprep.subr.mxu0 0.0
    %1578 = vmatpush2.msra.mxu0 0.0
    %1579 = vmatprep.subr.mxu0 0.0
    %1580 = vmatpush2.msra.mxu0 0.0
    %1581 = vmatprep.mubr.f32.mxu0 0.0
    %v1582 = vand.u32 %v1101, 4294901760
    %1583 = vmatmul.mubr.f32.gmra.mxu0 %v1582
    %v1584 = vpop.f32.mrf.mxu0
    %v1585 = vadd.f32 %v1510, %v1584
    %v1586 = vpop.f32.mrf.mxu0
    %1587 = vdwg.mxu0
    %v1588 = vadd.f32 %v1099, %v1585
    %v1589 = vxor.u32 %v1588, 2147483648
    %v1590 = vmul.f32 %v1589, 1.442695
    %v1591 = vpow.pop %v1590
    %v1592 = vadd.f32 %v1591, 1.0
    %v1593 = vrcp.pop %v1592
    %v1594 = vmul.f32 1.0, %v1593
    %v1595 = vtanh.pop %v1588
    %1597 = vrot.lane.b32.xlu0 %v1087, 32
    %v1598 = vpop.permute.xlu0 %1597
    %v1600 = vmul.f32 %v1594, %v1598
    %1602 = vrot.lane.b32.xlu0 %v1595, 64
    %v1603 = vpop.permute.xlu0 %1602
    %v1605 = vmul.f32 %v1594, %v1603
    %1607 = vrot.lane.b32.xlu0 %v1605, 32
    %v1608 = vpop.permute.xlu0 %1607
    %v1610 = vadd.f32 %v1600, %v1608
    %v1611 = vtanh.pop %v1610
    %1613 = vrot.lane.b32.xlu0 %v1611, 64
    %v1614 = vpop.permute.xlu0 %1613
    %v1616 = vmul.f32 %v1594, %v1614
    %v1617 = vsel %vm29, 2, 5
    %vm1618 = vcmp.lt.s32.totalorder %v1617, %v26
    %1620 = vrot.lane.b32.xlu0 %v1610, 96
    %v1621 = vpop.permute.xlu0 %1620
    %v1623 = vsel %vm1618, %v1621, %v1087
    %1625 = vrot.lane.b32.xlu0 %v1616, 32
    %v1626 = vpop.permute.xlu0 %1625
    %v1628 = vsel %vm1618, %v1626, %v1092
    %v1629 = vsel %vm1618, %v1626, 0.0
    %s1630 = scalar_lea.vmem %s3, 4
    %1631 = vst.msk [vmem:[%s1630] sm:$0x3] %vm557, %v1629
    %s1632 = scalar_lea.vmem %s3, 10
    %1633 = vst.msk [vmem:[%s1632] sm:$0x3] %vm560, %v1629
    %s1634 = scalar_lea.vmem %s1, 6
    %v1635 = vld [vmem:[%s1634] sm:$0x3]
    %v1637 = vsel %vm31, %v1628, 0
    %1639 = vmatprep.subr.mxu0 0.0
    %1640 = vmatpush1.msra.mxu0 0.0
    %1641 = vmatprep.subr.mxu0 0.0
    %1642 = vmatpush1.msra.mxu0 0.0
    %1643 = vmatprep.subr.mxu0 0.0
    %1644 = vmatpush1.msra.mxu0 0.0
    %1645 = vmatprep.subr.mxu0 0.0
    %1646 = vmatpush1.msra.mxu0 0.0
    %1647 = vmatprep.subr.mxu0 0.0
    %1648 = vmatpush1.msra.mxu0 0.0
    %1649 = vmatprep.subr.mxu0 0.0
    %1650 = vmatpush1.msra.mxu0 0.0
    %1651 = vmatprep.subr.mxu0 0.0
    %1652 = vmatpush1.msra.mxu0 0.0
    %1653 = vmatprep.subr.mxu0 0.0
    %1654 = vmatpush1.msra.mxu0 0.0
    %1655 = vmatprep.subr.mxu0 0.0
    %1656 = vmatpush1.msra.mxu0 0.0
    %1657 = vmatprep.subr.mxu0 0.0
    %1658 = vmatpush1.msra.mxu0 0.0
    %1659 = vmatprep.subr.mxu0 0.0
    %1660 = vmatpush1.msra.mxu0 0.0
    %1661 = vmatprep.subr.mxu0 0.0
    %1662 = vmatpush1.msra.mxu0 0.0
    %1663 = vmatprep.subr.mxu0 0.0
    %v1664 = vand.u32 %v22, 4294901760
    %1665 = vmatpush1.msra.mxu0 %v1664
    %1666 = vmatprep.subr.mxu0 0.0
    %v1667 = vand.u32 %v21, 4294901760
    %1668 = vmatpush1.msra.mxu0 %v1667
    %1669 = vmatprep.subr.mxu0 0.0
    %v1670 = vand.u32 %v20, 4294901760
    %1671 = vmatpush1.msra.mxu0 %v1670
    %1672 = vmatprep.subr.mxu0 0.0
    %v1673 = vand.u32 %v19, 4294901760
    %1674 = vmatpush1.msra.mxu0 %v1673
    %1675 = vmatprep.subr.mxu0 0.0
    %1676 = vmatpush2.msra.mxu0 0.0
    %1677 = vmatprep.subr.mxu0 0.0
    %1678 = vmatpush2.msra.mxu0 0.0
    %1679 = vmatprep.subr.mxu0 0.0
    %1680 = vmatpush2.msra.mxu0 0.0
    %1681 = vmatprep.subr.mxu0 0.0
    %1682 = vmatpush2.msra.mxu0 0.0
    %1683 = vmatprep.subr.mxu0 0.0
    %1684 = vmatpush2.msra.mxu0 0.0
    %1685 = vmatprep.subr.mxu0 0.0
    %1686 = vmatpush2.msra.mxu0 0.0
    %1687 = vmatprep.subr.mxu0 0.0
    %1688 = vmatpush2.msra.mxu0 0.0
    %1689 = vmatprep.subr.mxu0 0.0
    %1690 = vmatpush2.msra.mxu0 0.0
    %1691 = vmatprep.subr.mxu0 0.0
    %1692 = vmatpush2.msra.mxu0 0.0
    %1693 = vmatprep.subr.mxu0 0.0
    %1694 = vmatpush2.msra.mxu0 0.0
    %1695 = vmatprep.subr.mxu0 0.0
    %1696 = vmatpush2.msra.mxu0 0.0
    %1697 = vmatprep.subr.mxu0 0.0
    %1698 = vmatpush2.msra.mxu0 0.0
    %1699 = vmatprep.subr.mxu0 0.0
    %1700 = vmatpush2.msra.mxu0 0.0
    %1701 = vmatprep.subr.mxu0 0.0
    %1702 = vmatpush2.msra.mxu0 0.0
    %1703 = vmatprep.subr.mxu0 0.0
    %1704 = vmatpush2.msra.mxu0 0.0
    %1705 = vmatprep.subr.mxu0 0.0
    %1706 = vmatpush2.msra.mxu0 0.0
    %1707 = vmatprep.mubr.f32.mxu0 0.0
    %v1708 = vand.u32 %v1637, 4294901760
    %v1709 = vsub.f32 %v1637, %v1708
    %v1710 = vand.u32 %v1709, 4294901760
    %v1711 = vsub.f32 %v1709, %v1710
    %v1712 = vand.u32 %v1711, 4294901760
    %1713 = vmatmul.mubr.f32.gmra.mxu0 %v1712
    %v1714 = vpop.f32.mrf.mxu0
    %v1715 = vadd.f32 0.0, %v1714
    %v1716 = vpop.f32.mrf.mxu0
    %1717 = vdwg.mxu0
    %1718 = vmatprep.subr.mxu0 0.0
    %1719 = vmatpush1.msra.mxu0 0.0
    %1720 = vmatprep.subr.mxu0 0.0
    %1721 = vmatpush1.msra.mxu0 0.0
    %1722 = vmatprep.subr.mxu0 0.0
    %1723 = vmatpush1.msra.mxu0 0.0
    %1724 = vmatprep.subr.mxu0 0.0
    %1725 = vmatpush1.msra.mxu0 0.0
    %1726 = vmatprep.subr.mxu0 0.0
    %1727 = vmatpush1.msra.mxu0 0.0
    %1728 = vmatprep.subr.mxu0 0.0
    %1729 = vmatpush1.msra.mxu0 0.0
    %1730 = vmatprep.subr.mxu0 0.0
    %1731 = vmatpush1.msra.mxu0 0.0
    %1732 = vmatprep.subr.mxu0 0.0
    %1733 = vmatpush1.msra.mxu0 0.0
    %1734 = vmatprep.subr.mxu0 0.0
    %1735 = vmatpush1.msra.mxu0 0.0
    %1736 = vmatprep.subr.mxu0 0.0
    %1737 = vmatpush1.msra.mxu0 0.0
    %1738 = vmatprep.subr.mxu0 0.0
    %1739 = vmatpush1.msra.mxu0 0.0
    %1740 = vmatprep.subr.mxu0 0.0
    %1741 = vmatpush1.msra.mxu0 0.0
    %1742 = vmatprep.subr.mxu0 0.0
    %v1743 = vand.u32 %v22, 4294901760
    %v1744 = vsub.f32 %v22, %v1743
    %v1745 = vand.u32 %v1744, 4294901760
    %v1746 = vsub.f32 %v1744, %v1745
    %v1747 = vand.u32 %v1746, 4294901760
    %1748 = vmatpush1.msra.mxu0 %v1747
    %1749 = vmatprep.subr.mxu0 0.0
    %v1750 = vand.u32 %v21, 4294901760
    %v1751 = vsub.f32 %v21, %v1750
    %v1752 = vand.u32 %v1751, 4294901760
    %v1753 = vsub.f32 %v1751, %v1752
    %v1754 = vand.u32 %v1753, 4294901760
    %1755 = vmatpush1.msra.mxu0 %v1754
    %1756 = vmatprep.subr.mxu0 0.0
    %v1757 = vand.u32 %v20, 4294901760
    %v1758 = vsub.f32 %v20, %v1757
    %v1759 = vand.u32 %v1758, 4294901760
    %v1760 = vsub.f32 %v1758, %v1759
    %v1761 = vand.u32 %v1760, 4294901760
    %1762 = vmatpush1.msra.mxu0 %v1761
    %1763 = vmatprep.subr.mxu0 0.0
    %v1764 = vand.u32 %v19, 4294901760
    %v1765 = vsub.f32 %v19, %v1764
    %v1766 = vand.u32 %v1765, 4294901760
    %v1767 = vsub.f32 %v1765, %v1766
    %v1768 = vand.u32 %v1767, 4294901760
    %1769 = vmatpush1.msra.mxu0 %v1768
    %1770 = vmatprep.subr.mxu0 0.0
    %1771 = vmatpush2.msra.mxu0 0.0
    %1772 = vmatprep.subr.mxu0 0.0
    %1773 = vmatpush2.msra.mxu0 0.0
    %1774 = vmatprep.subr.mxu0 0.0
    %1775 = vmatpush2.msra.mxu0 0.0
    %1776 = vmatprep.subr.mxu0 0.0
    %1777 = vmatpush2.msra.mxu0 0.0
    %1778 = vmatprep.subr.mxu0 0.0
    %1779 = vmatpush2.msra.mxu0 0.0
    %1780 = vmatprep.subr.mxu0 0.0
    %1781 = vmatpush2.msra.mxu0 0.0
    %1782 = vmatprep.subr.mxu0 0.0
    %1783 = vmatpush2.msra.mxu0 0.0
    %1784 = vmatprep.subr.mxu0 0.0
    %1785 = vmatpush2.msra.mxu0 0.0
    %1786 = vmatprep.subr.mxu0 0.0
    %1787 = vmatpush2.msra.mxu0 0.0
    %1788 = vmatprep.subr.mxu0 0.0
    %1789 = vmatpush2.msra.mxu0 0.0
    %1790 = vmatprep.subr.mxu0 0.0
    %1791 = vmatpush2.msra.mxu0 0.0
    %1792 = vmatprep.subr.mxu0 0.0
    %1793 = vmatpush2.msra.mxu0 0.0
    %1794 = vmatprep.subr.mxu0 0.0
    %1795 = vmatpush2.msra.mxu0 0.0
    %1796 = vmatprep.subr.mxu0 0.0
    %1797 = vmatpush2.msra.mxu0 0.0
    %1798 = vmatprep.subr.mxu0 0.0
    %1799 = vmatpush2.msra.mxu0 0.0
    %1800 = vmatprep.subr.mxu0 0.0
    %1801 = vmatpush2.msra.mxu0 0.0
    %1802 = vmatprep.mubr.f32.mxu0 0.0
    %v1803 = vand.u32 %v1637, 4294901760
    %1804 = vmatmul.mubr.f32.gmra.mxu0 %v1803
    %v1805 = vpop.f32.mrf.mxu0
    %v1806 = vadd.f32 %v1715, %v1805
    %v1807 = vpop.f32.mrf.mxu0
    %1808 = vdwg.mxu0
    %1809 = vmatprep.subr.mxu0 0.0
    %1810 = vmatpush1.msra.mxu0 0.0
    %1811 = vmatprep.subr.mxu0 0.0
    %1812 = vmatpush1.msra.mxu0 0.0
    %1813 = vmatprep.subr.mxu0 0.0
    %1814 = vmatpush1.msra.mxu0 0.0
    %1815 = vmatprep.subr.mxu0 0.0
    %1816 = vmatpush1.msra.mxu0 0.0
    %1817 = vmatprep.subr.mxu0 0.0
    %1818 = vmatpush1.msra.mxu0 0.0
    %1819 = vmatprep.subr.mxu0 0.0
    %1820 = vmatpush1.msra.mxu0 0.0
    %1821 = vmatprep.subr.mxu0 0.0
    %1822 = vmatpush1.msra.mxu0 0.0
    %1823 = vmatprep.subr.mxu0 0.0
    %1824 = vmatpush1.msra.mxu0 0.0
    %1825 = vmatprep.subr.mxu0 0.0
    %1826 = vmatpush1.msra.mxu0 0.0
    %1827 = vmatprep.subr.mxu0 0.0
    %1828 = vmatpush1.msra.mxu0 0.0
    %1829 = vmatprep.subr.mxu0 0.0
    %1830 = vmatpush1.msra.mxu0 0.0
    %1831 = vmatprep.subr.mxu0 0.0
    %1832 = vmatpush1.msra.mxu0 0.0
    %1833 = vmatprep.subr.mxu0 0.0
    %v1834 = vand.u32 %v22, 4294901760
    %v1835 = vsub.f32 %v22, %v1834
    %1836 = vmatpush1.msra.mxu0 %v1835
    %1837 = vmatprep.subr.mxu0 0.0
    %v1838 = vand.u32 %v21, 4294901760
    %v1839 = vsub.f32 %v21, %v1838
    %1840 = vmatpush1.msra.mxu0 %v1839
    %1841 = vmatprep.subr.mxu0 0.0
    %v1842 = vand.u32 %v20, 4294901760
    %v1843 = vsub.f32 %v20, %v1842
    %1844 = vmatpush1.msra.mxu0 %v1843
    %1845 = vmatprep.subr.mxu0 0.0
    %v1846 = vand.u32 %v19, 4294901760
    %v1847 = vsub.f32 %v19, %v1846
    %1848 = vmatpush1.msra.mxu0 %v1847
    %1849 = vmatprep.subr.mxu0 0.0
    %1850 = vmatpush2.msra.mxu0 0.0
    %1851 = vmatprep.subr.mxu0 0.0
    %1852 = vmatpush2.msra.mxu0 0.0
    %1853 = vmatprep.subr.mxu0 0.0
    %1854 = vmatpush2.msra.mxu0 0.0
    %1855 = vmatprep.subr.mxu0 0.0
    %1856 = vmatpush2.msra.mxu0 0.0
    %1857 = vmatprep.subr.mxu0 0.0
    %1858 = vmatpush2.msra.mxu0 0.0
    %1859 = vmatprep.subr.mxu0 0.0
    %1860 = vmatpush2.msra.mxu0 0.0
    %1861 = vmatprep.subr.mxu0 0.0
    %1862 = vmatpush2.msra.mxu0 0.0
    %1863 = vmatprep.subr.mxu0 0.0
    %1864 = vmatpush2.msra.mxu0 0.0
    %1865 = vmatprep.subr.mxu0 0.0
    %1866 = vmatpush2.msra.mxu0 0.0
    %1867 = vmatprep.subr.mxu0 0.0
    %1868 = vmatpush2.msra.mxu0 0.0
    %1869 = vmatprep.subr.mxu0 0.0
    %1870 = vmatpush2.msra.mxu0 0.0
    %1871 = vmatprep.subr.mxu0 0.0
    %1872 = vmatpush2.msra.mxu0 0.0
    %1873 = vmatprep.subr.mxu0 0.0
    %1874 = vmatpush2.msra.mxu0 0.0
    %1875 = vmatprep.subr.mxu0 0.0
    %1876 = vmatpush2.msra.mxu0 0.0
    %1877 = vmatprep.subr.mxu0 0.0
    %1878 = vmatpush2.msra.mxu0 0.0
    %1879 = vmatprep.subr.mxu0 0.0
    %1880 = vmatpush2.msra.mxu0 0.0
    %1881 = vmatprep.mubr.f32.mxu0 0.0
    %v1882 = vand.u32 %v1637, 4294901760
    %v1883 = vsub.f32 %v1637, %v1882
    %1884 = vmatmul.mubr.f32.gmra.mxu0 %v1883
    %v1885 = vpop.f32.mrf.mxu0
    %v1886 = vadd.f32 %v1806, %v1885
    %v1887 = vpop.f32.mrf.mxu0
    %1888 = vdwg.mxu0
    %1889 = vmatprep.subr.mxu0 0.0
    %1890 = vmatpush1.msra.mxu0 0.0
    %1891 = vmatprep.subr.mxu0 0.0
    %1892 = vmatpush1.msra.mxu0 0.0
    %1893 = vmatprep.subr.mxu0 0.0
    %1894 = vmatpush1.msra.mxu0 0.0
    %1895 = vmatprep.subr.mxu0 0.0
    %1896 = vmatpush1.msra.mxu0 0.0
    %1897 = vmatprep.subr.mxu0 0.0
    %1898 = vmatpush1.msra.mxu0 0.0
    %1899 = vmatprep.subr.mxu0 0.0
    %1900 = vmatpush1.msra.mxu0 0.0
    %1901 = vmatprep.subr.mxu0 0.0
    %1902 = vmatpush1.msra.mxu0 0.0
    %1903 = vmatprep.subr.mxu0 0.0
    %1904 = vmatpush1.msra.mxu0 0.0
    %1905 = vmatprep.subr.mxu0 0.0
    %1906 = vmatpush1.msra.mxu0 0.0
    %1907 = vmatprep.subr.mxu0 0.0
    %1908 = vmatpush1.msra.mxu0 0.0
    %1909 = vmatprep.subr.mxu0 0.0
    %1910 = vmatpush1.msra.mxu0 0.0
    %1911 = vmatprep.subr.mxu0 0.0
    %1912 = vmatpush1.msra.mxu0 0.0
    %1913 = vmatprep.subr.mxu0 0.0
    %v1914 = vand.u32 %v22, 4294901760
    %1915 = vmatpush1.msra.mxu0 %v1914
    %1916 = vmatprep.subr.mxu0 0.0
    %v1917 = vand.u32 %v21, 4294901760
    %1918 = vmatpush1.msra.mxu0 %v1917
    %1919 = vmatprep.subr.mxu0 0.0
    %v1920 = vand.u32 %v20, 4294901760
    %1921 = vmatpush1.msra.mxu0 %v1920
    %1922 = vmatprep.subr.mxu0 0.0
    %v1923 = vand.u32 %v19, 4294901760
    %1924 = vmatpush1.msra.mxu0 %v1923
    %1925 = vmatprep.subr.mxu0 0.0
    %1926 = vmatpush2.msra.mxu0 0.0
    %1927 = vmatprep.subr.mxu0 0.0
    %1928 = vmatpush2.msra.mxu0 0.0
    %1929 = vmatprep.subr.mxu0 0.0
    %1930 = vmatpush2.msra.mxu0 0.0
    %1931 = vmatprep.subr.mxu0 0.0
    %1932 = vmatpush2.msra.mxu0 0.0
    %1933 = vmatprep.subr.mxu0 0.0
    %1934 = vmatpush2.msra.mxu0 0.0
    %1935 = vmatprep.subr.mxu0 0.0
    %1936 = vmatpush2.msra.mxu0 0.0
    %1937 = vmatprep.subr.mxu0 0.0
    %1938 = vmatpush2.msra.mxu0 0.0
    %1939 = vmatprep.subr.mxu0 0.0
    %1940 = vmatpush2.msra.mxu0 0.0
    %1941 = vmatprep.subr.mxu0 0.0
    %1942 = vmatpush2.msra.mxu0 0.0
    %1943 = vmatprep.subr.mxu0 0.0
    %1944 = vmatpush2.msra.mxu0 0.0
    %1945 = vmatprep.subr.mxu0 0.0
    %1946 = vmatpush2.msra.mxu0 0.0
    %1947 = vmatprep.subr.mxu0 0.0
    %1948 = vmatpush2.msra.mxu0 0.0
    %1949 = vmatprep.subr.mxu0 0.0
    %1950 = vmatpush2.msra.mxu0 0.0
    %1951 = vmatprep.subr.mxu0 0.0
    %1952 = vmatpush2.msra.mxu0 0.0
    %1953 = vmatprep.subr.mxu0 0.0
    %1954 = vmatpush2.msra.mxu0 0.0
    %1955 = vmatprep.subr.mxu0 0.0
    %1956 = vmatpush2.msra.mxu0 0.0
    %1957 = vmatprep.mubr.f32.mxu0 0.0
    %v1958 = vand.u32 %v1637, 4294901760
    %v1959 = vsub.f32 %v1637, %v1958
    %v1960 = vand.u32 %v1959, 4294901760
    %1961 = vmatmul.mubr.f32.gmra.mxu0 %v1960
    %v1962 = vpop.f32.mrf.mxu0
    %v1963 = vadd.f32 %v1886, %v1962
    %v1964 = vpop.f32.mrf.mxu0
    %1965 = vdwg.mxu0
    %1966 = vmatprep.subr.mxu0 0.0
    %1967 = vmatpush1.msra.mxu0 0.0
    %1968 = vmatprep.subr.mxu0 0.0
    %1969 = vmatpush1.msra.mxu0 0.0
    %1970 = vmatprep.subr.mxu0 0.0
    %1971 = vmatpush1.msra.mxu0 0.0
    %1972 = vmatprep.subr.mxu0 0.0
    %1973 = vmatpush1.msra.mxu0 0.0
    %1974 = vmatprep.subr.mxu0 0.0
    %1975 = vmatpush1.msra.mxu0 0.0
    %1976 = vmatprep.subr.mxu0 0.0
    %1977 = vmatpush1.msra.mxu0 0.0
    %1978 = vmatprep.subr.mxu0 0.0
    %1979 = vmatpush1.msra.mxu0 0.0
    %1980 = vmatprep.subr.mxu0 0.0
    %1981 = vmatpush1.msra.mxu0 0.0
    %1982 = vmatprep.subr.mxu0 0.0
    %1983 = vmatpush1.msra.mxu0 0.0
    %1984 = vmatprep.subr.mxu0 0.0
    %1985 = vmatpush1.msra.mxu0 0.0
    %1986 = vmatprep.subr.mxu0 0.0
    %1987 = vmatpush1.msra.mxu0 0.0
    %1988 = vmatprep.subr.mxu0 0.0
    %1989 = vmatpush1.msra.mxu0 0.0
    %1990 = vmatprep.subr.mxu0 0.0
    %v1991 = vand.u32 %v22, 4294901760
    %v1992 = vsub.f32 %v22, %v1991
    %v1993 = vand.u32 %v1992, 4294901760
    %1994 = vmatpush1.msra.mxu0 %v1993
    %1995 = vmatprep.subr.mxu0 0.0
    %v1996 = vand.u32 %v21, 4294901760
    %v1997 = vsub.f32 %v21, %v1996
    %v1998 = vand.u32 %v1997, 4294901760
    %1999 = vmatpush1.msra.mxu0 %v1998
    %2000 = vmatprep.subr.mxu0 0.0
    %v2001 = vand.u32 %v20, 4294901760
    %v2002 = vsub.f32 %v20, %v2001
    %v2003 = vand.u32 %v2002, 4294901760
    %2004 = vmatpush1.msra.mxu0 %v2003
    %2005 = vmatprep.subr.mxu0 0.0
    %v2006 = vand.u32 %v19, 4294901760
    %v2007 = vsub.f32 %v19, %v2006
    %v2008 = vand.u32 %v2007, 4294901760
    %2009 = vmatpush1.msra.mxu0 %v2008
    %2010 = vmatprep.subr.mxu0 0.0
    %2011 = vmatpush2.msra.mxu0 0.0
    %2012 = vmatprep.subr.mxu0 0.0
    %2013 = vmatpush2.msra.mxu0 0.0
    %2014 = vmatprep.subr.mxu0 0.0
    %2015 = vmatpush2.msra.mxu0 0.0
    %2016 = vmatprep.subr.mxu0 0.0
    %2017 = vmatpush2.msra.mxu0 0.0
    %2018 = vmatprep.subr.mxu0 0.0
    %2019 = vmatpush2.msra.mxu0 0.0
    %2020 = vmatprep.subr.mxu0 0.0
    %2021 = vmatpush2.msra.mxu0 0.0
    %2022 = vmatprep.subr.mxu0 0.0
    %2023 = vmatpush2.msra.mxu0 0.0
    %2024 = vmatprep.subr.mxu0 0.0
    %2025 = vmatpush2.msra.mxu0 0.0
    %2026 = vmatprep.subr.mxu0 0.0
    %2027 = vmatpush2.msra.mxu0 0.0
    %2028 = vmatprep.subr.mxu0 0.0
    %2029 = vmatpush2.msra.mxu0 0.0
    %2030 = vmatprep.subr.mxu0 0.0
    %2031 = vmatpush2.msra.mxu0 0.0
    %2032 = vmatprep.subr.mxu0 0.0
    %2033 = vmatpush2.msra.mxu0 0.0
    %2034 = vmatprep.subr.mxu0 0.0
    %2035 = vmatpush2.msra.mxu0 0.0
    %2036 = vmatprep.subr.mxu0 0.0
    %2037 = vmatpush2.msra.mxu0 0.0
    %2038 = vmatprep.subr.mxu0 0.0
    %2039 = vmatpush2.msra.mxu0 0.0
    %2040 = vmatprep.subr.mxu0 0.0
    %2041 = vmatpush2.msra.mxu0 0.0
    %2042 = vmatprep.mubr.f32.mxu0 0.0
    %v2043 = vand.u32 %v1637, 4294901760
    %2044 = vmatmul.mubr.f32.gmra.mxu0 %v2043
    %v2045 = vpop.f32.mrf.mxu0
    %v2046 = vadd.f32 %v1963, %v2045
    %v2047 = vpop.f32.mrf.mxu0
    %2048 = vdwg.mxu0
    %2049 = vmatprep.subr.mxu0 0.0
    %2050 = vmatpush1.msra.mxu0 0.0
    %2051 = vmatprep.subr.mxu0 0.0
    %2052 = vmatpush1.msra.mxu0 0.0
    %2053 = vmatprep.subr.mxu0 0.0
    %2054 = vmatpush1.msra.mxu0 0.0
    %2055 = vmatprep.subr.mxu0 0.0
    %2056 = vmatpush1.msra.mxu0 0.0
    %2057 = vmatprep.subr.mxu0 0.0
    %2058 = vmatpush1.msra.mxu0 0.0
    %2059 = vmatprep.subr.mxu0 0.0
    %2060 = vmatpush1.msra.mxu0 0.0
    %2061 = vmatprep.subr.mxu0 0.0
    %2062 = vmatpush1.msra.mxu0 0.0
    %2063 = vmatprep.subr.mxu0 0.0
    %2064 = vmatpush1.msra.mxu0 0.0
    %2065 = vmatprep.subr.mxu0 0.0
    %2066 = vmatpush1.msra.mxu0 0.0
    %2067 = vmatprep.subr.mxu0 0.0
    %2068 = vmatpush1.msra.mxu0 0.0
    %2069 = vmatprep.subr.mxu0 0.0
    %2070 = vmatpush1.msra.mxu0 0.0
    %2071 = vmatprep.subr.mxu0 0.0
    %2072 = vmatpush1.msra.mxu0 0.0
    %2073 = vmatprep.subr.mxu0 0.0
    %v2074 = vand.u32 %v22, 4294901760
    %2075 = vmatpush1.msra.mxu0 %v2074
    %2076 = vmatprep.subr.mxu0 0.0
    %v2077 = vand.u32 %v21, 4294901760
    %2078 = vmatpush1.msra.mxu0 %v2077
    %2079 = vmatprep.subr.mxu0 0.0
    %v2080 = vand.u32 %v20, 4294901760
    %2081 = vmatpush1.msra.mxu0 %v2080
    %2082 = vmatprep.subr.mxu0 0.0
    %v2083 = vand.u32 %v19, 4294901760
    %2084 = vmatpush1.msra.mxu0 %v2083
    %2085 = vmatprep.subr.mxu0 0.0
    %2086 = vmatpush2.msra.mxu0 0.0
    %2087 = vmatprep.subr.mxu0 0.0
    %2088 = vmatpush2.msra.mxu0 0.0
    %2089 = vmatprep.subr.mxu0 0.0
    %2090 = vmatpush2.msra.mxu0 0.0
    %2091 = vmatprep.subr.mxu0 0.0
    %2092 = vmatpush2.msra.mxu0 0.0
    %2093 = vmatprep.subr.mxu0 0.0
    %2094 = vmatpush2.msra.mxu0 0.0
    %2095 = vmatprep.subr.mxu0 0.0
    %2096 = vmatpush2.msra.mxu0 0.0
    %2097 = vmatprep.subr.mxu0 0.0
    %2098 = vmatpush2.msra.mxu0 0.0
    %2099 = vmatprep.subr.mxu0 0.0
    %2100 = vmatpush2.msra.mxu0 0.0
    %2101 = vmatprep.subr.mxu0 0.0
    %2102 = vmatpush2.msra.mxu0 0.0
    %2103 = vmatprep.subr.mxu0 0.0
    %2104 = vmatpush2.msra.mxu0 0.0
    %2105 = vmatprep.subr.mxu0 0.0
    %2106 = vmatpush2.msra.mxu0 0.0
    %2107 = vmatprep.subr.mxu0 0.0
    %2108 = vmatpush2.msra.mxu0 0.0
    %2109 = vmatprep.subr.mxu0 0.0
    %2110 = vmatpush2.msra.mxu0 0.0
    %2111 = vmatprep.subr.mxu0 0.0
    %2112 = vmatpush2.msra.mxu0 0.0
    %2113 = vmatprep.subr.mxu0 0.0
    %2114 = vmatpush2.msra.mxu0 0.0
    %2115 = vmatprep.subr.mxu0 0.0
    %2116 = vmatpush2.msra.mxu0 0.0
    %2117 = vmatprep.mubr.f32.mxu0 0.0
    %v2118 = vand.u32 %v1637, 4294901760
    %2119 = vmatmul.mubr.f32.gmra.mxu0 %v2118
    %v2120 = vpop.f32.mrf.mxu0
    %v2121 = vadd.f32 %v2046, %v2120
    %v2122 = vpop.f32.mrf.mxu0
    %2123 = vdwg.mxu0
    %v2124 = vadd.f32 %v1635, %v2121
    %v2125 = vxor.u32 %v2124, 2147483648
    %v2126 = vmul.f32 %v2125, 1.442695
    %v2127 = vpow.pop %v2126
    %v2128 = vadd.f32 %v2127, 1.0
    %v2129 = vrcp.pop %v2128
    %v2130 = vmul.f32 1.0, %v2129
    %v2131 = vtanh.pop %v2124
    %2133 = vrot.lane.b32.xlu0 %v1623, 32
    %v2134 = vpop.permute.xlu0 %2133
    %v2136 = vmul.f32 %v2130, %v2134
    %2138 = vrot.lane.b32.xlu0 %v2131, 64
    %v2139 = vpop.permute.xlu0 %2138
    %v2141 = vmul.f32 %v2130, %v2139
    %2143 = vrot.lane.b32.xlu0 %v2141, 32
    %v2144 = vpop.permute.xlu0 %2143
    %v2146 = vadd.f32 %v2136, %v2144
    %v2147 = vtanh.pop %v2146
    %2149 = vrot.lane.b32.xlu0 %v2147, 64
    %v2150 = vpop.permute.xlu0 %2149
    %v2152 = vmul.f32 %v2130, %v2150
    %v2153 = vsel %vm29, 3, 4
    %vm2154 = vcmp.lt.s32.totalorder %v2153, %v26
    %2156 = vrot.lane.b32.xlu0 %v2146, 96
    %v2157 = vpop.permute.xlu0 %2156
    %v2159 = vsel %vm2154, %v2157, %v1623
    %2161 = vrot.lane.b32.xlu0 %v2152, 32
    %v2162 = vpop.permute.xlu0 %2161
    %v2164 = vsel %vm2154, %v2162, %v1628
    %v2165 = vsel %vm2154, %v2162, 0.0
    %s2166 = scalar_lea.vmem %s3, 6
    %2167 = vst.msk [vmem:[%s2166] sm:$0x3] %vm557, %v2165
    %s2168 = scalar_lea.vmem %s3, 8
    %2169 = vst.msk [vmem:[%s2168] sm:$0x3] %vm560, %v2165
    %s2170 = scalar_lea.vmem %s1, 8
    %v2171 = vld [vmem:[%s2170] sm:$0x3]
    %v2173 = vsel %vm31, %v2164, 0
    %2175 = vmatprep.subr.mxu0 0.0
    %2176 = vmatpush1.msra.mxu0 0.0
    %2177 = vmatprep.subr.mxu0 0.0
    %2178 = vmatpush1.msra.mxu0 0.0
    %2179 = vmatprep.subr.mxu0 0.0
    %2180 = vmatpush1.msra.mxu0 0.0
    %2181 = vmatprep.subr.mxu0 0.0
    %2182 = vmatpush1.msra.mxu0 0.0
    %2183 = vmatprep.subr.mxu0 0.0
    %2184 = vmatpush1.msra.mxu0 0.0
    %2185 = vmatprep.subr.mxu0 0.0
    %2186 = vmatpush1.msra.mxu0 0.0
    %2187 = vmatprep.subr.mxu0 0.0
    %2188 = vmatpush1.msra.mxu0 0.0
    %2189 = vmatprep.subr.mxu0 0.0
    %2190 = vmatpush1.msra.mxu0 0.0
    %2191 = vmatprep.subr.mxu0 0.0
    %2192 = vmatpush1.msra.mxu0 0.0
    %2193 = vmatprep.subr.mxu0 0.0
    %2194 = vmatpush1.msra.mxu0 0.0
    %2195 = vmatprep.subr.mxu0 0.0
    %2196 = vmatpush1.msra.mxu0 0.0
    %2197 = vmatprep.subr.mxu0 0.0
    %2198 = vmatpush1.msra.mxu0 0.0
    %2199 = vmatprep.subr.mxu0 0.0
    %v2200 = vand.u32 %v22, 4294901760
    %2201 = vmatpush1.msra.mxu0 %v2200
    %2202 = vmatprep.subr.mxu0 0.0
    %v2203 = vand.u32 %v21, 4294901760
    %2204 = vmatpush1.msra.mxu0 %v2203
    %2205 = vmatprep.subr.mxu0 0.0
    %v2206 = vand.u32 %v20, 4294901760
    %2207 = vmatpush1.msra.mxu0 %v2206
    %2208 = vmatprep.subr.mxu0 0.0
    %v2209 = vand.u32 %v19, 4294901760
    %2210 = vmatpush1.msra.mxu0 %v2209
    %2211 = vmatprep.subr.mxu0 0.0
    %2212 = vmatpush2.msra.mxu0 0.0
    %2213 = vmatprep.subr.mxu0 0.0
    %2214 = vmatpush2.msra.mxu0 0.0
    %2215 = vmatprep.subr.mxu0 0.0
    %2216 = vmatpush2.msra.mxu0 0.0
    %2217 = vmatprep.subr.mxu0 0.0
    %2218 = vmatpush2.msra.mxu0 0.0
    %2219 = vmatprep.subr.mxu0 0.0
    %2220 = vmatpush2.msra.mxu0 0.0
    %2221 = vmatprep.subr.mxu0 0.0
    %2222 = vmatpush2.msra.mxu0 0.0
    %2223 = vmatprep.subr.mxu0 0.0
    %2224 = vmatpush2.msra.mxu0 0.0
    %2225 = vmatprep.subr.mxu0 0.0
    %2226 = vmatpush2.msra.mxu0 0.0
    %2227 = vmatprep.subr.mxu0 0.0
    %2228 = vmatpush2.msra.mxu0 0.0
    %2229 = vmatprep.subr.mxu0 0.0
    %2230 = vmatpush2.msra.mxu0 0.0
    %2231 = vmatprep.subr.mxu0 0.0
    %2232 = vmatpush2.msra.mxu0 0.0
    %2233 = vmatprep.subr.mxu0 0.0
    %2234 = vmatpush2.msra.mxu0 0.0
    %2235 = vmatprep.subr.mxu0 0.0
    %2236 = vmatpush2.msra.mxu0 0.0
    %2237 = vmatprep.subr.mxu0 0.0
    %2238 = vmatpush2.msra.mxu0 0.0
    %2239 = vmatprep.subr.mxu0 0.0
    %2240 = vmatpush2.msra.mxu0 0.0
    %2241 = vmatprep.subr.mxu0 0.0
    %2242 = vmatpush2.msra.mxu0 0.0
    %2243 = vmatprep.mubr.f32.mxu0 0.0
    %v2244 = vand.u32 %v2173, 4294901760
    %v2245 = vsub.f32 %v2173, %v2244
    %v2246 = vand.u32 %v2245, 4294901760
    %v2247 = vsub.f32 %v2245, %v2246
    %v2248 = vand.u32 %v2247, 4294901760
    %2249 = vmatmul.mubr.f32.gmra.mxu0 %v2248
    %v2250 = vpop.f32.mrf.mxu0
    %v2251 = vadd.f32 0.0, %v2250
    %v2252 = vpop.f32.mrf.mxu0
    %2253 = vdwg.mxu0
    %2254 = vmatprep.subr.mxu0 0.0
    %2255 = vmatpush1.msra.mxu0 0.0
    %2256 = vmatprep.subr.mxu0 0.0
    %2257 = vmatpush1.msra.mxu0 0.0
    %2258 = vmatprep.subr.mxu0 0.0
    %2259 = vmatpush1.msra.mxu0 0.0
    %2260 = vmatprep.subr.mxu0 0.0
    %2261 = vmatpush1.msra.mxu0 0.0
    %2262 = vmatprep.subr.mxu0 0.0
    %2263 = vmatpush1.msra.mxu0 0.0
    %2264 = vmatprep.subr.mxu0 0.0
    %2265 = vmatpush1.msra.mxu0 0.0
    %2266 = vmatprep.subr.mxu0 0.0
    %2267 = vmatpush1.msra.mxu0 0.0
    %2268 = vmatprep.subr.mxu0 0.0
    %2269 = vmatpush1.msra.mxu0 0.0
    %2270 = vmatprep.subr.mxu0 0.0
    %2271 = vmatpush1.msra.mxu0 0.0
    %2272 = vmatprep.subr.mxu0 0.0
    %2273 = vmatpush1.msra.mxu0 0.0
    %2274 = vmatprep.subr.mxu0 0.0
    %2275 = vmatpush1.msra.mxu0 0.0
    %2276 = vmatprep.subr.mxu0 0.0
    %2277 = vmatpush1.msra.mxu0 0.0
    %2278 = vmatprep.subr.mxu0 0.0
    %v2279 = vand.u32 %v22, 4294901760
    %v2280 = vsub.f32 %v22, %v2279
    %v2281 = vand.u32 %v2280, 4294901760
    %v2282 = vsub.f32 %v2280, %v2281
    %v2283 = vand.u32 %v2282, 4294901760
    %2284 = vmatpush1.msra.mxu0 %v2283
    %2285 = vmatprep.subr.mxu0 0.0
    %v2286 = vand.u32 %v21, 4294901760
    %v2287 = vsub.f32 %v21, %v2286
    %v2288 = vand.u32 %v2287, 4294901760
    %v2289 = vsub.f32 %v2287, %v2288
    %v2290 = vand.u32 %v2289, 4294901760
    %2291 = vmatpush1.msra.mxu0 %v2290
    %2292 = vmatprep.subr.mxu0 0.0
    %v2293 = vand.u32 %v20, 4294901760
    %v2294 = vsub.f32 %v20, %v2293
    %v2295 = vand.u32 %v2294, 4294901760
    %v2296 = vsub.f32 %v2294, %v2295
    %v2297 = vand.u32 %v2296, 4294901760
    %2298 = vmatpush1.msra.mxu0 %v2297
    %2299 = vmatprep.subr.mxu0 0.0
    %v2300 = vand.u32 %v19, 4294901760
    %v2301 = vsub.f32 %v19, %v2300
    %v2302 = vand.u32 %v2301, 4294901760
    %v2303 = vsub.f32 %v2301, %v2302
    %v2304 = vand.u32 %v2303, 4294901760
    %2305 = vmatpush1.msra.mxu0 %v2304
    %2306 = vmatprep.subr.mxu0 0.0
    %2307 = vmatpush2.msra.mxu0 0.0
    %2308 = vmatprep.subr.mxu0 0.0
    %2309 = vmatpush2.msra.mxu0 0.0
    %2310 = vmatprep.subr.mxu0 0.0
    %2311 = vmatpush2.msra.mxu0 0.0
    %2312 = vmatprep.subr.mxu0 0.0
    %2313 = vmatpush2.msra.mxu0 0.0
    %2314 = vmatprep.subr.mxu0 0.0
    %2315 = vmatpush2.msra.mxu0 0.0
    %2316 = vmatprep.subr.mxu0 0.0
    %2317 = vmatpush2.msra.mxu0 0.0
    %2318 = vmatprep.subr.mxu0 0.0
    %2319 = vmatpush2.msra.mxu0 0.0
    %2320 = vmatprep.subr.mxu0 0.0
    %2321 = vmatpush2.msra.mxu0 0.0
    %2322 = vmatprep.subr.mxu0 0.0
    %2323 = vmatpush2.msra.mxu0 0.0
    %2324 = vmatprep.subr.mxu0 0.0
    %2325 = vmatpush2.msra.mxu0 0.0
    %2326 = vmatprep.subr.mxu0 0.0
    %2327 = vmatpush2.msra.mxu0 0.0
    %2328 = vmatprep.subr.mxu0 0.0
    %2329 = vmatpush2.msra.mxu0 0.0
    %2330 = vmatprep.subr.mxu0 0.0
    %2331 = vmatpush2.msra.mxu0 0.0
    %2332 = vmatprep.subr.mxu0 0.0
    %2333 = vmatpush2.msra.mxu0 0.0
    %2334 = vmatprep.subr.mxu0 0.0
    %2335 = vmatpush2.msra.mxu0 0.0
    %2336 = vmatprep.subr.mxu0 0.0
    %2337 = vmatpush2.msra.mxu0 0.0
    %2338 = vmatprep.mubr.f32.mxu0 0.0
    %v2339 = vand.u32 %v2173, 4294901760
    %2340 = vmatmul.mubr.f32.gmra.mxu0 %v2339
    %v2341 = vpop.f32.mrf.mxu0
    %v2342 = vadd.f32 %v2251, %v2341
    %v2343 = vpop.f32.mrf.mxu0
    %2344 = vdwg.mxu0
    %2345 = vmatprep.subr.mxu0 0.0
    %2346 = vmatpush1.msra.mxu0 0.0
    %2347 = vmatprep.subr.mxu0 0.0
    %2348 = vmatpush1.msra.mxu0 0.0
    %2349 = vmatprep.subr.mxu0 0.0
    %2350 = vmatpush1.msra.mxu0 0.0
    %2351 = vmatprep.subr.mxu0 0.0
    %2352 = vmatpush1.msra.mxu0 0.0
    %2353 = vmatprep.subr.mxu0 0.0
    %2354 = vmatpush1.msra.mxu0 0.0
    %2355 = vmatprep.subr.mxu0 0.0
    %2356 = vmatpush1.msra.mxu0 0.0
    %2357 = vmatprep.subr.mxu0 0.0
    %2358 = vmatpush1.msra.mxu0 0.0
    %2359 = vmatprep.subr.mxu0 0.0
    %2360 = vmatpush1.msra.mxu0 0.0
    %2361 = vmatprep.subr.mxu0 0.0
    %2362 = vmatpush1.msra.mxu0 0.0
    %2363 = vmatprep.subr.mxu0 0.0
    %2364 = vmatpush1.msra.mxu0 0.0
    %2365 = vmatprep.subr.mxu0 0.0
    %2366 = vmatpush1.msra.mxu0 0.0
    %2367 = vmatprep.subr.mxu0 0.0
    %2368 = vmatpush1.msra.mxu0 0.0
    %2369 = vmatprep.subr.mxu0 0.0
    %v2370 = vand.u32 %v22, 4294901760
    %v2371 = vsub.f32 %v22, %v2370
    %2372 = vmatpush1.msra.mxu0 %v2371
    %2373 = vmatprep.subr.mxu0 0.0
    %v2374 = vand.u32 %v21, 4294901760
    %v2375 = vsub.f32 %v21, %v2374
    %2376 = vmatpush1.msra.mxu0 %v2375
    %2377 = vmatprep.subr.mxu0 0.0
    %v2378 = vand.u32 %v20, 4294901760
    %v2379 = vsub.f32 %v20, %v2378
    %2380 = vmatpush1.msra.mxu0 %v2379
    %2381 = vmatprep.subr.mxu0 0.0
    %v2382 = vand.u32 %v19, 4294901760
    %v2383 = vsub.f32 %v19, %v2382
    %2384 = vmatpush1.msra.mxu0 %v2383
    %2385 = vmatprep.subr.mxu0 0.0
    %2386 = vmatpush2.msra.mxu0 0.0
    %2387 = vmatprep.subr.mxu0 0.0
    %2388 = vmatpush2.msra.mxu0 0.0
    %2389 = vmatprep.subr.mxu0 0.0
    %2390 = vmatpush2.msra.mxu0 0.0
    %2391 = vmatprep.subr.mxu0 0.0
    %2392 = vmatpush2.msra.mxu0 0.0
    %2393 = vmatprep.subr.mxu0 0.0
    %2394 = vmatpush2.msra.mxu0 0.0
    %2395 = vmatprep.subr.mxu0 0.0
    %2396 = vmatpush2.msra.mxu0 0.0
    %2397 = vmatprep.subr.mxu0 0.0
    %2398 = vmatpush2.msra.mxu0 0.0
    %2399 = vmatprep.subr.mxu0 0.0
    %2400 = vmatpush2.msra.mxu0 0.0
    %2401 = vmatprep.subr.mxu0 0.0
    %2402 = vmatpush2.msra.mxu0 0.0
    %2403 = vmatprep.subr.mxu0 0.0
    %2404 = vmatpush2.msra.mxu0 0.0
    %2405 = vmatprep.subr.mxu0 0.0
    %2406 = vmatpush2.msra.mxu0 0.0
    %2407 = vmatprep.subr.mxu0 0.0
    %2408 = vmatpush2.msra.mxu0 0.0
    %2409 = vmatprep.subr.mxu0 0.0
    %2410 = vmatpush2.msra.mxu0 0.0
    %2411 = vmatprep.subr.mxu0 0.0
    %2412 = vmatpush2.msra.mxu0 0.0
    %2413 = vmatprep.subr.mxu0 0.0
    %2414 = vmatpush2.msra.mxu0 0.0
    %2415 = vmatprep.subr.mxu0 0.0
    %2416 = vmatpush2.msra.mxu0 0.0
    %2417 = vmatprep.mubr.f32.mxu0 0.0
    %v2418 = vand.u32 %v2173, 4294901760
    %v2419 = vsub.f32 %v2173, %v2418
    %2420 = vmatmul.mubr.f32.gmra.mxu0 %v2419
    %v2421 = vpop.f32.mrf.mxu0
    %v2422 = vadd.f32 %v2342, %v2421
    %v2423 = vpop.f32.mrf.mxu0
    %2424 = vdwg.mxu0
    %2425 = vmatprep.subr.mxu0 0.0
    %2426 = vmatpush1.msra.mxu0 0.0
    %2427 = vmatprep.subr.mxu0 0.0
    %2428 = vmatpush1.msra.mxu0 0.0
    %2429 = vmatprep.subr.mxu0 0.0
    %2430 = vmatpush1.msra.mxu0 0.0
    %2431 = vmatprep.subr.mxu0 0.0
    %2432 = vmatpush1.msra.mxu0 0.0
    %2433 = vmatprep.subr.mxu0 0.0
    %2434 = vmatpush1.msra.mxu0 0.0
    %2435 = vmatprep.subr.mxu0 0.0
    %2436 = vmatpush1.msra.mxu0 0.0
    %2437 = vmatprep.subr.mxu0 0.0
    %2438 = vmatpush1.msra.mxu0 0.0
    %2439 = vmatprep.subr.mxu0 0.0
    %2440 = vmatpush1.msra.mxu0 0.0
    %2441 = vmatprep.subr.mxu0 0.0
    %2442 = vmatpush1.msra.mxu0 0.0
    %2443 = vmatprep.subr.mxu0 0.0
    %2444 = vmatpush1.msra.mxu0 0.0
    %2445 = vmatprep.subr.mxu0 0.0
    %2446 = vmatpush1.msra.mxu0 0.0
    %2447 = vmatprep.subr.mxu0 0.0
    %2448 = vmatpush1.msra.mxu0 0.0
    %2449 = vmatprep.subr.mxu0 0.0
    %v2450 = vand.u32 %v22, 4294901760
    %2451 = vmatpush1.msra.mxu0 %v2450
    %2452 = vmatprep.subr.mxu0 0.0
    %v2453 = vand.u32 %v21, 4294901760
    %2454 = vmatpush1.msra.mxu0 %v2453
    %2455 = vmatprep.subr.mxu0 0.0
    %v2456 = vand.u32 %v20, 4294901760
    %2457 = vmatpush1.msra.mxu0 %v2456
    %2458 = vmatprep.subr.mxu0 0.0
    %v2459 = vand.u32 %v19, 4294901760
    %2460 = vmatpush1.msra.mxu0 %v2459
    %2461 = vmatprep.subr.mxu0 0.0
    %2462 = vmatpush2.msra.mxu0 0.0
    %2463 = vmatprep.subr.mxu0 0.0
    %2464 = vmatpush2.msra.mxu0 0.0
    %2465 = vmatprep.subr.mxu0 0.0
    %2466 = vmatpush2.msra.mxu0 0.0
    %2467 = vmatprep.subr.mxu0 0.0
    %2468 = vmatpush2.msra.mxu0 0.0
    %2469 = vmatprep.subr.mxu0 0.0
    %2470 = vmatpush2.msra.mxu0 0.0
    %2471 = vmatprep.subr.mxu0 0.0
    %2472 = vmatpush2.msra.mxu0 0.0
    %2473 = vmatprep.subr.mxu0 0.0
    %2474 = vmatpush2.msra.mxu0 0.0
    %2475 = vmatprep.subr.mxu0 0.0
    %2476 = vmatpush2.msra.mxu0 0.0
    %2477 = vmatprep.subr.mxu0 0.0
    %2478 = vmatpush2.msra.mxu0 0.0
    %2479 = vmatprep.subr.mxu0 0.0
    %2480 = vmatpush2.msra.mxu0 0.0
    %2481 = vmatprep.subr.mxu0 0.0
    %2482 = vmatpush2.msra.mxu0 0.0
    %2483 = vmatprep.subr.mxu0 0.0
    %2484 = vmatpush2.msra.mxu0 0.0
    %2485 = vmatprep.subr.mxu0 0.0
    %2486 = vmatpush2.msra.mxu0 0.0
    %2487 = vmatprep.subr.mxu0 0.0
    %2488 = vmatpush2.msra.mxu0 0.0
    %2489 = vmatprep.subr.mxu0 0.0
    %2490 = vmatpush2.msra.mxu0 0.0
    %2491 = vmatprep.subr.mxu0 0.0
    %2492 = vmatpush2.msra.mxu0 0.0
    %2493 = vmatprep.mubr.f32.mxu0 0.0
    %v2494 = vand.u32 %v2173, 4294901760
    %v2495 = vsub.f32 %v2173, %v2494
    %v2496 = vand.u32 %v2495, 4294901760
    %2497 = vmatmul.mubr.f32.gmra.mxu0 %v2496
    %v2498 = vpop.f32.mrf.mxu0
    %v2499 = vadd.f32 %v2422, %v2498
    %v2500 = vpop.f32.mrf.mxu0
    %2501 = vdwg.mxu0
    %2502 = vmatprep.subr.mxu0 0.0
    %2503 = vmatpush1.msra.mxu0 0.0
    %2504 = vmatprep.subr.mxu0 0.0
    %2505 = vmatpush1.msra.mxu0 0.0
    %2506 = vmatprep.subr.mxu0 0.0
    %2507 = vmatpush1.msra.mxu0 0.0
    %2508 = vmatprep.subr.mxu0 0.0
    %2509 = vmatpush1.msra.mxu0 0.0
    %2510 = vmatprep.subr.mxu0 0.0
    %2511 = vmatpush1.msra.mxu0 0.0
    %2512 = vmatprep.subr.mxu0 0.0
    %2513 = vmatpush1.msra.mxu0 0.0
    %2514 = vmatprep.subr.mxu0 0.0
    %2515 = vmatpush1.msra.mxu0 0.0
    %2516 = vmatprep.subr.mxu0 0.0
    %2517 = vmatpush1.msra.mxu0 0.0
    %2518 = vmatprep.subr.mxu0 0.0
    %2519 = vmatpush1.msra.mxu0 0.0
    %2520 = vmatprep.subr.mxu0 0.0
    %2521 = vmatpush1.msra.mxu0 0.0
    %2522 = vmatprep.subr.mxu0 0.0
    %2523 = vmatpush1.msra.mxu0 0.0
    %2524 = vmatprep.subr.mxu0 0.0
    %2525 = vmatpush1.msra.mxu0 0.0
    %2526 = vmatprep.subr.mxu0 0.0
    %v2527 = vand.u32 %v22, 4294901760
    %v2528 = vsub.f32 %v22, %v2527
    %v2529 = vand.u32 %v2528, 4294901760
    %2530 = vmatpush1.msra.mxu0 %v2529
    %2531 = vmatprep.subr.mxu0 0.0
    %v2532 = vand.u32 %v21, 4294901760
    %v2533 = vsub.f32 %v21, %v2532
    %v2534 = vand.u32 %v2533, 4294901760
    %2535 = vmatpush1.msra.mxu0 %v2534
    %2536 = vmatprep.subr.mxu0 0.0
    %v2537 = vand.u32 %v20, 4294901760
    %v2538 = vsub.f32 %v20, %v2537
    %v2539 = vand.u32 %v2538, 4294901760
    %2540 = vmatpush1.msra.mxu0 %v2539
    %2541 = vmatprep.subr.mxu0 0.0
    %v2542 = vand.u32 %v19, 4294901760
    %v2543 = vsub.f32 %v19, %v2542
    %v2544 = vand.u32 %v2543, 4294901760
    %2545 = vmatpush1.msra.mxu0 %v2544
    %2546 = vmatprep.subr.mxu0 0.0
    %2547 = vmatpush2.msra.mxu0 0.0
    %2548 = vmatprep.subr.mxu0 0.0
    %2549 = vmatpush2.msra.mxu0 0.0
    %2550 = vmatprep.subr.mxu0 0.0
    %2551 = vmatpush2.msra.mxu0 0.0
    %2552 = vmatprep.subr.mxu0 0.0
    %2553 = vmatpush2.msra.mxu0 0.0
    %2554 = vmatprep.subr.mxu0 0.0
    %2555 = vmatpush2.msra.mxu0 0.0
    %2556 = vmatprep.subr.mxu0 0.0
    %2557 = vmatpush2.msra.mxu0 0.0
    %2558 = vmatprep.subr.mxu0 0.0
    %2559 = vmatpush2.msra.mxu0 0.0
    %2560 = vmatprep.subr.mxu0 0.0
    %2561 = vmatpush2.msra.mxu0 0.0
    %2562 = vmatprep.subr.mxu0 0.0
    %2563 = vmatpush2.msra.mxu0 0.0
    %2564 = vmatprep.subr.mxu0 0.0
    %2565 = vmatpush2.msra.mxu0 0.0
    %2566 = vmatprep.subr.mxu0 0.0
    %2567 = vmatpush2.msra.mxu0 0.0
    %2568 = vmatprep.subr.mxu0 0.0
    %2569 = vmatpush2.msra.mxu0 0.0
    %2570 = vmatprep.subr.mxu0 0.0
    %2571 = vmatpush2.msra.mxu0 0.0
    %2572 = vmatprep.subr.mxu0 0.0
    %2573 = vmatpush2.msra.mxu0 0.0
    %2574 = vmatprep.subr.mxu0 0.0
    %2575 = vmatpush2.msra.mxu0 0.0
    %2576 = vmatprep.subr.mxu0 0.0
    %2577 = vmatpush2.msra.mxu0 0.0
    %2578 = vmatprep.mubr.f32.mxu0 0.0
    %v2579 = vand.u32 %v2173, 4294901760
    %2580 = vmatmul.mubr.f32.gmra.mxu0 %v2579
    %v2581 = vpop.f32.mrf.mxu0
    %v2582 = vadd.f32 %v2499, %v2581
    %v2583 = vpop.f32.mrf.mxu0
    %2584 = vdwg.mxu0
    %2585 = vmatprep.subr.mxu0 0.0
    %2586 = vmatpush1.msra.mxu0 0.0
    %2587 = vmatprep.subr.mxu0 0.0
    %2588 = vmatpush1.msra.mxu0 0.0
    %2589 = vmatprep.subr.mxu0 0.0
    %2590 = vmatpush1.msra.mxu0 0.0
    %2591 = vmatprep.subr.mxu0 0.0
    %2592 = vmatpush1.msra.mxu0 0.0
    %2593 = vmatprep.subr.mxu0 0.0
    %2594 = vmatpush1.msra.mxu0 0.0
    %2595 = vmatprep.subr.mxu0 0.0
    %2596 = vmatpush1.msra.mxu0 0.0
    %2597 = vmatprep.subr.mxu0 0.0
    %2598 = vmatpush1.msra.mxu0 0.0
    %2599 = vmatprep.subr.mxu0 0.0
    %2600 = vmatpush1.msra.mxu0 0.0
    %2601 = vmatprep.subr.mxu0 0.0
    %2602 = vmatpush1.msra.mxu0 0.0
    %2603 = vmatprep.subr.mxu0 0.0
    %2604 = vmatpush1.msra.mxu0 0.0
    %2605 = vmatprep.subr.mxu0 0.0
    %2606 = vmatpush1.msra.mxu0 0.0
    %2607 = vmatprep.subr.mxu0 0.0
    %2608 = vmatpush1.msra.mxu0 0.0
    %2609 = vmatprep.subr.mxu0 0.0
    %v2610 = vand.u32 %v22, 4294901760
    %2611 = vmatpush1.msra.mxu0 %v2610
    %2612 = vmatprep.subr.mxu0 0.0
    %v2613 = vand.u32 %v21, 4294901760
    %2614 = vmatpush1.msra.mxu0 %v2613
    %2615 = vmatprep.subr.mxu0 0.0
    %v2616 = vand.u32 %v20, 4294901760
    %2617 = vmatpush1.msra.mxu0 %v2616
    %2618 = vmatprep.subr.mxu0 0.0
    %v2619 = vand.u32 %v19, 4294901760
    %2620 = vmatpush1.msra.mxu0 %v2619
    %2621 = vmatprep.subr.mxu0 0.0
    %2622 = vmatpush2.msra.mxu0 0.0
    %2623 = vmatprep.subr.mxu0 0.0
    %2624 = vmatpush2.msra.mxu0 0.0
    %2625 = vmatprep.subr.mxu0 0.0
    %2626 = vmatpush2.msra.mxu0 0.0
    %2627 = vmatprep.subr.mxu0 0.0
    %2628 = vmatpush2.msra.mxu0 0.0
    %2629 = vmatprep.subr.mxu0 0.0
    %2630 = vmatpush2.msra.mxu0 0.0
    %2631 = vmatprep.subr.mxu0 0.0
    %2632 = vmatpush2.msra.mxu0 0.0
    %2633 = vmatprep.subr.mxu0 0.0
    %2634 = vmatpush2.msra.mxu0 0.0
    %2635 = vmatprep.subr.mxu0 0.0
    %2636 = vmatpush2.msra.mxu0 0.0
    %2637 = vmatprep.subr.mxu0 0.0
    %2638 = vmatpush2.msra.mxu0 0.0
    %2639 = vmatprep.subr.mxu0 0.0
    %2640 = vmatpush2.msra.mxu0 0.0
    %2641 = vmatprep.subr.mxu0 0.0
    %2642 = vmatpush2.msra.mxu0 0.0
    %2643 = vmatprep.subr.mxu0 0.0
    %2644 = vmatpush2.msra.mxu0 0.0
    %2645 = vmatprep.subr.mxu0 0.0
    %2646 = vmatpush2.msra.mxu0 0.0
    %2647 = vmatprep.subr.mxu0 0.0
    %2648 = vmatpush2.msra.mxu0 0.0
    %2649 = vmatprep.subr.mxu0 0.0
    %2650 = vmatpush2.msra.mxu0 0.0
    %2651 = vmatprep.subr.mxu0 0.0
    %2652 = vmatpush2.msra.mxu0 0.0
    %2653 = vmatprep.mubr.f32.mxu0 0.0
    %v2654 = vand.u32 %v2173, 4294901760
    %2655 = vmatmul.mubr.f32.gmra.mxu0 %v2654
    %v2656 = vpop.f32.mrf.mxu0
    %v2657 = vadd.f32 %v2582, %v2656
    %v2658 = vpop.f32.mrf.mxu0
    %2659 = vdwg.mxu0
    %v2660 = vadd.f32 %v2171, %v2657
    %v2661 = vxor.u32 %v2660, 2147483648
    %v2662 = vmul.f32 %v2661, 1.442695
    %v2663 = vpow.pop %v2662
    %v2664 = vadd.f32 %v2663, 1.0
    %v2665 = vrcp.pop %v2664
    %v2666 = vmul.f32 1.0, %v2665
    %v2667 = vtanh.pop %v2660
    %2669 = vrot.lane.b32.xlu0 %v2159, 32
    %v2670 = vpop.permute.xlu0 %2669
    %v2672 = vmul.f32 %v2666, %v2670
    %2674 = vrot.lane.b32.xlu0 %v2667, 64
    %v2675 = vpop.permute.xlu0 %2674
    %v2677 = vmul.f32 %v2666, %v2675
    %2679 = vrot.lane.b32.xlu0 %v2677, 32
    %v2680 = vpop.permute.xlu0 %2679
    %v2682 = vadd.f32 %v2672, %v2680
    %v2683 = vtanh.pop %v2682
    %2685 = vrot.lane.b32.xlu0 %v2683, 64
    %v2686 = vpop.permute.xlu0 %2685
    %v2688 = vmul.f32 %v2666, %v2686
    %v2689 = vsel %vm29, 4, 3
    %vm2690 = vcmp.lt.s32.totalorder %v2689, %v26
    %2692 = vrot.lane.b32.xlu0 %v2682, 96
    %v2693 = vpop.permute.xlu0 %2692
    %v2695 = vsel %vm2690, %v2693, %v2159
    %2697 = vrot.lane.b32.xlu0 %v2688, 32
    %v2698 = vpop.permute.xlu0 %2697
    %v2700 = vsel %vm2690, %v2698, %v2164
    %v2701 = vsel %vm2690, %v2698, 0.0
    %2702 = vst.msk [vmem:[%s2168] sm:$0x3] %vm557, %v2701
    %2703 = vst.msk [vmem:[%s2166] sm:$0x3] %vm560, %v2701
    %s2704 = scalar_lea.vmem %s1, 10
    %v2705 = vld [vmem:[%s2704] sm:$0x3]
    %v2707 = vsel %vm31, %v2700, 0
    %2709 = vmatprep.subr.mxu0 0.0
    %2710 = vmatpush1.msra.mxu0 0.0
    %2711 = vmatprep.subr.mxu0 0.0
    %2712 = vmatpush1.msra.mxu0 0.0
    %2713 = vmatprep.subr.mxu0 0.0
    %2714 = vmatpush1.msra.mxu0 0.0
    %2715 = vmatprep.subr.mxu0 0.0
    %2716 = vmatpush1.msra.mxu0 0.0
    %2717 = vmatprep.subr.mxu0 0.0
    %2718 = vmatpush1.msra.mxu0 0.0
    %2719 = vmatprep.subr.mxu0 0.0
    %2720 = vmatpush1.msra.mxu0 0.0
    %2721 = vmatprep.subr.mxu0 0.0
    %2722 = vmatpush1.msra.mxu0 0.0
    %2723 = vmatprep.subr.mxu0 0.0
    %2724 = vmatpush1.msra.mxu0 0.0
    %2725 = vmatprep.subr.mxu0 0.0
    %2726 = vmatpush1.msra.mxu0 0.0
    %2727 = vmatprep.subr.mxu0 0.0
    %2728 = vmatpush1.msra.mxu0 0.0
    %2729 = vmatprep.subr.mxu0 0.0
    %2730 = vmatpush1.msra.mxu0 0.0
    %2731 = vmatprep.subr.mxu0 0.0
    %2732 = vmatpush1.msra.mxu0 0.0
    %2733 = vmatprep.subr.mxu0 0.0
    %v2734 = vand.u32 %v22, 4294901760
    %2735 = vmatpush1.msra.mxu0 %v2734
    %2736 = vmatprep.subr.mxu0 0.0
    %v2737 = vand.u32 %v21, 4294901760
    %2738 = vmatpush1.msra.mxu0 %v2737
    %2739 = vmatprep.subr.mxu0 0.0
    %v2740 = vand.u32 %v20, 4294901760
    %2741 = vmatpush1.msra.mxu0 %v2740
    %2742 = vmatprep.subr.mxu0 0.0
    %v2743 = vand.u32 %v19, 4294901760
    %2744 = vmatpush1.msra.mxu0 %v2743
    %2745 = vmatprep.subr.mxu0 0.0
    %2746 = vmatpush2.msra.mxu0 0.0
    %2747 = vmatprep.subr.mxu0 0.0
    %2748 = vmatpush2.msra.mxu0 0.0
    %2749 = vmatprep.subr.mxu0 0.0
    %2750 = vmatpush2.msra.mxu0 0.0
    %2751 = vmatprep.subr.mxu0 0.0
    %2752 = vmatpush2.msra.mxu0 0.0
    %2753 = vmatprep.subr.mxu0 0.0
    %2754 = vmatpush2.msra.mxu0 0.0
    %2755 = vmatprep.subr.mxu0 0.0
    %2756 = vmatpush2.msra.mxu0 0.0
    %2757 = vmatprep.subr.mxu0 0.0
    %2758 = vmatpush2.msra.mxu0 0.0
    %2759 = vmatprep.subr.mxu0 0.0
    %2760 = vmatpush2.msra.mxu0 0.0
    %2761 = vmatprep.subr.mxu0 0.0
    %2762 = vmatpush2.msra.mxu0 0.0
    %2763 = vmatprep.subr.mxu0 0.0
    %2764 = vmatpush2.msra.mxu0 0.0
    %2765 = vmatprep.subr.mxu0 0.0
    %2766 = vmatpush2.msra.mxu0 0.0
    %2767 = vmatprep.subr.mxu0 0.0
    %2768 = vmatpush2.msra.mxu0 0.0
    %2769 = vmatprep.subr.mxu0 0.0
    %2770 = vmatpush2.msra.mxu0 0.0
    %2771 = vmatprep.subr.mxu0 0.0
    %2772 = vmatpush2.msra.mxu0 0.0
    %2773 = vmatprep.subr.mxu0 0.0
    %2774 = vmatpush2.msra.mxu0 0.0
    %2775 = vmatprep.subr.mxu0 0.0
    %2776 = vmatpush2.msra.mxu0 0.0
    %2777 = vmatprep.mubr.f32.mxu0 0.0
    %v2778 = vand.u32 %v2707, 4294901760
    %v2779 = vsub.f32 %v2707, %v2778
    %v2780 = vand.u32 %v2779, 4294901760
    %v2781 = vsub.f32 %v2779, %v2780
    %v2782 = vand.u32 %v2781, 4294901760
    %2783 = vmatmul.mubr.f32.gmra.mxu0 %v2782
    %v2784 = vpop.f32.mrf.mxu0
    %v2785 = vadd.f32 0.0, %v2784
    %v2786 = vpop.f32.mrf.mxu0
    %2787 = vdwg.mxu0
    %2788 = vmatprep.subr.mxu0 0.0
    %2789 = vmatpush1.msra.mxu0 0.0
    %2790 = vmatprep.subr.mxu0 0.0
    %2791 = vmatpush1.msra.mxu0 0.0
    %2792 = vmatprep.subr.mxu0 0.0
    %2793 = vmatpush1.msra.mxu0 0.0
    %2794 = vmatprep.subr.mxu0 0.0
    %2795 = vmatpush1.msra.mxu0 0.0
    %2796 = vmatprep.subr.mxu0 0.0
    %2797 = vmatpush1.msra.mxu0 0.0
    %2798 = vmatprep.subr.mxu0 0.0
    %2799 = vmatpush1.msra.mxu0 0.0
    %2800 = vmatprep.subr.mxu0 0.0
    %2801 = vmatpush1.msra.mxu0 0.0
    %2802 = vmatprep.subr.mxu0 0.0
    %2803 = vmatpush1.msra.mxu0 0.0
    %2804 = vmatprep.subr.mxu0 0.0
    %2805 = vmatpush1.msra.mxu0 0.0
    %2806 = vmatprep.subr.mxu0 0.0
    %2807 = vmatpush1.msra.mxu0 0.0
    %2808 = vmatprep.subr.mxu0 0.0
    %2809 = vmatpush1.msra.mxu0 0.0
    %2810 = vmatprep.subr.mxu0 0.0
    %2811 = vmatpush1.msra.mxu0 0.0
    %2812 = vmatprep.subr.mxu0 0.0
    %v2813 = vand.u32 %v22, 4294901760
    %v2814 = vsub.f32 %v22, %v2813
    %v2815 = vand.u32 %v2814, 4294901760
    %v2816 = vsub.f32 %v2814, %v2815
    %v2817 = vand.u32 %v2816, 4294901760
    %2818 = vmatpush1.msra.mxu0 %v2817
    %2819 = vmatprep.subr.mxu0 0.0
    %v2820 = vand.u32 %v21, 4294901760
    %v2821 = vsub.f32 %v21, %v2820
    %v2822 = vand.u32 %v2821, 4294901760
    %v2823 = vsub.f32 %v2821, %v2822
    %v2824 = vand.u32 %v2823, 4294901760
    %2825 = vmatpush1.msra.mxu0 %v2824
    %2826 = vmatprep.subr.mxu0 0.0
    %v2827 = vand.u32 %v20, 4294901760
    %v2828 = vsub.f32 %v20, %v2827
    %v2829 = vand.u32 %v2828, 4294901760
    %v2830 = vsub.f32 %v2828, %v2829
    %v2831 = vand.u32 %v2830, 4294901760
    %2832 = vmatpush1.msra.mxu0 %v2831
    %2833 = vmatprep.subr.mxu0 0.0
    %v2834 = vand.u32 %v19, 4294901760
    %v2835 = vsub.f32 %v19, %v2834
    %v2836 = vand.u32 %v2835, 4294901760
    %v2837 = vsub.f32 %v2835, %v2836
    %v2838 = vand.u32 %v2837, 4294901760
    %2839 = vmatpush1.msra.mxu0 %v2838
    %2840 = vmatprep.subr.mxu0 0.0
    %2841 = vmatpush2.msra.mxu0 0.0
    %2842 = vmatprep.subr.mxu0 0.0
    %2843 = vmatpush2.msra.mxu0 0.0
    %2844 = vmatprep.subr.mxu0 0.0
    %2845 = vmatpush2.msra.mxu0 0.0
    %2846 = vmatprep.subr.mxu0 0.0
    %2847 = vmatpush2.msra.mxu0 0.0
    %2848 = vmatprep.subr.mxu0 0.0
    %2849 = vmatpush2.msra.mxu0 0.0
    %2850 = vmatprep.subr.mxu0 0.0
    %2851 = vmatpush2.msra.mxu0 0.0
    %2852 = vmatprep.subr.mxu0 0.0
    %2853 = vmatpush2.msra.mxu0 0.0
    %2854 = vmatprep.subr.mxu0 0.0
    %2855 = vmatpush2.msra.mxu0 0.0
    %2856 = vmatprep.subr.mxu0 0.0
    %2857 = vmatpush2.msra.mxu0 0.0
    %2858 = vmatprep.subr.mxu0 0.0
    %2859 = vmatpush2.msra.mxu0 0.0
    %2860 = vmatprep.subr.mxu0 0.0
    %2861 = vmatpush2.msra.mxu0 0.0
    %2862 = vmatprep.subr.mxu0 0.0
    %2863 = vmatpush2.msra.mxu0 0.0
    %2864 = vmatprep.subr.mxu0 0.0
    %2865 = vmatpush2.msra.mxu0 0.0
    %2866 = vmatprep.subr.mxu0 0.0
    %2867 = vmatpush2.msra.mxu0 0.0
    %2868 = vmatprep.subr.mxu0 0.0
    %2869 = vmatpush2.msra.mxu0 0.0
    %2870 = vmatprep.subr.mxu0 0.0
    %2871 = vmatpush2.msra.mxu0 0.0
    %2872 = vmatprep.mubr.f32.mxu0 0.0
    %v2873 = vand.u32 %v2707, 4294901760
    %2874 = vmatmul.mubr.f32.gmra.mxu0 %v2873
    %v2875 = vpop.f32.mrf.mxu0
    %v2876 = vadd.f32 %v2785, %v2875
    %v2877 = vpop.f32.mrf.mxu0
    %2878 = vdwg.mxu0
    %2879 = vmatprep.subr.mxu0 0.0
    %2880 = vmatpush1.msra.mxu0 0.0
    %2881 = vmatprep.subr.mxu0 0.0
    %2882 = vmatpush1.msra.mxu0 0.0
    %2883 = vmatprep.subr.mxu0 0.0
    %2884 = vmatpush1.msra.mxu0 0.0
    %2885 = vmatprep.subr.mxu0 0.0
    %2886 = vmatpush1.msra.mxu0 0.0
    %2887 = vmatprep.subr.mxu0 0.0
    %2888 = vmatpush1.msra.mxu0 0.0
    %2889 = vmatprep.subr.mxu0 0.0
    %2890 = vmatpush1.msra.mxu0 0.0
    %2891 = vmatprep.subr.mxu0 0.0
    %2892 = vmatpush1.msra.mxu0 0.0
    %2893 = vmatprep.subr.mxu0 0.0
    %2894 = vmatpush1.msra.mxu0 0.0
    %2895 = vmatprep.subr.mxu0 0.0
    %2896 = vmatpush1.msra.mxu0 0.0
    %2897 = vmatprep.subr.mxu0 0.0
    %2898 = vmatpush1.msra.mxu0 0.0
    %2899 = vmatprep.subr.mxu0 0.0
    %2900 = vmatpush1.msra.mxu0 0.0
    %2901 = vmatprep.subr.mxu0 0.0
    %2902 = vmatpush1.msra.mxu0 0.0
    %2903 = vmatprep.subr.mxu0 0.0
    %v2904 = vand.u32 %v22, 4294901760
    %v2905 = vsub.f32 %v22, %v2904
    %2906 = vmatpush1.msra.mxu0 %v2905
    %2907 = vmatprep.subr.mxu0 0.0
    %v2908 = vand.u32 %v21, 4294901760
    %v2909 = vsub.f32 %v21, %v2908
    %2910 = vmatpush1.msra.mxu0 %v2909
    %2911 = vmatprep.subr.mxu0 0.0
    %v2912 = vand.u32 %v20, 4294901760
    %v2913 = vsub.f32 %v20, %v2912
    %2914 = vmatpush1.msra.mxu0 %v2913
    %2915 = vmatprep.subr.mxu0 0.0
    %v2916 = vand.u32 %v19, 4294901760
    %v2917 = vsub.f32 %v19, %v2916
    %2918 = vmatpush1.msra.mxu0 %v2917
    %2919 = vmatprep.subr.mxu0 0.0
    %2920 = vmatpush2.msra.mxu0 0.0
    %2921 = vmatprep.subr.mxu0 0.0
    %2922 = vmatpush2.msra.mxu0 0.0
    %2923 = vmatprep.subr.mxu0 0.0
    %2924 = vmatpush2.msra.mxu0 0.0
    %2925 = vmatprep.subr.mxu0 0.0
    %2926 = vmatpush2.msra.mxu0 0.0
    %2927 = vmatprep.subr.mxu0 0.0
    %2928 = vmatpush2.msra.mxu0 0.0
    %2929 = vmatprep.subr.mxu0 0.0
    %2930 = vmatpush2.msra.mxu0 0.0
    %2931 = vmatprep.subr.mxu0 0.0
    %2932 = vmatpush2.msra.mxu0 0.0
    %2933 = vmatprep.subr.mxu0 0.0
    %2934 = vmatpush2.msra.mxu0 0.0
    %2935 = vmatprep.subr.mxu0 0.0
    %2936 = vmatpush2.msra.mxu0 0.0
    %2937 = vmatprep.subr.mxu0 0.0
    %2938 = vmatpush2.msra.mxu0 0.0
    %2939 = vmatprep.subr.mxu0 0.0
    %2940 = vmatpush2.msra.mxu0 0.0
    %2941 = vmatprep.subr.mxu0 0.0
    %2942 = vmatpush2.msra.mxu0 0.0
    %2943 = vmatprep.subr.mxu0 0.0
    %2944 = vmatpush2.msra.mxu0 0.0
    %2945 = vmatprep.subr.mxu0 0.0
    %2946 = vmatpush2.msra.mxu0 0.0
    %2947 = vmatprep.subr.mxu0 0.0
    %2948 = vmatpush2.msra.mxu0 0.0
    %2949 = vmatprep.subr.mxu0 0.0
    %2950 = vmatpush2.msra.mxu0 0.0
    %2951 = vmatprep.mubr.f32.mxu0 0.0
    %v2952 = vand.u32 %v2707, 4294901760
    %v2953 = vsub.f32 %v2707, %v2952
    %2954 = vmatmul.mubr.f32.gmra.mxu0 %v2953
    %v2955 = vpop.f32.mrf.mxu0
    %v2956 = vadd.f32 %v2876, %v2955
    %v2957 = vpop.f32.mrf.mxu0
    %2958 = vdwg.mxu0
    %2959 = vmatprep.subr.mxu0 0.0
    %2960 = vmatpush1.msra.mxu0 0.0
    %2961 = vmatprep.subr.mxu0 0.0
    %2962 = vmatpush1.msra.mxu0 0.0
    %2963 = vmatprep.subr.mxu0 0.0
    %2964 = vmatpush1.msra.mxu0 0.0
    %2965 = vmatprep.subr.mxu0 0.0
    %2966 = vmatpush1.msra.mxu0 0.0
    %2967 = vmatprep.subr.mxu0 0.0
    %2968 = vmatpush1.msra.mxu0 0.0
    %2969 = vmatprep.subr.mxu0 0.0
    %2970 = vmatpush1.msra.mxu0 0.0
    %2971 = vmatprep.subr.mxu0 0.0
    %2972 = vmatpush1.msra.mxu0 0.0
    %2973 = vmatprep.subr.mxu0 0.0
    %2974 = vmatpush1.msra.mxu0 0.0
    %2975 = vmatprep.subr.mxu0 0.0
    %2976 = vmatpush1.msra.mxu0 0.0
    %2977 = vmatprep.subr.mxu0 0.0
    %2978 = vmatpush1.msra.mxu0 0.0
    %2979 = vmatprep.subr.mxu0 0.0
    %2980 = vmatpush1.msra.mxu0 0.0
    %2981 = vmatprep.subr.mxu0 0.0
    %2982 = vmatpush1.msra.mxu0 0.0
    %2983 = vmatprep.subr.mxu0 0.0
    %v2984 = vand.u32 %v22, 4294901760
    %2985 = vmatpush1.msra.mxu0 %v2984
    %2986 = vmatprep.subr.mxu0 0.0
    %v2987 = vand.u32 %v21, 4294901760
    %2988 = vmatpush1.msra.mxu0 %v2987
    %2989 = vmatprep.subr.mxu0 0.0
    %v2990 = vand.u32 %v20, 4294901760
    %2991 = vmatpush1.msra.mxu0 %v2990
    %2992 = vmatprep.subr.mxu0 0.0
    %v2993 = vand.u32 %v19, 4294901760
    %2994 = vmatpush1.msra.mxu0 %v2993
    %2995 = vmatprep.subr.mxu0 0.0
    %2996 = vmatpush2.msra.mxu0 0.0
    %2997 = vmatprep.subr.mxu0 0.0
    %2998 = vmatpush2.msra.mxu0 0.0
    %2999 = vmatprep.subr.mxu0 0.0
    %3000 = vmatpush2.msra.mxu0 0.0
    %3001 = vmatprep.subr.mxu0 0.0
    %3002 = vmatpush2.msra.mxu0 0.0
    %3003 = vmatprep.subr.mxu0 0.0
    %3004 = vmatpush2.msra.mxu0 0.0
    %3005 = vmatprep.subr.mxu0 0.0
    %3006 = vmatpush2.msra.mxu0 0.0
    %3007 = vmatprep.subr.mxu0 0.0
    %3008 = vmatpush2.msra.mxu0 0.0
    %3009 = vmatprep.subr.mxu0 0.0
    %3010 = vmatpush2.msra.mxu0 0.0
    %3011 = vmatprep.subr.mxu0 0.0
    %3012 = vmatpush2.msra.mxu0 0.0
    %3013 = vmatprep.subr.mxu0 0.0
    %3014 = vmatpush2.msra.mxu0 0.0
    %3015 = vmatprep.subr.mxu0 0.0
    %3016 = vmatpush2.msra.mxu0 0.0
    %3017 = vmatprep.subr.mxu0 0.0
    %3018 = vmatpush2.msra.mxu0 0.0
    %3019 = vmatprep.subr.mxu0 0.0
    %3020 = vmatpush2.msra.mxu0 0.0
    %3021 = vmatprep.subr.mxu0 0.0
    %3022 = vmatpush2.msra.mxu0 0.0
    %3023 = vmatprep.subr.mxu0 0.0
    %3024 = vmatpush2.msra.mxu0 0.0
    %3025 = vmatprep.subr.mxu0 0.0
    %3026 = vmatpush2.msra.mxu0 0.0
    %3027 = vmatprep.mubr.f32.mxu0 0.0
    %v3028 = vand.u32 %v2707, 4294901760
    %v3029 = vsub.f32 %v2707, %v3028
    %v3030 = vand.u32 %v3029, 4294901760
    %3031 = vmatmul.mubr.f32.gmra.mxu0 %v3030
    %v3032 = vpop.f32.mrf.mxu0
    %v3033 = vadd.f32 %v2956, %v3032
    %v3034 = vpop.f32.mrf.mxu0
    %3035 = vdwg.mxu0
    %3036 = vmatprep.subr.mxu0 0.0
    %3037 = vmatpush1.msra.mxu0 0.0
    %3038 = vmatprep.subr.mxu0 0.0
    %3039 = vmatpush1.msra.mxu0 0.0
    %3040 = vmatprep.subr.mxu0 0.0
    %3041 = vmatpush1.msra.mxu0 0.0
    %3042 = vmatprep.subr.mxu0 0.0
    %3043 = vmatpush1.msra.mxu0 0.0
    %3044 = vmatprep.subr.mxu0 0.0
    %3045 = vmatpush1.msra.mxu0 0.0
    %3046 = vmatprep.subr.mxu0 0.0
    %3047 = vmatpush1.msra.mxu0 0.0
    %3048 = vmatprep.subr.mxu0 0.0
    %3049 = vmatpush1.msra.mxu0 0.0
    %3050 = vmatprep.subr.mxu0 0.0
    %3051 = vmatpush1.msra.mxu0 0.0
    %3052 = vmatprep.subr.mxu0 0.0
    %3053 = vmatpush1.msra.mxu0 0.0
    %3054 = vmatprep.subr.mxu0 0.0
    %3055 = vmatpush1.msra.mxu0 0.0
    %3056 = vmatprep.subr.mxu0 0.0
    %3057 = vmatpush1.msra.mxu0 0.0
    %3058 = vmatprep.subr.mxu0 0.0
    %3059 = vmatpush1.msra.mxu0 0.0
    %3060 = vmatprep.subr.mxu0 0.0
    %v3061 = vand.u32 %v22, 4294901760
    %v3062 = vsub.f32 %v22, %v3061
    %v3063 = vand.u32 %v3062, 4294901760
    %3064 = vmatpush1.msra.mxu0 %v3063
    %3065 = vmatprep.subr.mxu0 0.0
    %v3066 = vand.u32 %v21, 4294901760
    %v3067 = vsub.f32 %v21, %v3066
    %v3068 = vand.u32 %v3067, 4294901760
    %3069 = vmatpush1.msra.mxu0 %v3068
    %3070 = vmatprep.subr.mxu0 0.0
    %v3071 = vand.u32 %v20, 4294901760
    %v3072 = vsub.f32 %v20, %v3071
    %v3073 = vand.u32 %v3072, 4294901760
    %3074 = vmatpush1.msra.mxu0 %v3073
    %3075 = vmatprep.subr.mxu0 0.0
    %v3076 = vand.u32 %v19, 4294901760
    %v3077 = vsub.f32 %v19, %v3076
    %v3078 = vand.u32 %v3077, 4294901760
    %3079 = vmatpush1.msra.mxu0 %v3078
    %3080 = vmatprep.subr.mxu0 0.0
    %3081 = vmatpush2.msra.mxu0 0.0
    %3082 = vmatprep.subr.mxu0 0.0
    %3083 = vmatpush2.msra.mxu0 0.0
    %3084 = vmatprep.subr.mxu0 0.0
    %3085 = vmatpush2.msra.mxu0 0.0
    %3086 = vmatprep.subr.mxu0 0.0
    %3087 = vmatpush2.msra.mxu0 0.0
    %3088 = vmatprep.subr.mxu0 0.0
    %3089 = vmatpush2.msra.mxu0 0.0
    %3090 = vmatprep.subr.mxu0 0.0
    %3091 = vmatpush2.msra.mxu0 0.0
    %3092 = vmatprep.subr.mxu0 0.0
    %3093 = vmatpush2.msra.mxu0 0.0
    %3094 = vmatprep.subr.mxu0 0.0
    %3095 = vmatpush2.msra.mxu0 0.0
    %3096 = vmatprep.subr.mxu0 0.0
    %3097 = vmatpush2.msra.mxu0 0.0
    %3098 = vmatprep.subr.mxu0 0.0
    %3099 = vmatpush2.msra.mxu0 0.0
    %3100 = vmatprep.subr.mxu0 0.0
    %3101 = vmatpush2.msra.mxu0 0.0
    %3102 = vmatprep.subr.mxu0 0.0
    %3103 = vmatpush2.msra.mxu0 0.0
    %3104 = vmatprep.subr.mxu0 0.0
    %3105 = vmatpush2.msra.mxu0 0.0
    %3106 = vmatprep.subr.mxu0 0.0
    %3107 = vmatpush2.msra.mxu0 0.0
    %3108 = vmatprep.subr.mxu0 0.0
    %3109 = vmatpush2.msra.mxu0 0.0
    %3110 = vmatprep.subr.mxu0 0.0
    %3111 = vmatpush2.msra.mxu0 0.0
    %3112 = vmatprep.mubr.f32.mxu0 0.0
    %v3113 = vand.u32 %v2707, 4294901760
    %3114 = vmatmul.mubr.f32.gmra.mxu0 %v3113
    %v3115 = vpop.f32.mrf.mxu0
    %v3116 = vadd.f32 %v3033, %v3115
    %v3117 = vpop.f32.mrf.mxu0
    %3118 = vdwg.mxu0
    %3119 = vmatprep.subr.mxu0 0.0
    %3120 = vmatpush1.msra.mxu0 0.0
    %3121 = vmatprep.subr.mxu0 0.0
    %3122 = vmatpush1.msra.mxu0 0.0
    %3123 = vmatprep.subr.mxu0 0.0
    %3124 = vmatpush1.msra.mxu0 0.0
    %3125 = vmatprep.subr.mxu0 0.0
    %3126 = vmatpush1.msra.mxu0 0.0
    %3127 = vmatprep.subr.mxu0 0.0
    %3128 = vmatpush1.msra.mxu0 0.0
    %3129 = vmatprep.subr.mxu0 0.0
    %3130 = vmatpush1.msra.mxu0 0.0
    %3131 = vmatprep.subr.mxu0 0.0
    %3132 = vmatpush1.msra.mxu0 0.0
    %3133 = vmatprep.subr.mxu0 0.0
    %3134 = vmatpush1.msra.mxu0 0.0
    %3135 = vmatprep.subr.mxu0 0.0
    %3136 = vmatpush1.msra.mxu0 0.0
    %3137 = vmatprep.subr.mxu0 0.0
    %3138 = vmatpush1.msra.mxu0 0.0
    %3139 = vmatprep.subr.mxu0 0.0
    %3140 = vmatpush1.msra.mxu0 0.0
    %3141 = vmatprep.subr.mxu0 0.0
    %3142 = vmatpush1.msra.mxu0 0.0
    %3143 = vmatprep.subr.mxu0 0.0
    %v3144 = vand.u32 %v22, 4294901760
    %3145 = vmatpush1.msra.mxu0 %v3144
    %3146 = vmatprep.subr.mxu0 0.0
    %v3147 = vand.u32 %v21, 4294901760
    %3148 = vmatpush1.msra.mxu0 %v3147
    %3149 = vmatprep.subr.mxu0 0.0
    %v3150 = vand.u32 %v20, 4294901760
    %3151 = vmatpush1.msra.mxu0 %v3150
    %3152 = vmatprep.subr.mxu0 0.0
    %v3153 = vand.u32 %v19, 4294901760
    %3154 = vmatpush1.msra.mxu0 %v3153
    %3155 = vmatprep.subr.mxu0 0.0
    %3156 = vmatpush2.msra.mxu0 0.0
    %3157 = vmatprep.subr.mxu0 0.0
    %3158 = vmatpush2.msra.mxu0 0.0
    %3159 = vmatprep.subr.mxu0 0.0
    %3160 = vmatpush2.msra.mxu0 0.0
    %3161 = vmatprep.subr.mxu0 0.0
    %3162 = vmatpush2.msra.mxu0 0.0
    %3163 = vmatprep.subr.mxu0 0.0
    %3164 = vmatpush2.msra.mxu0 0.0
    %3165 = vmatprep.subr.mxu0 0.0
    %3166 = vmatpush2.msra.mxu0 0.0
    %3167 = vmatprep.subr.mxu0 0.0
    %3168 = vmatpush2.msra.mxu0 0.0
    %3169 = vmatprep.subr.mxu0 0.0
    %3170 = vmatpush2.msra.mxu0 0.0
    %3171 = vmatprep.subr.mxu0 0.0
    %3172 = vmatpush2.msra.mxu0 0.0
    %3173 = vmatprep.subr.mxu0 0.0
    %3174 = vmatpush2.msra.mxu0 0.0
    %3175 = vmatprep.subr.mxu0 0.0
    %3176 = vmatpush2.msra.mxu0 0.0
    %3177 = vmatprep.subr.mxu0 0.0
    %3178 = vmatpush2.msra.mxu0 0.0
    %3179 = vmatprep.subr.mxu0 0.0
    %3180 = vmatpush2.msra.mxu0 0.0
    %3181 = vmatprep.subr.mxu0 0.0
    %3182 = vmatpush2.msra.mxu0 0.0
    %3183 = vmatprep.subr.mxu0 0.0
    %3184 = vmatpush2.msra.mxu0 0.0
    %3185 = vmatprep.subr.mxu0 0.0
    %3186 = vmatpush2.msra.mxu0 0.0
    %3187 = vmatprep.mubr.f32.mxu0 0.0
    %v3188 = vand.u32 %v2707, 4294901760
    %3189 = vmatmul.mubr.f32.gmra.mxu0 %v3188
    %v3190 = vpop.f32.mrf.mxu0
    %v3191 = vadd.f32 %v3116, %v3190
    %v3192 = vpop.f32.mrf.mxu0
    %3193 = vdwg.mxu0
    %v3194 = vadd.f32 %v2705, %v3191
    %v3195 = vxor.u32 %v3194, 2147483648
    %v3196 = vmul.f32 %v3195, 1.442695
    %v3197 = vpow.pop %v3196
    %v3198 = vadd.f32 %v3197, 1.0
    %v3199 = vrcp.pop %v3198
    %v3200 = vmul.f32 1.0, %v3199
    %v3201 = vtanh.pop %v3194
    %3203 = vrot.lane.b32.xlu0 %v2695, 32
    %v3204 = vpop.permute.xlu0 %3203
    %v3206 = vmul.f32 %v3200, %v3204
    %3208 = vrot.lane.b32.xlu0 %v3201, 64
    %v3209 = vpop.permute.xlu0 %3208
    %v3211 = vmul.f32 %v3200, %v3209
    %3213 = vrot.lane.b32.xlu0 %v3211, 32
    %v3214 = vpop.permute.xlu0 %3213
    %v3216 = vadd.f32 %v3206, %v3214
    %v3217 = vtanh.pop %v3216
    %3219 = vrot.lane.b32.xlu0 %v3217, 64
    %v3220 = vpop.permute.xlu0 %3219
    %v3222 = vmul.f32 %v3200, %v3220
    %v3223 = vsel %vm29, 5, 2
    %vm3224 = vcmp.lt.s32.totalorder %v3223, %v26
    %3226 = vrot.lane.b32.xlu0 %v3216, 96
    %v3227 = vpop.permute.xlu0 %3226
    %v3229 = vsel %vm3224, %v3227, %v2695
    %3231 = vrot.lane.b32.xlu0 %v3222, 32
    %v3232 = vpop.permute.xlu0 %3231
    %v3234 = vsel %vm3224, %v3232, %v2700
    %v3235 = vsel %vm3224, %v3232, 0.0
    %3236 = vst.msk [vmem:[%s1632] sm:$0x3] %vm557, %v3235
    %3237 = vst.msk [vmem:[%s1630] sm:$0x3] %vm560, %v3235
    %s3238 = scalar_lea.vmem %s1, 12
    %v3239 = vld [vmem:[%s3238] sm:$0x3]
    %v3241 = vsel %vm31, %v3234, 0
    %3243 = vmatprep.subr.mxu0 0.0
    %3244 = vmatpush1.msra.mxu0 0.0
    %3245 = vmatprep.subr.mxu0 0.0
    %3246 = vmatpush1.msra.mxu0 0.0
    %3247 = vmatprep.subr.mxu0 0.0
    %3248 = vmatpush1.msra.mxu0 0.0
    %3249 = vmatprep.subr.mxu0 0.0
    %3250 = vmatpush1.msra.mxu0 0.0
    %3251 = vmatprep.subr.mxu0 0.0
    %3252 = vmatpush1.msra.mxu0 0.0
    %3253 = vmatprep.subr.mxu0 0.0
    %3254 = vmatpush1.msra.mxu0 0.0
    %3255 = vmatprep.subr.mxu0 0.0
    %3256 = vmatpush1.msra.mxu0 0.0
    %3257 = vmatprep.subr.mxu0 0.0
    %3258 = vmatpush1.msra.mxu0 0.0
    %3259 = vmatprep.subr.mxu0 0.0
    %3260 = vmatpush1.msra.mxu0 0.0
    %3261 = vmatprep.subr.mxu0 0.0
    %3262 = vmatpush1.msra.mxu0 0.0
    %3263 = vmatprep.subr.mxu0 0.0
    %3264 = vmatpush1.msra.mxu0 0.0
    %3265 = vmatprep.subr.mxu0 0.0
    %3266 = vmatpush1.msra.mxu0 0.0
    %3267 = vmatprep.subr.mxu0 0.0
    %v3268 = vand.u32 %v22, 4294901760
    %3269 = vmatpush1.msra.mxu0 %v3268
    %3270 = vmatprep.subr.mxu0 0.0
    %v3271 = vand.u32 %v21, 4294901760
    %3272 = vmatpush1.msra.mxu0 %v3271
    %3273 = vmatprep.subr.mxu0 0.0
    %v3274 = vand.u32 %v20, 4294901760
    %3275 = vmatpush1.msra.mxu0 %v3274
    %3276 = vmatprep.subr.mxu0 0.0
    %v3277 = vand.u32 %v19, 4294901760
    %3278 = vmatpush1.msra.mxu0 %v3277
    %3279 = vmatprep.subr.mxu0 0.0
    %3280 = vmatpush2.msra.mxu0 0.0
    %3281 = vmatprep.subr.mxu0 0.0
    %3282 = vmatpush2.msra.mxu0 0.0
    %3283 = vmatprep.subr.mxu0 0.0
    %3284 = vmatpush2.msra.mxu0 0.0
    %3285 = vmatprep.subr.mxu0 0.0
    %3286 = vmatpush2.msra.mxu0 0.0
    %3287 = vmatprep.subr.mxu0 0.0
    %3288 = vmatpush2.msra.mxu0 0.0
    %3289 = vmatprep.subr.mxu0 0.0
    %3290 = vmatpush2.msra.mxu0 0.0
    %3291 = vmatprep.subr.mxu0 0.0
    %3292 = vmatpush2.msra.mxu0 0.0
    %3293 = vmatprep.subr.mxu0 0.0
    %3294 = vmatpush2.msra.mxu0 0.0
    %3295 = vmatprep.subr.mxu0 0.0
    %3296 = vmatpush2.msra.mxu0 0.0
    %3297 = vmatprep.subr.mxu0 0.0
    %3298 = vmatpush2.msra.mxu0 0.0
    %3299 = vmatprep.subr.mxu0 0.0
    %3300 = vmatpush2.msra.mxu0 0.0
    %3301 = vmatprep.subr.mxu0 0.0
    %3302 = vmatpush2.msra.mxu0 0.0
    %3303 = vmatprep.subr.mxu0 0.0
    %3304 = vmatpush2.msra.mxu0 0.0
    %3305 = vmatprep.subr.mxu0 0.0
    %3306 = vmatpush2.msra.mxu0 0.0
    %3307 = vmatprep.subr.mxu0 0.0
    %3308 = vmatpush2.msra.mxu0 0.0
    %3309 = vmatprep.subr.mxu0 0.0
    %3310 = vmatpush2.msra.mxu0 0.0
    %3311 = vmatprep.mubr.f32.mxu0 0.0
    %v3312 = vand.u32 %v3241, 4294901760
    %v3313 = vsub.f32 %v3241, %v3312
    %v3314 = vand.u32 %v3313, 4294901760
    %v3315 = vsub.f32 %v3313, %v3314
    %v3316 = vand.u32 %v3315, 4294901760
    %3317 = vmatmul.mubr.f32.gmra.mxu0 %v3316
    %v3318 = vpop.f32.mrf.mxu0
    %v3319 = vadd.f32 0.0, %v3318
    %v3320 = vpop.f32.mrf.mxu0
    %3321 = vdwg.mxu0
    %3322 = vmatprep.subr.mxu0 0.0
    %3323 = vmatpush1.msra.mxu0 0.0
    %3324 = vmatprep.subr.mxu0 0.0
    %3325 = vmatpush1.msra.mxu0 0.0
    %3326 = vmatprep.subr.mxu0 0.0
    %3327 = vmatpush1.msra.mxu0 0.0
    %3328 = vmatprep.subr.mxu0 0.0
    %3329 = vmatpush1.msra.mxu0 0.0
    %3330 = vmatprep.subr.mxu0 0.0
    %3331 = vmatpush1.msra.mxu0 0.0
    %3332 = vmatprep.subr.mxu0 0.0
    %3333 = vmatpush1.msra.mxu0 0.0
    %3334 = vmatprep.subr.mxu0 0.0
    %3335 = vmatpush1.msra.mxu0 0.0
    %3336 = vmatprep.subr.mxu0 0.0
    %3337 = vmatpush1.msra.mxu0 0.0
    %3338 = vmatprep.subr.mxu0 0.0
    %3339 = vmatpush1.msra.mxu0 0.0
    %3340 = vmatprep.subr.mxu0 0.0
    %3341 = vmatpush1.msra.mxu0 0.0
    %3342 = vmatprep.subr.mxu0 0.0
    %3343 = vmatpush1.msra.mxu0 0.0
    %3344 = vmatprep.subr.mxu0 0.0
    %3345 = vmatpush1.msra.mxu0 0.0
    %3346 = vmatprep.subr.mxu0 0.0
    %v3347 = vand.u32 %v22, 4294901760
    %v3348 = vsub.f32 %v22, %v3347
    %v3349 = vand.u32 %v3348, 4294901760
    %v3350 = vsub.f32 %v3348, %v3349
    %v3351 = vand.u32 %v3350, 4294901760
    %3352 = vmatpush1.msra.mxu0 %v3351
    %3353 = vmatprep.subr.mxu0 0.0
    %v3354 = vand.u32 %v21, 4294901760
    %v3355 = vsub.f32 %v21, %v3354
    %v3356 = vand.u32 %v3355, 4294901760
    %v3357 = vsub.f32 %v3355, %v3356
    %v3358 = vand.u32 %v3357, 4294901760
    %3359 = vmatpush1.msra.mxu0 %v3358
    %3360 = vmatprep.subr.mxu0 0.0
    %v3361 = vand.u32 %v20, 4294901760
    %v3362 = vsub.f32 %v20, %v3361
    %v3363 = vand.u32 %v3362, 4294901760
    %v3364 = vsub.f32 %v3362, %v3363
    %v3365 = vand.u32 %v3364, 4294901760
    %3366 = vmatpush1.msra.mxu0 %v3365
    %3367 = vmatprep.subr.mxu0 0.0
    %v3368 = vand.u32 %v19, 4294901760
    %v3369 = vsub.f32 %v19, %v3368
    %v3370 = vand.u32 %v3369, 4294901760
    %v3371 = vsub.f32 %v3369, %v3370
    %v3372 = vand.u32 %v3371, 4294901760
    %3373 = vmatpush1.msra.mxu0 %v3372
    %3374 = vmatprep.subr.mxu0 0.0
    %3375 = vmatpush2.msra.mxu0 0.0
    %3376 = vmatprep.subr.mxu0 0.0
    %3377 = vmatpush2.msra.mxu0 0.0
    %3378 = vmatprep.subr.mxu0 0.0
    %3379 = vmatpush2.msra.mxu0 0.0
    %3380 = vmatprep.subr.mxu0 0.0
    %3381 = vmatpush2.msra.mxu0 0.0
    %3382 = vmatprep.subr.mxu0 0.0
    %3383 = vmatpush2.msra.mxu0 0.0
    %3384 = vmatprep.subr.mxu0 0.0
    %3385 = vmatpush2.msra.mxu0 0.0
    %3386 = vmatprep.subr.mxu0 0.0
    %3387 = vmatpush2.msra.mxu0 0.0
    %3388 = vmatprep.subr.mxu0 0.0
    %3389 = vmatpush2.msra.mxu0 0.0
    %3390 = vmatprep.subr.mxu0 0.0
    %3391 = vmatpush2.msra.mxu0 0.0
    %3392 = vmatprep.subr.mxu0 0.0
    %3393 = vmatpush2.msra.mxu0 0.0
    %3394 = vmatprep.subr.mxu0 0.0
    %3395 = vmatpush2.msra.mxu0 0.0
    %3396 = vmatprep.subr.mxu0 0.0
    %3397 = vmatpush2.msra.mxu0 0.0
    %3398 = vmatprep.subr.mxu0 0.0
    %3399 = vmatpush2.msra.mxu0 0.0
    %3400 = vmatprep.subr.mxu0 0.0
    %3401 = vmatpush2.msra.mxu0 0.0
    %3402 = vmatprep.subr.mxu0 0.0
    %3403 = vmatpush2.msra.mxu0 0.0
    %3404 = vmatprep.subr.mxu0 0.0
    %3405 = vmatpush2.msra.mxu0 0.0
    %3406 = vmatprep.mubr.f32.mxu0 0.0
    %v3407 = vand.u32 %v3241, 4294901760
    %3408 = vmatmul.mubr.f32.gmra.mxu0 %v3407
    %v3409 = vpop.f32.mrf.mxu0
    %v3410 = vadd.f32 %v3319, %v3409
    %v3411 = vpop.f32.mrf.mxu0
    %3412 = vdwg.mxu0
    %3413 = vmatprep.subr.mxu0 0.0
    %3414 = vmatpush1.msra.mxu0 0.0
    %3415 = vmatprep.subr.mxu0 0.0
    %3416 = vmatpush1.msra.mxu0 0.0
    %3417 = vmatprep.subr.mxu0 0.0
    %3418 = vmatpush1.msra.mxu0 0.0
    %3419 = vmatprep.subr.mxu0 0.0
    %3420 = vmatpush1.msra.mxu0 0.0
    %3421 = vmatprep.subr.mxu0 0.0
    %3422 = vmatpush1.msra.mxu0 0.0
    %3423 = vmatprep.subr.mxu0 0.0
    %3424 = vmatpush1.msra.mxu0 0.0
    %3425 = vmatprep.subr.mxu0 0.0
    %3426 = vmatpush1.msra.mxu0 0.0
    %3427 = vmatprep.subr.mxu0 0.0
    %3428 = vmatpush1.msra.mxu0 0.0
    %3429 = vmatprep.subr.mxu0 0.0
    %3430 = vmatpush1.msra.mxu0 0.0
    %3431 = vmatprep.subr.mxu0 0.0
    %3432 = vmatpush1.msra.mxu0 0.0
    %3433 = vmatprep.subr.mxu0 0.0
    %3434 = vmatpush1.msra.mxu0 0.0
    %3435 = vmatprep.subr.mxu0 0.0
    %3436 = vmatpush1.msra.mxu0 0.0
    %3437 = vmatprep.subr.mxu0 0.0
    %v3438 = vand.u32 %v22, 4294901760
    %v3439 = vsub.f32 %v22, %v3438
    %3440 = vmatpush1.msra.mxu0 %v3439
    %3441 = vmatprep.subr.mxu0 0.0
    %v3442 = vand.u32 %v21, 4294901760
    %v3443 = vsub.f32 %v21, %v3442
    %3444 = vmatpush1.msra.mxu0 %v3443
    %3445 = vmatprep.subr.mxu0 0.0
    %v3446 = vand.u32 %v20, 4294901760
    %v3447 = vsub.f32 %v20, %v3446
    %3448 = vmatpush1.msra.mxu0 %v3447
    %3449 = vmatprep.subr.mxu0 0.0
    %v3450 = vand.u32 %v19, 4294901760
    %v3451 = vsub.f32 %v19, %v3450
    %3452 = vmatpush1.msra.mxu0 %v3451
    %3453 = vmatprep.subr.mxu0 0.0
    %3454 = vmatpush2.msra.mxu0 0.0
    %3455 = vmatprep.subr.mxu0 0.0
    %3456 = vmatpush2.msra.mxu0 0.0
    %3457 = vmatprep.subr.mxu0 0.0
    %3458 = vmatpush2.msra.mxu0 0.0
    %3459 = vmatprep.subr.mxu0 0.0
    %3460 = vmatpush2.msra.mxu0 0.0
    %3461 = vmatprep.subr.mxu0 0.0
    %3462 = vmatpush2.msra.mxu0 0.0
    %3463 = vmatprep.subr.mxu0 0.0
    %3464 = vmatpush2.msra.mxu0 0.0
    %3465 = vmatprep.subr.mxu0 0.0
    %3466 = vmatpush2.msra.mxu0 0.0
    %3467 = vmatprep.subr.mxu0 0.0
    %3468 = vmatpush2.msra.mxu0 0.0
    %3469 = vmatprep.subr.mxu0 0.0
    %3470 = vmatpush2.msra.mxu0 0.0
    %3471 = vmatprep.subr.mxu0 0.0
    %3472 = vmatpush2.msra.mxu0 0.0
    %3473 = vmatprep.subr.mxu0 0.0
    %3474 = vmatpush2.msra.mxu0 0.0
    %3475 = vmatprep.subr.mxu0 0.0
    %3476 = vmatpush2.msra.mxu0 0.0
    %3477 = vmatprep.subr.mxu0 0.0
    %3478 = vmatpush2.msra.mxu0 0.0
    %3479 = vmatprep.subr.mxu0 0.0
    %3480 = vmatpush2.msra.mxu0 0.0
    %3481 = vmatprep.subr.mxu0 0.0
    %3482 = vmatpush2.msra.mxu0 0.0
    %3483 = vmatprep.subr.mxu0 0.0
    %3484 = vmatpush2.msra.mxu0 0.0
    %3485 = vmatprep.mubr.f32.mxu0 0.0
    %v3486 = vand.u32 %v3241, 4294901760
    %v3487 = vsub.f32 %v3241, %v3486
    %3488 = vmatmul.mubr.f32.gmra.mxu0 %v3487
    %v3489 = vpop.f32.mrf.mxu0
    %v3490 = vadd.f32 %v3410, %v3489
    %v3491 = vpop.f32.mrf.mxu0
    %3492 = vdwg.mxu0
    %3493 = vmatprep.subr.mxu0 0.0
    %3494 = vmatpush1.msra.mxu0 0.0
    %3495 = vmatprep.subr.mxu0 0.0
    %3496 = vmatpush1.msra.mxu0 0.0
    %3497 = vmatprep.subr.mxu0 0.0
    %3498 = vmatpush1.msra.mxu0 0.0
    %3499 = vmatprep.subr.mxu0 0.0
    %3500 = vmatpush1.msra.mxu0 0.0
    %3501 = vmatprep.subr.mxu0 0.0
    %3502 = vmatpush1.msra.mxu0 0.0
    %3503 = vmatprep.subr.mxu0 0.0
    %3504 = vmatpush1.msra.mxu0 0.0
    %3505 = vmatprep.subr.mxu0 0.0
    %3506 = vmatpush1.msra.mxu0 0.0
    %3507 = vmatprep.subr.mxu0 0.0
    %3508 = vmatpush1.msra.mxu0 0.0
    %3509 = vmatprep.subr.mxu0 0.0
    %3510 = vmatpush1.msra.mxu0 0.0
    %3511 = vmatprep.subr.mxu0 0.0
    %3512 = vmatpush1.msra.mxu0 0.0
    %3513 = vmatprep.subr.mxu0 0.0
    %3514 = vmatpush1.msra.mxu0 0.0
    %3515 = vmatprep.subr.mxu0 0.0
    %3516 = vmatpush1.msra.mxu0 0.0
    %3517 = vmatprep.subr.mxu0 0.0
    %v3518 = vand.u32 %v22, 4294901760
    %3519 = vmatpush1.msra.mxu0 %v3518
    %3520 = vmatprep.subr.mxu0 0.0
    %v3521 = vand.u32 %v21, 4294901760
    %3522 = vmatpush1.msra.mxu0 %v3521
    %3523 = vmatprep.subr.mxu0 0.0
    %v3524 = vand.u32 %v20, 4294901760
    %3525 = vmatpush1.msra.mxu0 %v3524
    %3526 = vmatprep.subr.mxu0 0.0
    %v3527 = vand.u32 %v19, 4294901760
    %3528 = vmatpush1.msra.mxu0 %v3527
    %3529 = vmatprep.subr.mxu0 0.0
    %3530 = vmatpush2.msra.mxu0 0.0
    %3531 = vmatprep.subr.mxu0 0.0
    %3532 = vmatpush2.msra.mxu0 0.0
    %3533 = vmatprep.subr.mxu0 0.0
    %3534 = vmatpush2.msra.mxu0 0.0
    %3535 = vmatprep.subr.mxu0 0.0
    %3536 = vmatpush2.msra.mxu0 0.0
    %3537 = vmatprep.subr.mxu0 0.0
    %3538 = vmatpush2.msra.mxu0 0.0
    %3539 = vmatprep.subr.mxu0 0.0
    %3540 = vmatpush2.msra.mxu0 0.0
    %3541 = vmatprep.subr.mxu0 0.0
    %3542 = vmatpush2.msra.mxu0 0.0
    %3543 = vmatprep.subr.mxu0 0.0
    %3544 = vmatpush2.msra.mxu0 0.0
    %3545 = vmatprep.subr.mxu0 0.0
    %3546 = vmatpush2.msra.mxu0 0.0
    %3547 = vmatprep.subr.mxu0 0.0
    %3548 = vmatpush2.msra.mxu0 0.0
    %3549 = vmatprep.subr.mxu0 0.0
    %3550 = vmatpush2.msra.mxu0 0.0
    %3551 = vmatprep.subr.mxu0 0.0
    %3552 = vmatpush2.msra.mxu0 0.0
    %3553 = vmatprep.subr.mxu0 0.0
    %3554 = vmatpush2.msra.mxu0 0.0
    %3555 = vmatprep.subr.mxu0 0.0
    %3556 = vmatpush2.msra.mxu0 0.0
    %3557 = vmatprep.subr.mxu0 0.0
    %3558 = vmatpush2.msra.mxu0 0.0
    %3559 = vmatprep.subr.mxu0 0.0
    %3560 = vmatpush2.msra.mxu0 0.0
    %3561 = vmatprep.mubr.f32.mxu0 0.0
    %v3562 = vand.u32 %v3241, 4294901760
    %v3563 = vsub.f32 %v3241, %v3562
    %v3564 = vand.u32 %v3563, 4294901760
    %3565 = vmatmul.mubr.f32.gmra.mxu0 %v3564
    %v3566 = vpop.f32.mrf.mxu0
    %v3567 = vadd.f32 %v3490, %v3566
    %v3568 = vpop.f32.mrf.mxu0
    %3569 = vdwg.mxu0
    %3570 = vmatprep.subr.mxu0 0.0
    %3571 = vmatpush1.msra.mxu0 0.0
    %3572 = vmatprep.subr.mxu0 0.0
    %3573 = vmatpush1.msra.mxu0 0.0
    %3574 = vmatprep.subr.mxu0 0.0
    %3575 = vmatpush1.msra.mxu0 0.0
    %3576 = vmatprep.subr.mxu0 0.0
    %3577 = vmatpush1.msra.mxu0 0.0
    %3578 = vmatprep.subr.mxu0 0.0
    %3579 = vmatpush1.msra.mxu0 0.0
    %3580 = vmatprep.subr.mxu0 0.0
    %3581 = vmatpush1.msra.mxu0 0.0
    %3582 = vmatprep.subr.mxu0 0.0
    %3583 = vmatpush1.msra.mxu0 0.0
    %3584 = vmatprep.subr.mxu0 0.0
    %3585 = vmatpush1.msra.mxu0 0.0
    %3586 = vmatprep.subr.mxu0 0.0
    %3587 = vmatpush1.msra.mxu0 0.0
    %3588 = vmatprep.subr.mxu0 0.0
    %3589 = vmatpush1.msra.mxu0 0.0
    %3590 = vmatprep.subr.mxu0 0.0
    %3591 = vmatpush1.msra.mxu0 0.0
    %3592 = vmatprep.subr.mxu0 0.0
    %3593 = vmatpush1.msra.mxu0 0.0
    %3594 = vmatprep.subr.mxu0 0.0
    %v3595 = vand.u32 %v22, 4294901760
    %v3596 = vsub.f32 %v22, %v3595
    %v3597 = vand.u32 %v3596, 4294901760
    %3598 = vmatpush1.msra.mxu0 %v3597
    %3599 = vmatprep.subr.mxu0 0.0
    %v3600 = vand.u32 %v21, 4294901760
    %v3601 = vsub.f32 %v21, %v3600
    %v3602 = vand.u32 %v3601, 4294901760
    %3603 = vmatpush1.msra.mxu0 %v3602
    %3604 = vmatprep.subr.mxu0 0.0
    %v3605 = vand.u32 %v20, 4294901760
    %v3606 = vsub.f32 %v20, %v3605
    %v3607 = vand.u32 %v3606, 4294901760
    %3608 = vmatpush1.msra.mxu0 %v3607
    %3609 = vmatprep.subr.mxu0 0.0
    %v3610 = vand.u32 %v19, 4294901760
    %v3611 = vsub.f32 %v19, %v3610
    %v3612 = vand.u32 %v3611, 4294901760
    %3613 = vmatpush1.msra.mxu0 %v3612
    %3614 = vmatprep.subr.mxu0 0.0
    %3615 = vmatpush2.msra.mxu0 0.0
    %3616 = vmatprep.subr.mxu0 0.0
    %3617 = vmatpush2.msra.mxu0 0.0
    %3618 = vmatprep.subr.mxu0 0.0
    %3619 = vmatpush2.msra.mxu0 0.0
    %3620 = vmatprep.subr.mxu0 0.0
    %3621 = vmatpush2.msra.mxu0 0.0
    %3622 = vmatprep.subr.mxu0 0.0
    %3623 = vmatpush2.msra.mxu0 0.0
    %3624 = vmatprep.subr.mxu0 0.0
    %3625 = vmatpush2.msra.mxu0 0.0
    %3626 = vmatprep.subr.mxu0 0.0
    %3627 = vmatpush2.msra.mxu0 0.0
    %3628 = vmatprep.subr.mxu0 0.0
    %3629 = vmatpush2.msra.mxu0 0.0
    %3630 = vmatprep.subr.mxu0 0.0
    %3631 = vmatpush2.msra.mxu0 0.0
    %3632 = vmatprep.subr.mxu0 0.0
    %3633 = vmatpush2.msra.mxu0 0.0
    %3634 = vmatprep.subr.mxu0 0.0
    %3635 = vmatpush2.msra.mxu0 0.0
    %3636 = vmatprep.subr.mxu0 0.0
    %3637 = vmatpush2.msra.mxu0 0.0
    %3638 = vmatprep.subr.mxu0 0.0
    %3639 = vmatpush2.msra.mxu0 0.0
    %3640 = vmatprep.subr.mxu0 0.0
    %3641 = vmatpush2.msra.mxu0 0.0
    %3642 = vmatprep.subr.mxu0 0.0
    %3643 = vmatpush2.msra.mxu0 0.0
    %3644 = vmatprep.subr.mxu0 0.0
    %3645 = vmatpush2.msra.mxu0 0.0
    %3646 = vmatprep.mubr.f32.mxu0 0.0
    %v3647 = vand.u32 %v3241, 4294901760
    %3648 = vmatmul.mubr.f32.gmra.mxu0 %v3647
    %v3649 = vpop.f32.mrf.mxu0
    %v3650 = vadd.f32 %v3567, %v3649
    %v3651 = vpop.f32.mrf.mxu0
    %3652 = vdwg.mxu0
    %3653 = vmatprep.subr.mxu0 0.0
    %3654 = vmatpush1.msra.mxu0 0.0
    %3655 = vmatprep.subr.mxu0 0.0
    %3656 = vmatpush1.msra.mxu0 0.0
    %3657 = vmatprep.subr.mxu0 0.0
    %3658 = vmatpush1.msra.mxu0 0.0
    %3659 = vmatprep.subr.mxu0 0.0
    %3660 = vmatpush1.msra.mxu0 0.0
    %3661 = vmatprep.subr.mxu0 0.0
    %3662 = vmatpush1.msra.mxu0 0.0
    %3663 = vmatprep.subr.mxu0 0.0
    %3664 = vmatpush1.msra.mxu0 0.0
    %3665 = vmatprep.subr.mxu0 0.0
    %3666 = vmatpush1.msra.mxu0 0.0
    %3667 = vmatprep.subr.mxu0 0.0
    %3668 = vmatpush1.msra.mxu0 0.0
    %3669 = vmatprep.subr.mxu0 0.0
    %3670 = vmatpush1.msra.mxu0 0.0
    %3671 = vmatprep.subr.mxu0 0.0
    %3672 = vmatpush1.msra.mxu0 0.0
    %3673 = vmatprep.subr.mxu0 0.0
    %3674 = vmatpush1.msra.mxu0 0.0
    %3675 = vmatprep.subr.mxu0 0.0
    %3676 = vmatpush1.msra.mxu0 0.0
    %3677 = vmatprep.subr.mxu0 0.0
    %v3678 = vand.u32 %v22, 4294901760
    %3679 = vmatpush1.msra.mxu0 %v3678
    %3680 = vmatprep.subr.mxu0 0.0
    %v3681 = vand.u32 %v21, 4294901760
    %3682 = vmatpush1.msra.mxu0 %v3681
    %3683 = vmatprep.subr.mxu0 0.0
    %v3684 = vand.u32 %v20, 4294901760
    %3685 = vmatpush1.msra.mxu0 %v3684
    %3686 = vmatprep.subr.mxu0 0.0
    %v3687 = vand.u32 %v19, 4294901760
    %3688 = vmatpush1.msra.mxu0 %v3687
    %3689 = vmatprep.subr.mxu0 0.0
    %3690 = vmatpush2.msra.mxu0 0.0
    %3691 = vmatprep.subr.mxu0 0.0
    %3692 = vmatpush2.msra.mxu0 0.0
    %3693 = vmatprep.subr.mxu0 0.0
    %3694 = vmatpush2.msra.mxu0 0.0
    %3695 = vmatprep.subr.mxu0 0.0
    %3696 = vmatpush2.msra.mxu0 0.0
    %3697 = vmatprep.subr.mxu0 0.0
    %3698 = vmatpush2.msra.mxu0 0.0
    %3699 = vmatprep.subr.mxu0 0.0
    %3700 = vmatpush2.msra.mxu0 0.0
    %3701 = vmatprep.subr.mxu0 0.0
    %3702 = vmatpush2.msra.mxu0 0.0
    %3703 = vmatprep.subr.mxu0 0.0
    %3704 = vmatpush2.msra.mxu0 0.0
    %3705 = vmatprep.subr.mxu0 0.0
    %3706 = vmatpush2.msra.mxu0 0.0
    %3707 = vmatprep.subr.mxu0 0.0
    %3708 = vmatpush2.msra.mxu0 0.0
    %3709 = vmatprep.subr.mxu0 0.0
    %3710 = vmatpush2.msra.mxu0 0.0
    %3711 = vmatprep.subr.mxu0 0.0
    %3712 = vmatpush2.msra.mxu0 0.0
    %3713 = vmatprep.subr.mxu0 0.0
    %3714 = vmatpush2.msra.mxu0 0.0
    %3715 = vmatprep.subr.mxu0 0.0
    %3716 = vmatpush2.msra.mxu0 0.0
    %3717 = vmatprep.subr.mxu0 0.0
    %3718 = vmatpush2.msra.mxu0 0.0
    %3719 = vmatprep.subr.mxu0 0.0
    %3720 = vmatpush2.msra.mxu0 0.0
    %3721 = vmatprep.mubr.f32.mxu0 0.0
    %v3722 = vand.u32 %v3241, 4294901760
    %3723 = vmatmul.mubr.f32.gmra.mxu0 %v3722
    %v3724 = vpop.f32.mrf.mxu0
    %v3725 = vadd.f32 %v3650, %v3724
    %v3726 = vpop.f32.mrf.mxu0
    %3727 = vdwg.mxu0
    %v3728 = vadd.f32 %v3239, %v3725
    %v3729 = vxor.u32 %v3728, 2147483648
    %v3730 = vmul.f32 %v3729, 1.442695
    %v3731 = vpow.pop %v3730
    %v3732 = vadd.f32 %v3731, 1.0
    %v3733 = vrcp.pop %v3732
    %v3734 = vmul.f32 1.0, %v3733
    %v3735 = vtanh.pop %v3728
    %3737 = vrot.lane.b32.xlu0 %v3229, 32
    %v3738 = vpop.permute.xlu0 %3737
    %v3740 = vmul.f32 %v3734, %v3738
    %3742 = vrot.lane.b32.xlu0 %v3735, 64
    %v3743 = vpop.permute.xlu0 %3742
    %v3745 = vmul.f32 %v3734, %v3743
    %3747 = vrot.lane.b32.xlu0 %v3745, 32
    %v3748 = vpop.permute.xlu0 %3747
    %v3750 = vadd.f32 %v3740, %v3748
    %v3751 = vtanh.pop %v3750
    %3753 = vrot.lane.b32.xlu0 %v3751, 64
    %v3754 = vpop.permute.xlu0 %3753
    %v3756 = vmul.f32 %v3734, %v3754
    %v3757 = vsel %vm29, 6, 1
    %vm3758 = vcmp.lt.s32.totalorder %v3757, %v26
    %3760 = vrot.lane.b32.xlu0 %v3750, 96
    %v3761 = vpop.permute.xlu0 %3760
    %v3763 = vsel %vm3758, %v3761, %v3229
    %3765 = vrot.lane.b32.xlu0 %v3756, 32
    %v3766 = vpop.permute.xlu0 %3765
    %v3768 = vsel %vm3758, %v3766, %v3234
    %v3769 = vsel %vm3758, %v3766, 0.0
    %3770 = vst.msk [vmem:[%s1096] sm:$0x3] %vm557, %v3769
    %3771 = vst.msk [vmem:[%s1094] sm:$0x3] %vm560, %v3769
    %s3772 = scalar_lea.vmem %s1, 14
    %v3773 = vld [vmem:[%s3772] sm:$0x3]
    %v3775 = vsel %vm31, %v3768, 0
    %3777 = vmatprep.subr.mxu0 0.0
    %3778 = vmatpush1.msra.mxu0 0.0
    %3779 = vmatprep.subr.mxu0 0.0
    %3780 = vmatpush1.msra.mxu0 0.0
    %3781 = vmatprep.subr.mxu0 0.0
    %3782 = vmatpush1.msra.mxu0 0.0
    %3783 = vmatprep.subr.mxu0 0.0
    %3784 = vmatpush1.msra.mxu0 0.0
    %3785 = vmatprep.subr.mxu0 0.0
    %3786 = vmatpush1.msra.mxu0 0.0
    %3787 = vmatprep.subr.mxu0 0.0
    %3788 = vmatpush1.msra.mxu0 0.0
    %3789 = vmatprep.subr.mxu0 0.0
    %3790 = vmatpush1.msra.mxu0 0.0
    %3791 = vmatprep.subr.mxu0 0.0
    %3792 = vmatpush1.msra.mxu0 0.0
    %3793 = vmatprep.subr.mxu0 0.0
    %3794 = vmatpush1.msra.mxu0 0.0
    %3795 = vmatprep.subr.mxu0 0.0
    %3796 = vmatpush1.msra.mxu0 0.0
    %3797 = vmatprep.subr.mxu0 0.0
    %3798 = vmatpush1.msra.mxu0 0.0
    %3799 = vmatprep.subr.mxu0 0.0
    %3800 = vmatpush1.msra.mxu0 0.0
    %3801 = vmatprep.subr.mxu0 0.0
    %v3802 = vand.u32 %v22, 4294901760
    %3803 = vmatpush1.msra.mxu0 %v3802
    %3804 = vmatprep.subr.mxu0 0.0
    %v3805 = vand.u32 %v21, 4294901760
    %3806 = vmatpush1.msra.mxu0 %v3805
    %3807 = vmatprep.subr.mxu0 0.0
    %v3808 = vand.u32 %v20, 4294901760
    %3809 = vmatpush1.msra.mxu0 %v3808
    %3810 = vmatprep.subr.mxu0 0.0
    %v3811 = vand.u32 %v19, 4294901760
    %3812 = vmatpush1.msra.mxu0 %v3811
    %3813 = vmatprep.subr.mxu0 0.0
    %3814 = vmatpush2.msra.mxu0 0.0
    %3815 = vmatprep.subr.mxu0 0.0
    %3816 = vmatpush2.msra.mxu0 0.0
    %3817 = vmatprep.subr.mxu0 0.0
    %3818 = vmatpush2.msra.mxu0 0.0
    %3819 = vmatprep.subr.mxu0 0.0
    %3820 = vmatpush2.msra.mxu0 0.0
    %3821 = vmatprep.subr.mxu0 0.0
    %3822 = vmatpush2.msra.mxu0 0.0
    %3823 = vmatprep.subr.mxu0 0.0
    %3824 = vmatpush2.msra.mxu0 0.0
    %3825 = vmatprep.subr.mxu0 0.0
    %3826 = vmatpush2.msra.mxu0 0.0
    %3827 = vmatprep.subr.mxu0 0.0
    %3828 = vmatpush2.msra.mxu0 0.0
    %3829 = vmatprep.subr.mxu0 0.0
    %3830 = vmatpush2.msra.mxu0 0.0
    %3831 = vmatprep.subr.mxu0 0.0
    %3832 = vmatpush2.msra.mxu0 0.0
    %3833 = vmatprep.subr.mxu0 0.0
    %3834 = vmatpush2.msra.mxu0 0.0
    %3835 = vmatprep.subr.mxu0 0.0
    %3836 = vmatpush2.msra.mxu0 0.0
    %3837 = vmatprep.subr.mxu0 0.0
    %3838 = vmatpush2.msra.mxu0 0.0
    %3839 = vmatprep.subr.mxu0 0.0
    %3840 = vmatpush2.msra.mxu0 0.0
    %3841 = vmatprep.subr.mxu0 0.0
    %3842 = vmatpush2.msra.mxu0 0.0
    %3843 = vmatprep.subr.mxu0 0.0
    %3844 = vmatpush2.msra.mxu0 0.0
    %3845 = vmatprep.mubr.f32.mxu0 0.0
    %v3846 = vand.u32 %v3775, 4294901760
    %v3847 = vsub.f32 %v3775, %v3846
    %v3848 = vand.u32 %v3847, 4294901760
    %v3849 = vsub.f32 %v3847, %v3848
    %v3850 = vand.u32 %v3849, 4294901760
    %3851 = vmatmul.mubr.f32.gmra.mxu0 %v3850
    %v3852 = vpop.f32.mrf.mxu0
    %v3853 = vadd.f32 0.0, %v3852
    %v3854 = vpop.f32.mrf.mxu0
    %3855 = vdwg.mxu0
    %3856 = vmatprep.subr.mxu0 0.0
    %3857 = vmatpush1.msra.mxu0 0.0
    %3858 = vmatprep.subr.mxu0 0.0
    %3859 = vmatpush1.msra.mxu0 0.0
    %3860 = vmatprep.subr.mxu0 0.0
    %3861 = vmatpush1.msra.mxu0 0.0
    %3862 = vmatprep.subr.mxu0 0.0
    %3863 = vmatpush1.msra.mxu0 0.0
    %3864 = vmatprep.subr.mxu0 0.0
    %3865 = vmatpush1.msra.mxu0 0.0
    %3866 = vmatprep.subr.mxu0 0.0
    %3867 = vmatpush1.msra.mxu0 0.0
    %3868 = vmatprep.subr.mxu0 0.0
    %3869 = vmatpush1.msra.mxu0 0.0
    %3870 = vmatprep.subr.mxu0 0.0
    %3871 = vmatpush1.msra.mxu0 0.0
    %3872 = vmatprep.subr.mxu0 0.0
    %3873 = vmatpush1.msra.mxu0 0.0
    %3874 = vmatprep.subr.mxu0 0.0
    %3875 = vmatpush1.msra.mxu0 0.0
    %3876 = vmatprep.subr.mxu0 0.0
    %3877 = vmatpush1.msra.mxu0 0.0
    %3878 = vmatprep.subr.mxu0 0.0
    %3879 = vmatpush1.msra.mxu0 0.0
    %3880 = vmatprep.subr.mxu0 0.0
    %v3881 = vand.u32 %v22, 4294901760
    %v3882 = vsub.f32 %v22, %v3881
    %v3883 = vand.u32 %v3882, 4294901760
    %v3884 = vsub.f32 %v3882, %v3883
    %v3885 = vand.u32 %v3884, 4294901760
    %3886 = vmatpush1.msra.mxu0 %v3885
    %3887 = vmatprep.subr.mxu0 0.0
    %v3888 = vand.u32 %v21, 4294901760
    %v3889 = vsub.f32 %v21, %v3888
    %v3890 = vand.u32 %v3889, 4294901760
    %v3891 = vsub.f32 %v3889, %v3890
    %v3892 = vand.u32 %v3891, 4294901760
    %3893 = vmatpush1.msra.mxu0 %v3892
    %3894 = vmatprep.subr.mxu0 0.0
    %v3895 = vand.u32 %v20, 4294901760
    %v3896 = vsub.f32 %v20, %v3895
    %v3897 = vand.u32 %v3896, 4294901760
    %v3898 = vsub.f32 %v3896, %v3897
    %v3899 = vand.u32 %v3898, 4294901760
    %3900 = vmatpush1.msra.mxu0 %v3899
    %3901 = vmatprep.subr.mxu0 0.0
    %v3902 = vand.u32 %v19, 4294901760
    %v3903 = vsub.f32 %v19, %v3902
    %v3904 = vand.u32 %v3903, 4294901760
    %v3905 = vsub.f32 %v3903, %v3904
    %v3906 = vand.u32 %v3905, 4294901760
    %3907 = vmatpush1.msra.mxu0 %v3906
    %3908 = vmatprep.subr.mxu0 0.0
    %3909 = vmatpush2.msra.mxu0 0.0
    %3910 = vmatprep.subr.mxu0 0.0
    %3911 = vmatpush2.msra.mxu0 0.0
    %3912 = vmatprep.subr.mxu0 0.0
    %3913 = vmatpush2.msra.mxu0 0.0
    %3914 = vmatprep.subr.mxu0 0.0
    %3915 = vmatpush2.msra.mxu0 0.0
    %3916 = vmatprep.subr.mxu0 0.0
    %3917 = vmatpush2.msra.mxu0 0.0
    %3918 = vmatprep.subr.mxu0 0.0
    %3919 = vmatpush2.msra.mxu0 0.0
    %3920 = vmatprep.subr.mxu0 0.0
    %3921 = vmatpush2.msra.mxu0 0.0
    %3922 = vmatprep.subr.mxu0 0.0
    %3923 = vmatpush2.msra.mxu0 0.0
    %3924 = vmatprep.subr.mxu0 0.0
    %3925 = vmatpush2.msra.mxu0 0.0
    %3926 = vmatprep.subr.mxu0 0.0
    %3927 = vmatpush2.msra.mxu0 0.0
    %3928 = vmatprep.subr.mxu0 0.0
    %3929 = vmatpush2.msra.mxu0 0.0
    %3930 = vmatprep.subr.mxu0 0.0
    %3931 = vmatpush2.msra.mxu0 0.0
    %3932 = vmatprep.subr.mxu0 0.0
    %3933 = vmatpush2.msra.mxu0 0.0
    %3934 = vmatprep.subr.mxu0 0.0
    %3935 = vmatpush2.msra.mxu0 0.0
    %3936 = vmatprep.subr.mxu0 0.0
    %3937 = vmatpush2.msra.mxu0 0.0
    %3938 = vmatprep.subr.mxu0 0.0
    %3939 = vmatpush2.msra.mxu0 0.0
    %3940 = vmatprep.mubr.f32.mxu0 0.0
    %v3941 = vand.u32 %v3775, 4294901760
    %3942 = vmatmul.mubr.f32.gmra.mxu0 %v3941
    %v3943 = vpop.f32.mrf.mxu0
    %v3944 = vadd.f32 %v3853, %v3943
    %v3945 = vpop.f32.mrf.mxu0
    %3946 = vdwg.mxu0
    %3947 = vmatprep.subr.mxu0 0.0
    %3948 = vmatpush1.msra.mxu0 0.0
    %3949 = vmatprep.subr.mxu0 0.0
    %3950 = vmatpush1.msra.mxu0 0.0
    %3951 = vmatprep.subr.mxu0 0.0
    %3952 = vmatpush1.msra.mxu0 0.0
    %3953 = vmatprep.subr.mxu0 0.0
    %3954 = vmatpush1.msra.mxu0 0.0
    %3955 = vmatprep.subr.mxu0 0.0
    %3956 = vmatpush1.msra.mxu0 0.0
    %3957 = vmatprep.subr.mxu0 0.0
    %3958 = vmatpush1.msra.mxu0 0.0
    %3959 = vmatprep.subr.mxu0 0.0
    %3960 = vmatpush1.msra.mxu0 0.0
    %3961 = vmatprep.subr.mxu0 0.0
    %3962 = vmatpush1.msra.mxu0 0.0
    %3963 = vmatprep.subr.mxu0 0.0
    %3964 = vmatpush1.msra.mxu0 0.0
    %3965 = vmatprep.subr.mxu0 0.0
    %3966 = vmatpush1.msra.mxu0 0.0
    %3967 = vmatprep.subr.mxu0 0.0
    %3968 = vmatpush1.msra.mxu0 0.0
    %3969 = vmatprep.subr.mxu0 0.0
    %3970 = vmatpush1.msra.mxu0 0.0
    %3971 = vmatprep.subr.mxu0 0.0
    %v3972 = vand.u32 %v22, 4294901760
    %v3973 = vsub.f32 %v22, %v3972
    %3974 = vmatpush1.msra.mxu0 %v3973
    %3975 = vmatprep.subr.mxu0 0.0
    %v3976 = vand.u32 %v21, 4294901760
    %v3977 = vsub.f32 %v21, %v3976
    %3978 = vmatpush1.msra.mxu0 %v3977
    %3979 = vmatprep.subr.mxu0 0.0
    %v3980 = vand.u32 %v20, 4294901760
    %v3981 = vsub.f32 %v20, %v3980
    %3982 = vmatpush1.msra.mxu0 %v3981
    %3983 = vmatprep.subr.mxu0 0.0
    %v3984 = vand.u32 %v19, 4294901760
    %v3985 = vsub.f32 %v19, %v3984
    %3986 = vmatpush1.msra.mxu0 %v3985
    %3987 = vmatprep.subr.mxu0 0.0
    %3988 = vmatpush2.msra.mxu0 0.0
    %3989 = vmatprep.subr.mxu0 0.0
    %3990 = vmatpush2.msra.mxu0 0.0
    %3991 = vmatprep.subr.mxu0 0.0
    %3992 = vmatpush2.msra.mxu0 0.0
    %3993 = vmatprep.subr.mxu0 0.0
    %3994 = vmatpush2.msra.mxu0 0.0
    %3995 = vmatprep.subr.mxu0 0.0
    %3996 = vmatpush2.msra.mxu0 0.0
    %3997 = vmatprep.subr.mxu0 0.0
    %3998 = vmatpush2.msra.mxu0 0.0
    %3999 = vmatprep.subr.mxu0 0.0
    %4000 = vmatpush2.msra.mxu0 0.0
    %4001 = vmatprep.subr.mxu0 0.0
    %4002 = vmatpush2.msra.mxu0 0.0
    %4003 = vmatprep.subr.mxu0 0.0
    %4004 = vmatpush2.msra.mxu0 0.0
    %4005 = vmatprep.subr.mxu0 0.0
    %4006 = vmatpush2.msra.mxu0 0.0
    %4007 = vmatprep.subr.mxu0 0.0
    %4008 = vmatpush2.msra.mxu0 0.0
    %4009 = vmatprep.subr.mxu0 0.0
    %4010 = vmatpush2.msra.mxu0 0.0
    %4011 = vmatprep.subr.mxu0 0.0
    %4012 = vmatpush2.msra.mxu0 0.0
    %4013 = vmatprep.subr.mxu0 0.0
    %4014 = vmatpush2.msra.mxu0 0.0
    %4015 = vmatprep.subr.mxu0 0.0
    %4016 = vmatpush2.msra.mxu0 0.0
    %4017 = vmatprep.subr.mxu0 0.0
    %4018 = vmatpush2.msra.mxu0 0.0
    %4019 = vmatprep.mubr.f32.mxu0 0.0
    %v4020 = vand.u32 %v3775, 4294901760
    %v4021 = vsub.f32 %v3775, %v4020
    %4022 = vmatmul.mubr.f32.gmra.mxu0 %v4021
    %v4023 = vpop.f32.mrf.mxu0
    %v4024 = vadd.f32 %v3944, %v4023
    %v4025 = vpop.f32.mrf.mxu0
    %4026 = vdwg.mxu0
    %4027 = vmatprep.subr.mxu0 0.0
    %4028 = vmatpush1.msra.mxu0 0.0
    %4029 = vmatprep.subr.mxu0 0.0
    %4030 = vmatpush1.msra.mxu0 0.0
    %4031 = vmatprep.subr.mxu0 0.0
    %4032 = vmatpush1.msra.mxu0 0.0
    %4033 = vmatprep.subr.mxu0 0.0
    %4034 = vmatpush1.msra.mxu0 0.0
    %4035 = vmatprep.subr.mxu0 0.0
    %4036 = vmatpush1.msra.mxu0 0.0
    %4037 = vmatprep.subr.mxu0 0.0
    %4038 = vmatpush1.msra.mxu0 0.0
    %4039 = vmatprep.subr.mxu0 0.0
    %4040 = vmatpush1.msra.mxu0 0.0
    %4041 = vmatprep.subr.mxu0 0.0
    %4042 = vmatpush1.msra.mxu0 0.0
    %4043 = vmatprep.subr.mxu0 0.0
    %4044 = vmatpush1.msra.mxu0 0.0
    %4045 = vmatprep.subr.mxu0 0.0
    %4046 = vmatpush1.msra.mxu0 0.0
    %4047 = vmatprep.subr.mxu0 0.0
    %4048 = vmatpush1.msra.mxu0 0.0
    %4049 = vmatprep.subr.mxu0 0.0
    %4050 = vmatpush1.msra.mxu0 0.0
    %4051 = vmatprep.subr.mxu0 0.0
    %v4052 = vand.u32 %v22, 4294901760
    %4053 = vmatpush1.msra.mxu0 %v4052
    %4054 = vmatprep.subr.mxu0 0.0
    %v4055 = vand.u32 %v21, 4294901760
    %4056 = vmatpush1.msra.mxu0 %v4055
    %4057 = vmatprep.subr.mxu0 0.0
    %v4058 = vand.u32 %v20, 4294901760
    %4059 = vmatpush1.msra.mxu0 %v4058
    %4060 = vmatprep.subr.mxu0 0.0
    %v4061 = vand.u32 %v19, 4294901760
    %4062 = vmatpush1.msra.mxu0 %v4061
    %4063 = vmatprep.subr.mxu0 0.0
    %4064 = vmatpush2.msra.mxu0 0.0
    %4065 = vmatprep.subr.mxu0 0.0
    %4066 = vmatpush2.msra.mxu0 0.0
    %4067 = vmatprep.subr.mxu0 0.0
    %4068 = vmatpush2.msra.mxu0 0.0
    %4069 = vmatprep.subr.mxu0 0.0
    %4070 = vmatpush2.msra.mxu0 0.0
    %4071 = vmatprep.subr.mxu0 0.0
    %4072 = vmatpush2.msra.mxu0 0.0
    %4073 = vmatprep.subr.mxu0 0.0
    %4074 = vmatpush2.msra.mxu0 0.0
    %4075 = vmatprep.subr.mxu0 0.0
    %4076 = vmatpush2.msra.mxu0 0.0
    %4077 = vmatprep.subr.mxu0 0.0
    %4078 = vmatpush2.msra.mxu0 0.0
    %4079 = vmatprep.subr.mxu0 0.0
    %4080 = vmatpush2.msra.mxu0 0.0
    %4081 = vmatprep.subr.mxu0 0.0
    %4082 = vmatpush2.msra.mxu0 0.0
    %4083 = vmatprep.subr.mxu0 0.0
    %4084 = vmatpush2.msra.mxu0 0.0
    %4085 = vmatprep.subr.mxu0 0.0
    %4086 = vmatpush2.msra.mxu0 0.0
    %4087 = vmatprep.subr.mxu0 0.0
    %4088 = vmatpush2.msra.mxu0 0.0
    %4089 = vmatprep.subr.mxu0 0.0
    %4090 = vmatpush2.msra.mxu0 0.0
    %4091 = vmatprep.subr.mxu0 0.0
    %4092 = vmatpush2.msra.mxu0 0.0
    %4093 = vmatprep.subr.mxu0 0.0
    %4094 = vmatpush2.msra.mxu0 0.0
    %4095 = vmatprep.mubr.f32.mxu0 0.0
    %v4096 = vand.u32 %v3775, 4294901760
    %v4097 = vsub.f32 %v3775, %v4096
    %v4098 = vand.u32 %v4097, 4294901760
    %4099 = vmatmul.mubr.f32.gmra.mxu0 %v4098
    %v4100 = vpop.f32.mrf.mxu0
    %v4101 = vadd.f32 %v4024, %v4100
    %v4102 = vpop.f32.mrf.mxu0
    %4103 = vdwg.mxu0
    %4104 = vmatprep.subr.mxu0 0.0
    %4105 = vmatpush1.msra.mxu0 0.0
    %4106 = vmatprep.subr.mxu0 0.0
    %4107 = vmatpush1.msra.mxu0 0.0
    %4108 = vmatprep.subr.mxu0 0.0
    %4109 = vmatpush1.msra.mxu0 0.0
    %4110 = vmatprep.subr.mxu0 0.0
    %4111 = vmatpush1.msra.mxu0 0.0
    %4112 = vmatprep.subr.mxu0 0.0
    %4113 = vmatpush1.msra.mxu0 0.0
    %4114 = vmatprep.subr.mxu0 0.0
    %4115 = vmatpush1.msra.mxu0 0.0
    %4116 = vmatprep.subr.mxu0 0.0
    %4117 = vmatpush1.msra.mxu0 0.0
    %4118 = vmatprep.subr.mxu0 0.0
    %4119 = vmatpush1.msra.mxu0 0.0
    %4120 = vmatprep.subr.mxu0 0.0
    %4121 = vmatpush1.msra.mxu0 0.0
    %4122 = vmatprep.subr.mxu0 0.0
    %4123 = vmatpush1.msra.mxu0 0.0
    %4124 = vmatprep.subr.mxu0 0.0
    %4125 = vmatpush1.msra.mxu0 0.0
    %4126 = vmatprep.subr.mxu0 0.0
    %4127 = vmatpush1.msra.mxu0 0.0
    %4128 = vmatprep.subr.mxu0 0.0
    %v4129 = vand.u32 %v22, 4294901760
    %v4130 = vsub.f32 %v22, %v4129
    %v4131 = vand.u32 %v4130, 4294901760
    %4132 = vmatpush1.msra.mxu0 %v4131
    %4133 = vmatprep.subr.mxu0 0.0
    %v4134 = vand.u32 %v21, 4294901760
    %v4135 = vsub.f32 %v21, %v4134
    %v4136 = vand.u32 %v4135, 4294901760
    %4137 = vmatpush1.msra.mxu0 %v4136
    %4138 = vmatprep.subr.mxu0 0.0
    %v4139 = vand.u32 %v20, 4294901760
    %v4140 = vsub.f32 %v20, %v4139
    %v4141 = vand.u32 %v4140, 4294901760
    %4142 = vmatpush1.msra.mxu0 %v4141
    %4143 = vmatprep.subr.mxu0 0.0
    %v4144 = vand.u32 %v19, 4294901760
    %v4145 = vsub.f32 %v19, %v4144
    %v4146 = vand.u32 %v4145, 4294901760
    %4147 = vmatpush1.msra.mxu0 %v4146
    %4148 = vmatprep.subr.mxu0 0.0
    %4149 = vmatpush2.msra.mxu0 0.0
    %4150 = vmatprep.subr.mxu0 0.0
    %4151 = vmatpush2.msra.mxu0 0.0
    %4152 = vmatprep.subr.mxu0 0.0
    %4153 = vmatpush2.msra.mxu0 0.0
    %4154 = vmatprep.subr.mxu0 0.0
    %4155 = vmatpush2.msra.mxu0 0.0
    %4156 = vmatprep.subr.mxu0 0.0
    %4157 = vmatpush2.msra.mxu0 0.0
    %4158 = vmatprep.subr.mxu0 0.0
    %4159 = vmatpush2.msra.mxu0 0.0
    %4160 = vmatprep.subr.mxu0 0.0
    %4161 = vmatpush2.msra.mxu0 0.0
    %4162 = vmatprep.subr.mxu0 0.0
    %4163 = vmatpush2.msra.mxu0 0.0
    %4164 = vmatprep.subr.mxu0 0.0
    %4165 = vmatpush2.msra.mxu0 0.0
    %4166 = vmatprep.subr.mxu0 0.0
    %4167 = vmatpush2.msra.mxu0 0.0
    %4168 = vmatprep.subr.mxu0 0.0
    %4169 = vmatpush2.msra.mxu0 0.0
    %4170 = vmatprep.subr.mxu0 0.0
    %4171 = vmatpush2.msra.mxu0 0.0
    %4172 = vmatprep.subr.mxu0 0.0
    %4173 = vmatpush2.msra.mxu0 0.0
    %4174 = vmatprep.subr.mxu0 0.0
    %4175 = vmatpush2.msra.mxu0 0.0
    %4176 = vmatprep.subr.mxu0 0.0
    %4177 = vmatpush2.msra.mxu0 0.0
    %4178 = vmatprep.subr.mxu0 0.0
    %4179 = vmatpush2.msra.mxu0 0.0
    %4180 = vmatprep.mubr.f32.mxu0 0.0
    %v4181 = vand.u32 %v3775, 4294901760
    %4182 = vmatmul.mubr.f32.gmra.mxu0 %v4181
    %v4183 = vpop.f32.mrf.mxu0
    %v4184 = vadd.f32 %v4101, %v4183
    %v4185 = vpop.f32.mrf.mxu0
    %4186 = vdwg.mxu0
    %4187 = vmatprep.subr.mxu0 0.0
    %4188 = vmatpush1.msra.mxu0 0.0
    %4189 = vmatprep.subr.mxu0 0.0
    %4190 = vmatpush1.msra.mxu0 0.0
    %4191 = vmatprep.subr.mxu0 0.0
    %4192 = vmatpush1.msra.mxu0 0.0
    %4193 = vmatprep.subr.mxu0 0.0
    %4194 = vmatpush1.msra.mxu0 0.0
    %4195 = vmatprep.subr.mxu0 0.0
    %4196 = vmatpush1.msra.mxu0 0.0
    %4197 = vmatprep.subr.mxu0 0.0
    %4198 = vmatpush1.msra.mxu0 0.0
    %4199 = vmatprep.subr.mxu0 0.0
    %4200 = vmatpush1.msra.mxu0 0.0
    %4201 = vmatprep.subr.mxu0 0.0
    %4202 = vmatpush1.msra.mxu0 0.0
    %4203 = vmatprep.subr.mxu0 0.0
    %4204 = vmatpush1.msra.mxu0 0.0
    %4205 = vmatprep.subr.mxu0 0.0
    %4206 = vmatpush1.msra.mxu0 0.0
    %4207 = vmatprep.subr.mxu0 0.0
    %4208 = vmatpush1.msra.mxu0 0.0
    %4209 = vmatprep.subr.mxu0 0.0
    %4210 = vmatpush1.msra.mxu0 0.0
    %4211 = vmatprep.subr.mxu0 0.0
    %v4212 = vand.u32 %v22, 4294901760
    %4213 = vmatpush1.msra.mxu0 %v4212
    %4214 = vmatprep.subr.mxu0 0.0
    %v4215 = vand.u32 %v21, 4294901760
    %4216 = vmatpush1.msra.mxu0 %v4215
    %4217 = vmatprep.subr.mxu0 0.0
    %v4218 = vand.u32 %v20, 4294901760
    %4219 = vmatpush1.msra.mxu0 %v4218
    %4220 = vmatprep.subr.mxu0 0.0
    %v4221 = vand.u32 %v19, 4294901760
    %4222 = vmatpush1.msra.mxu0 %v4221
    %4223 = vmatprep.subr.mxu0 0.0
    %4224 = vmatpush2.msra.mxu0 0.0
    %4225 = vmatprep.subr.mxu0 0.0
    %4226 = vmatpush2.msra.mxu0 0.0
    %4227 = vmatprep.subr.mxu0 0.0
    %4228 = vmatpush2.msra.mxu0 0.0
    %4229 = vmatprep.subr.mxu0 0.0
    %4230 = vmatpush2.msra.mxu0 0.0
    %4231 = vmatprep.subr.mxu0 0.0
    %4232 = vmatpush2.msra.mxu0 0.0
    %4233 = vmatprep.subr.mxu0 0.0
    %4234 = vmatpush2.msra.mxu0 0.0
    %4235 = vmatprep.subr.mxu0 0.0
    %4236 = vmatpush2.msra.mxu0 0.0
    %4237 = vmatprep.subr.mxu0 0.0
    %4238 = vmatpush2.msra.mxu0 0.0
    %4239 = vmatprep.subr.mxu0 0.0
    %4240 = vmatpush2.msra.mxu0 0.0
    %4241 = vmatprep.subr.mxu0 0.0
    %4242 = vmatpush2.msra.mxu0 0.0
    %4243 = vmatprep.subr.mxu0 0.0
    %4244 = vmatpush2.msra.mxu0 0.0
    %4245 = vmatprep.subr.mxu0 0.0
    %4246 = vmatpush2.msra.mxu0 0.0
    %4247 = vmatprep.subr.mxu0 0.0
    %4248 = vmatpush2.msra.mxu0 0.0
    %4249 = vmatprep.subr.mxu0 0.0
    %4250 = vmatpush2.msra.mxu0 0.0
    %4251 = vmatprep.subr.mxu0 0.0
    %4252 = vmatpush2.msra.mxu0 0.0
    %4253 = vmatprep.subr.mxu0 0.0
    %4254 = vmatpush2.msra.mxu0 0.0
    %4255 = vmatprep.mubr.f32.mxu0 0.0
    %v4256 = vand.u32 %v3775, 4294901760
    %4257 = vmatmul.mubr.f32.gmra.mxu0 %v4256
    %v4258 = vpop.f32.mrf.mxu0
    %v4259 = vadd.f32 %v4184, %v4258
    %v4260 = vpop.f32.mrf.mxu0
    %4261 = vdwg.mxu0
    %v4262 = vadd.f32 %v3773, %v4259
    %v4263 = vxor.u32 %v4262, 2147483648
    %v4264 = vmul.f32 %v4263, 1.442695
    %v4265 = vpow.pop %v4264
    %v4266 = vadd.f32 %v4265, 1.0
    %v4267 = vrcp.pop %v4266
    %v4268 = vmul.f32 1.0, %v4267
    %v4269 = vtanh.pop %v4262
    %4271 = vrot.lane.b32.xlu0 %v3763, 32
    %v4272 = vpop.permute.xlu0 %4271
    %v4274 = vmul.f32 %v4268, %v4272
    %4276 = vrot.lane.b32.xlu0 %v4269, 64
    %v4277 = vpop.permute.xlu0 %4276
    %v4279 = vmul.f32 %v4268, %v4277
    %4281 = vrot.lane.b32.xlu0 %v4279, 32
    %v4282 = vpop.permute.xlu0 %4281
    %v4284 = vadd.f32 %v4274, %v4282
    %v4285 = vtanh.pop %v4284
    %4287 = vrot.lane.b32.xlu0 %v4285, 64
    %v4288 = vpop.permute.xlu0 %4287
    %v4290 = vmul.f32 %v4268, %v4288
    %v4291 = vsel %vm29, 7, 0
    %vm4292 = vcmp.lt.s32.totalorder %v4291, %v26
    %4294 = vrot.lane.b32.xlu0 %v4284, 96
    %v4295 = vpop.permute.xlu0 %4294
    %v4297 = vsel %vm4292, %v4295, %v3763
    %4299 = vrot.lane.b32.xlu0 %v4290, 32
    %v4300 = vpop.permute.xlu0 %4299
    %v4302 = vsel %vm4292, %v4300, %v3768
    %v4303 = vsel %vm4292, %v4300, 0.0
    %4304 = vst.msk [vmem:[%s559] sm:$0x3] %vm557, %v4303
    %4305 = vst.msk [vmem:[%s3] sm:$0x3] %vm560, %v4303
    %4306 = vst.msk [vmem:[#allocation2] sm:$0x3] %vm557, %v4302
    %4308 = vrot.lane.b32.xlu0 %v4302, 112
    %v4309 = vpop.permute.xlu0 %4308
    %s4311 = scalar_lea.vmem [#allocation2], 2
    %4312 = vst.msk [vmem:[%s4311] sm:$0x3] %vm557, %v4309
    %4313 = vst.msk [vmem:[#allocation4] sm:$0x3] %vm557, %v4297
    %4315 = vrot.lane.b32.xlu0 %v4297, 112
    %v4316 = vpop.permute.xlu0 %4315
    %s4318 = scalar_lea.vmem [#allocation4], 2
    %4319 = vst.msk [vmem:[%s4318] sm:$0x3] %vm557, %v4316
    // Predicated region
    $region14: #{word_sequence_forward.1} parent=1 // pred_check
      _
    $region15: #{word_sequence_forward.1} parent=1 // pred_check_branch
      %4321 = sbr.rel (0) target = $region17
    $region16: #{word_sequence_forward.1} parent=1 // pred_region
      _
    $region17: #{word_sequence_forward.1} parent=1 // pred_fallthru
      _
    // Predicated region
    $region18: #{word_sequence_forward.1} parent=1 // pred_check
      _
    $region19: #{word_sequence_forward.1} parent=1 // pred_check_branch
      %4323 = sbr.rel (0) target = $region21
    $region20: #{word_sequence_forward.1} parent=1 // pred_region
      %s4325 = ssub.s32 64, 64
      %4326 = vsyncadd [#allocation3], %s4325
      %s4327 = sshll.u32 [#allocation2], 4
      %s4328 = int_to_ptr.vmem [resolvable:$true] %s4327
      %4333 = dma.vmem_to_hbm [thread:$0]  %s4328, 64, %s4, [#allocation3], 32, 32, 2
    $region21: #{word_sequence_forward.1} parent=1 // pred_fallthru
      _
    // Predicated region
    $region22: #{word_sequence_forward.1} parent=1 // pred_check
      _
    $region23: #{word_sequence_forward.1} parent=1 // pred_check_branch
      %4335 = sbr.rel (0) target = $region25
    $region24: #{word_sequence_forward.1} parent=1 // pred_region
      %s4337 = ssub.s32 64, 64
      %4338 = vsyncadd [#allocation5], %s4337
      %s4339 = sshll.u32 [#allocation4], 4
      %s4340 = int_to_ptr.vmem [resolvable:$true] %s4339
      %4345 = dma.vmem_to_hbm [thread:$0]  %s4340, 64, %s5, [#allocation5], 32, 32, 2
    $region25: #{word_sequence_forward.1} parent=1 // pred_fallthru
      _
    // Predicated region
    $region26: #{word_sequence_forward.1} parent=1 // pred_check
      _
    $region27: #{word_sequence_forward.1} parent=1 // pred_check_branch
      %4347 = sbr.rel (0) target = $region29
    $region28: #{word_sequence_forward.1} parent=1 // pred_region
      _
    $region29: #{word_sequence_forward.1} parent=1 // pred_fallthru
      _
    // Predicated region
    $region30: #{word_sequence_forward.1} parent=1 // pred_check
      _
    $region31: #{word_sequence_forward.1} parent=1 // pred_check_branch
      %4349 = sbr.rel (0) target = $region33
    $region32: #{word_sequence_forward.1} parent=1 // pred_region
      %4350 = dma.done [#allocation3], 64
    $region33: #{word_sequence_forward.1} parent=1 // pred_fallthru
      _
    // Predicated region
    $region34: #{word_sequence_forward.1} parent=1 // pred_check
      _
    $region35: #{word_sequence_forward.1} parent=1 // pred_check_branch
      %4352 = sbr.rel (0) target = $region37
    $region36: #{word_sequence_forward.1} parent=1 // pred_region
      %4353 = dma.done [#allocation5], 64
    $region37: #{word_sequence_forward.1} parent=1 // pred_fallthru
      _
    %4354 = vsyncpa [#allocation3], 1
    %4355 = vsyncpa [#allocation5], 1

</llo_original>
